<compile_context>
chip_gen: v7x
topology: tpu7x:2x2x1
jax: 0.10.0
libtpu: 0.0.40
codegen_flags: <defaults>
</compile_context>

<pallas_src>
import math
import jax
import jax.numpy as jnp
from jax import lax
from jax.experimental import pallas as pl
from jax.experimental.pallas import tpu as pltpu

# ----------------------------- config -----------------------------
HIDDEN = 32
VOCAB = 128
NUM_LAYERS = 2
NUM_HEADS = 2
HEAD_DIM = HIDDEN // NUM_HEADS
FFN = 64
MAX_POS = 32
BATCH = 2
SEQ = 8
TOKENS = BATCH * SEQ
ATTN_SCALE = 1.0 / math.sqrt(HEAD_DIM)
LANES = 128


# ------------------------ packed weight slab ------------------------
def _build_layout():
    """Row layout of the single (SLAB_ROWS, 128) f32 parameter slab."""
    layout = {}
    row = [0]

    def add(name, nrows, ncols):
        layout[name] = (row[0], nrows, ncols)
        row[0] += nrows

    add("word_emb", VOCAB, HIDDEN)          # token embedding table
    add("pos_type", MAX_POS, HIDDEN)        # pos_emb + type_emb[0] (pre-summed)
    add("emb_ln_g", 1, HIDDEN)
    add("emb_ln_b", 1, HIDDEN)
    for l in range(NUM_LAYERS):
        add(f"qkv_w{l}", HIDDEN, 3 * HIDDEN)   # fused [Q|K|V] projection
        add(f"qkv_b{l}", 1, 3 * HIDDEN)
        add(f"o_w{l}", HIDDEN, HIDDEN)
        add(f"o_b{l}", 1, HIDDEN)
        add(f"ln1_g{l}", 1, HIDDEN)
        add(f"ln1_b{l}", 1, HIDDEN)
        add(f"i_w{l}", HIDDEN, FFN)
        add(f"i_b{l}", 1, FFN)
        add(f"f_w{l}", FFN, HIDDEN)
        add(f"f_b{l}", 1, HIDDEN)
        add(f"ln2_g{l}", 1, HIDDEN)
        add(f"ln2_b{l}", 1, HIDDEN)
    add("cls_w", HIDDEN, VOCAB)
    add("cls_b", 1, VOCAB)
    total = ((row[0] + 7) // 8) * 8         # pad rows to a sublane multiple
    return layout, total


LAYOUT, SLAB_ROWS = _build_layout()


def _wslice(slab_ref, name, nrows=None):
    """Static slab slice -> (nrows, ncols) value (offsets are Python ints)."""
    r, nr, nc = LAYOUT[name]
    if nrows is not None:
        nr = nrows
    return slab_ref[pl.ds(r, nr), pl.ds(0, nc)]


# ------------------------- in-kernel helpers -------------------------
def _layernorm(x, g, b):
    mu = jnp.mean(x, axis=-1, keepdims=True)
    xc = x - mu
    var = jnp.mean(xc * xc, axis=-1, keepdims=True)
    return xc * lax.rsqrt(var + 1e-12) * g + b


def _gelu(z):
    # TODO(synk): BERT reference uses erf-GELU; tanh approximation kept for safe Mosaic lowering.
    return 0.5 * z * (1.0 + jnp.tanh(0.7978845608028654 * (z + 0.044715 * z * z * z)))


def _softmax_rows(s, approx_recip):
    s = s - jnp.max(s, axis=-1, keepdims=True)
    e = jnp.exp(s)
    d = jnp.sum(e, axis=-1, keepdims=True)
    if approx_recip:
        return e * pl.reciprocal(d, approx=True)   # EUP slot; off the VALU path
    return e / d                                    # exact (returned probabilities)


def _attention(qkv, bias3, slab_ref, layer):
    """Batched attention over the batch dim; per-head contexts kept in vregs."""
    ctx_heads = []
    for hh in range(NUM_HEADS):                     # NUM_HEADS=2, statically unrolled
        c0 = hh * HEAD_DIM
        q = qkv[:, c0:c0 + HEAD_DIM].reshape(BATCH, SEQ, HEAD_DIM)
        k = qkv[:, HIDDEN + c0:HIDDEN + c0 + HEAD_DIM].reshape(BATCH, SEQ, HEAD_DIM)
        v = qkv[:, 2 * HIDDEN + c0:2 * HIDDEN + c0 + HEAD_DIM].reshape(BATCH, SEQ, HEAD_DIM)
        # One batched matmul per (head, stage): contracts the head dim directly.
        s = jnp.einsum('bqd,bkd->bqk', q, k, preferred_element_type=jnp.float32)
        p = _softmax_rows(s * ATTN_SCALE + bias3, approx_recip=True)
        ctx = jnp.einsum('bqk,bkd->bqd', p, v, preferred_element_type=jnp.float32)
        ctx_heads.append(ctx.reshape(TOKENS, HEAD_DIM))
    # Lane-concatenate in registers -> no VMEM scratch, no partial stores.
    ctx_all = jnp.concatenate(ctx_heads, axis=1)                      # (M, H)
    out = jnp.dot(ctx_all, _wslice(slab_ref, f"o_w{layer}"),
                  preferred_element_type=jnp.float32) + _wslice(slab_ref, f"o_b{layer}")
    return out


def _forward_logits(slab_ref, idlab_ref, mask_ref):
    """Embeddings + both encoder layers + classifier, fully VMEM/vreg-resident."""
    idlab = idlab_ref[...]                                            # (M, 2) int32
    ids = idlab[:, 0:1]                                               # token ids

    # Embedding gather as a one-hot MXU matmul (in-kernel; no XLA gather).
    vocab_iota = lax.broadcasted_iota(jnp.int32, (TOKENS, VOCAB), 1)
    onehot = (vocab_iota == ids).astype(jnp.float32)                  # (M, V)
    word = jnp.dot(onehot, _wslice(slab_ref, "word_emb"),
                   preferred_element_type=jnp.float32)                # (M, H)
    pos_type = _wslice(slab_ref, "pos_type", nrows=SEQ)               # (S, H)
    pos = jnp.concatenate([pos_type] * BATCH, axis=0)                 # (M, H)
    h = _layernorm(word + pos, _wslice(slab_ref, "emb_ln_g"), _wslice(slab_ref, "emb_ln_b"))

    # Mask -> additive bias, computed once and hoisted out of all loops.
    bias3 = ((1.0 - mask_ref[...]) * -10000.0).reshape(BATCH, 1, SEQ)

    for l in range(NUM_LAYERS):
        qkv = jnp.dot(h, _wslice(slab_ref, f"qkv_w{l}"),
                      preferred_element_type=jnp.float32) + _wslice(slab_ref, f"qkv_b{l}")
        h = _layernorm(h + _attention(qkv, bias3, slab_ref, l),
                       _wslice(slab_ref, f"ln1_g{l}"), _wslice(slab_ref, f"ln1_b{l}"))
        ff = _gelu(jnp.dot(h, _wslice(slab_ref, f"i_w{l}"),
                           preferred_element_type=jnp.float32) + _wslice(slab_ref, f"i_b{l}"))
        ff = jnp.dot(ff, _wslice(slab_ref, f"f_w{l}"),
                     preferred_element_type=jnp.float32) + _wslice(slab_ref, f"f_b{l}")
        h = _layernorm(h + ff, _wslice(slab_ref, f"ln2_g{l}"), _wslice(slab_ref, f"ln2_b{l}"))

    # Classifier: lane-dense (M, 128) output.
    return jnp.dot(h, _wslice(slab_ref, "cls_w"),
                   preferred_element_type=jnp.float32) + _wslice(slab_ref, "cls_b")


# ------------------------- fused kernels -------------------------
def _probs_kernel(slab_ref, idlab_ref, mask_ref, out_ref):
    logits = _forward_logits(slab_ref, idlab_ref, mask_ref)
    out_ref[...] = _softmax_rows(logits, approx_recip=False)          # exact probs


def _loss_kernel(slab_ref, idlab_ref, mask_ref, out_ref):
    logits = _forward_logits(slab_ref, idlab_ref, mask_ref)
    labels = idlab_ref[...][:, 1:2]                                   # (M, 1) int32
    m = jnp.max(logits, axis=-1, keepdims=True)
    lse = jnp.log(jnp.sum(jnp.exp(logits - m), axis=-1, keepdims=True)) + m
    cls_iota = lax.broadcasted_iota(jnp.int32, logits.shape, 1)
    tgt = jnp.sum(jnp.where(cls_iota == labels, logits, 0.0), axis=-1, keepdims=True)
    nll = lse - tgt                                                   # (M, 1) per-token NLL
    valid = (labels != 0).astype(jnp.float32)                         # ignore_index=0
    num = jnp.sum(nll * valid, axis=0, keepdims=True)                 # (1, 1)
    den = jnp.sum(valid, axis=0, keepdims=True)                       # (1, 1)
    out_ref[...] = num / den            # matches torch CE (NaN if every label ignored)


# ------------------------- pallas_call glue -------------------------
def _fused_call(kernel, slab, idlab, attn_mask, out_shape):
    # Single program: whole model (~280 KB of weights) is trivially VMEM-resident.
    # TODO(synk): at real BERT sizes add a leading 'parallel' token-grid axis
    # (v7x: 2 TCs) and set vmem_limit_bytes against v7x's 64 MiB per-core VMEM.
    return pl.pallas_call(
        kernel,
        out_shape=out_shape,
        grid=(1,),
        in_specs=[pl.BlockSpec(slab.shape, lambda i: (0, 0)),
                  pl.BlockSpec(idlab.shape, lambda i: (0, 0)),
                  pl.BlockSpec(attn_mask.shape, lambda i: (0, 0))],
        out_specs=pl.BlockSpec(out_shape.shape, lambda i: (0, 0)),
        compiler_params=pltpu.CompilerParams(dimension_semantics=("arbitrary",)),
    )(slab, idlab, attn_mask)


# --------------------------- parameters ---------------------------
def init_params(key):
    def nrm(k, shape):
        return (0.02 * jax.random.normal(k, shape, jnp.float32)).astype(jnp.float32)

    keys = jax.random.split(key, 4 + NUM_LAYERS)
    params = dict(
        word_emb=nrm(keys[0], (VOCAB, HIDDEN)),
        pos_emb=nrm(keys[1], (MAX_POS, HIDDEN)),
        type_emb=nrm(keys[2], (2, HIDDEN)),
        emb_ln_g=jnp.ones((HIDDEN,), jnp.float32),
        emb_ln_b=jnp.zeros((HIDDEN,), jnp.float32),
        cls_w=nrm(keys[3], (HIDDEN, VOCAB)),
        cls_b=jnp.zeros((VOCAB,), jnp.float32),
        layers=[],
    )
    for li in range(NUM_LAYERS):
        lk = jax.random.split(keys[4 + li], 6)
        params["layers"].append(dict(
            q_w=nrm(lk[0], (HIDDEN, HIDDEN)), q_b=jnp.zeros((HIDDEN,), jnp.float32),
            k_w=nrm(lk[1], (HIDDEN, HIDDEN)), k_b=jnp.zeros((HIDDEN,), jnp.float32),
            v_w=nrm(lk[2], (HIDDEN, HIDDEN)), v_b=jnp.zeros((HIDDEN,), jnp.float32),
            o_w=nrm(lk[3], (HIDDEN, HIDDEN)), o_b=jnp.zeros((HIDDEN,), jnp.float32),
            ln1_g=jnp.ones((HIDDEN,), jnp.float32), ln1_b=jnp.zeros((HIDDEN,), jnp.float32),
            i_w=nrm(lk[4], (HIDDEN, FFN)), i_b=jnp.zeros((FFN,), jnp.float32),
            f_w=nrm(lk[5], (FFN, HIDDEN)), f_b=jnp.zeros((HIDDEN,), jnp.float32),
            ln2_g=jnp.ones((HIDDEN,), jnp.float32), ln2_b=jnp.zeros((HIDDEN,), jnp.float32),
        ))
    return params


def pack_params(params):
    """One-time packing of every parameter into a single lane-dense (R,128) slab."""
    slab = jnp.zeros((SLAB_ROWS, LANES), jnp.float32)

    def put(slab, name, mat):
        r, nr, nc = LAYOUT[name]
        mat = jnp.asarray(mat, jnp.float32).reshape(nr, nc)
        return slab.at[r:r + nr, :nc].set(mat)

    slab = put(slab, "word_emb", params["word_emb"])
    slab = put(slab, "pos_type", params["pos_emb"] + params["type_emb"][0][None, :])
    slab = put(slab, "emb_ln_g", params["emb_ln_g"])
    slab = put(slab, "emb_ln_b", params["emb_ln_b"])
    for l, L in enumerate(params["layers"]):
        slab = put(slab, f"qkv_w{l}", jnp.concatenate([L["q_w"], L["k_w"], L["v_w"]], axis=1))
        slab = put(slab, f"qkv_b{l}", jnp.concatenate([L["q_b"], L["k_b"], L["v_b"]]))
        slab = put(slab, f"o_w{l}", L["o_w"])
        slab = put(slab, f"o_b{l}", L["o_b"])
        slab = put(slab, f"ln1_g{l}", L["ln1_g"])
        slab = put(slab, f"ln1_b{l}", L["ln1_b"])
        slab = put(slab, f"i_w{l}", L["i_w"])
        slab = put(slab, f"i_b{l}", L["i_b"])
        slab = put(slab, f"f_w{l}", L["f_w"])
        slab = put(slab, f"f_b{l}", L["f_b"])
        slab = put(slab, f"ln2_g{l}", L["ln2_g"])
        slab = put(slab, f"ln2_b{l}", L["ln2_b"])
    slab = put(slab, "cls_w", params["cls_w"])
    slab = put(slab, "cls_b", params["cls_b"])
    return slab


# --------------------------- model glue ---------------------------
def language_model_forward(slab, x, y=None, mask=None):
    """Mirrors LanguageModel.forward: scalar loss if y given, else softmax probs."""
    B, S = x.shape
    ids = x.reshape(B * S, 1).astype(jnp.int32)
    labels = (y.reshape(B * S, 1).astype(jnp.int32) if y is not None
              else jnp.zeros((B * S, 1), jnp.int32))
    idlab = jnp.concatenate([ids, labels], axis=1)                    # (M, 2) int32

    if y is not None and mask is not None:
        attn_mask = mask.astype(jnp.float32)
    else:
        attn_mask = jnp.ones((B, S), jnp.float32)   # self.bert(x) path: no attention mask

    if y is not None:
        loss = _fused_call(_loss_kernel, slab, idlab, attn_mask,
                           jax.ShapeDtypeStruct((1, 1), jnp.float32))
        return loss[0, 0]
    probs = _fused_call(_probs_kernel, slab, idlab, attn_mask,
                        jax.ShapeDtypeStruct((B * S, VOCAB), jnp.float32))
    return probs.reshape(B, S, VOCAB)


# ------------------------------ main ------------------------------
if __name__ == "__main__":
    key = jax.random.PRNGKey(0)
    kp, kx, ky = jax.random.split(key, 3)
    slab = pack_params(init_params(kp))

    x = jax.random.randint(kx, (BATCH, SEQ), 1, VOCAB, dtype=jnp.int32)
    y = jax.random.randint(ky, (BATCH, SEQ), 0, VOCAB, dtype=jnp.int32)
    y = y.at[0, 0].set(0)  # exercise ignore_index=0
    mask = jnp.ones((BATCH, SEQ), jnp.float32).at[1, -2:].set(0.0)

    # inference path: softmax over vocab
    probs = language_model_forward(slab, x)
    probs = jax.block_until_ready(probs)
    assert probs.shape == (BATCH, SEQ, VOCAB)

    # training path: masked cross-entropy loss (scalar)
    loss = language_model_forward(slab, x, y=y, mask=mask)
    loss = jax.block_until_ready(loss)
    assert loss.shape == ()

    print("KERNEL_OK")
</pallas_src>

<mosaic_0001>
module attributes {stable_mosaic.version = 11 : i64} {
  func.func @_probs_kernel(%arg0: i32, %arg1: memref<536x128xf32, #tpu.memory_space<vmem>>, %arg2: memref<16x2xi32, #tpu.memory_space<vmem>>, %arg3: memref<2x8xf32, #tpu.memory_space<vmem>>, %arg4: memref<16x128xf32, #tpu.memory_space<vmem>>) attributes {dimension_semantics = [#tpu.dimension_semantics<arbitrary>], iteration_bounds = array<i64: 1>, scalar_prefetch = 0 : i64, scratch_operands = 0 : i64, tpu.core_type = #tpu.core_type<tc>, window_params = [{pipeline_mode = #tpu.pipeline_mode<synchronous>, transform_indices = @transform_0, window_bounds = array<i64: 536, 128>}, {pipeline_mode = #tpu.pipeline_mode<synchronous>, transform_indices = @transform_1, window_bounds = array<i64: 16, 2>}, {pipeline_mode = #tpu.pipeline_mode<synchronous>, transform_indices = @transform_2, window_bounds = array<i64: 2, 8>}, {pipeline_mode = #tpu.pipeline_mode<synchronous>, transform_indices = @transform_3, window_bounds = array<i64: 16, 128>}]} {
    %c0 = arith.constant 0 : index
    %c0_0 = arith.constant 0 : index
    %0 = vector.load %arg2[%c0, %c0_0] : memref<16x2xi32, #tpu.memory_space<vmem>>, vector<16x2xi32>
    %1 = vector.extract_strided_slice %0 {offsets = [0, 0], sizes = [16, 1], strides = [1, 1]} : vector<16x2xi32> to vector<16x1xi32>
    %2 = tpu.iota {dimensions = array<i32: 1>} : vector<16x128xi32>
    %3 = vector.broadcast %1 : vector<16x1xi32> to vector<16x128xi32>
    %4 = arith.cmpi eq, %2, %3 : vector<16x128xi32>
    %5 = arith.extui %4 : vector<16x128xi1> to vector<16x128xi32>
    %6 = arith.sitofp %5 : vector<16x128xi32> to vector<16x128xf32>
    %c0_1 = arith.constant 0 : index
    %c0_2 = arith.constant 0 : index
    %7 = vector.load %arg1[%c0_1, %c0_2] : memref<536x128xf32, #tpu.memory_space<vmem>>, vector<128x32xf32>
    %cst = arith.constant dense<0.000000e+00> : vector<16x32xf32>
    %8 = tpu.matmul %6, %7, %cst {dimension_numbers = #tpu.dot_dimension_numbers<[1], [0], [0], [1], [0, 0, 1, 1], [], []>} : vector<16x128xf32>, vector<128x32xf32>, vector<16x32xf32> -> vector<16x32xf32>
    %c128 = arith.constant 128 : index
    %c0_3 = arith.constant 0 : index
    %9 = vector.load %arg1[%c128, %c0_3] : memref<536x128xf32, #tpu.memory_space<vmem>>, vector<8x32xf32>
    %10 = tpu.concatenate %9, %9 in 0 : vector<8x32xf32>, vector<8x32xf32> -> vector<16x32xf32>
    %11 = arith.addf %8, %10 : vector<16x32xf32>
    %c160 = arith.constant 160 : index
    %c0_4 = arith.constant 0 : index
    %12 = vector.load %arg1[%c160, %c0_4] : memref<536x128xf32, #tpu.memory_space<vmem>>, vector<1x32xf32>
    %c161 = arith.constant 161 : index
    %c0_5 = arith.constant 0 : index
    %13 = vector.load %arg1[%c161, %c0_5] : memref<536x128xf32, #tpu.memory_space<vmem>>, vector<1x32xf32>
    %cst_6 = arith.constant dense<0.000000e+00> : vector<16xf32>
    %14 = vector.multi_reduction <add>, %11, %cst_6 [1] : vector<16x32xf32> to vector<16xf32>
    %15 = vector.shape_cast %14 : vector<16xf32> to vector<16x1xf32>
    %cst_7 = arith.constant 3.200000e+01 : f32
    %16 = vector.broadcast %cst_7 : f32 to vector<16x1xf32>
    %17 = arith.divf %15, %16 : vector<16x1xf32>
    %18 = vector.broadcast %17 : vector<16x1xf32> to vector<16x32xf32>
    %19 = arith.subf %11, %18 : vector<16x32xf32>
    %20 = arith.mulf %19, %19 : vector<16x32xf32>
    %cst_8 = arith.constant dense<0.000000e+00> : vector<16xf32>
    %21 = vector.multi_reduction <add>, %20, %cst_8 [1] : vector<16x32xf32> to vector<16xf32>
    %22 = vector.shape_cast %21 : vector<16xf32> to vector<16x1xf32>
    %cst_9 = arith.constant 3.200000e+01 : f32
    %23 = vector.broadcast %cst_9 : f32 to vector<16x1xf32>
    %24 = arith.divf %22, %23 : vector<16x1xf32>
    %cst_10 = arith.constant 9.99999996E-13 : f32
    %25 = vector.broadcast %cst_10 : f32 to vector<16x1xf32>
    %26 = arith.addf %24, %25 : vector<16x1xf32>
    %27 = math.rsqrt %26 : vector<16x1xf32>
    %28 = vector.broadcast %27 : vector<16x1xf32> to vector<16x32xf32>
    %29 = arith.mulf %19, %28 : vector<16x32xf32>
    %30 = vector.broadcast %12 : vector<1x32xf32> to vector<16x32xf32>
    %31 = arith.mulf %29, %30 : vector<16x32xf32>
    %32 = vector.broadcast %13 : vector<1x32xf32> to vector<16x32xf32>
    %33 = arith.addf %31, %32 : vector<16x32xf32>
    %c0_11 = arith.constant 0 : index
    %c0_12 = arith.constant 0 : index
    %34 = vector.load %arg3[%c0_11, %c0_12] : memref<2x8xf32, #tpu.memory_space<vmem>>, vector<2x8xf32>
    %cst_13 = arith.constant 1.000000e+00 : f32
    %35 = vector.broadcast %cst_13 : f32 to vector<2x8xf32>
    %36 = arith.subf %35, %34 : vector<2x8xf32>
    %cst_14 = arith.constant -1.000000e+04 : f32
    %37 = vector.broadcast %cst_14 : f32 to vector<2x8xf32>
    %38 = arith.mulf %36, %37 : vector<2x8xf32>
    %39 = vector.shape_cast %38 : vector<2x8xf32> to vector<2x1x8xf32>
    %c162 = arith.constant 162 : index
    %c0_15 = arith.constant 0 : index
    %40 = vector.load %arg1[%c162, %c0_15] : memref<536x128xf32, #tpu.memory_space<vmem>>, vector<32x96xf32>
    %cst_16 = arith.constant dense<0.000000e+00> : vector<16x96xf32>
    %41 = tpu.matmul %33, %40, %cst_16 {dimension_numbers = #tpu.dot_dimension_numbers<[1], [0], [0], [1], [0, 0, 1, 1], [], []>} : vector<16x32xf32>, vector<32x96xf32>, vector<16x96xf32> -> vector<16x96xf32>
    %c194 = arith.constant 194 : index
    %c0_17 = arith.constant 0 : index
    %42 = vector.load %arg1[%c194, %c0_17] : memref<536x128xf32, #tpu.memory_space<vmem>>, vector<1x96xf32>
    %43 = vector.broadcast %42 : vector<1x96xf32> to vector<16x96xf32>
    %44 = arith.addf %41, %43 : vector<16x96xf32>
    %45 = vector.extract_strided_slice %44 {offsets = [0, 0], sizes = [16, 16], strides = [1, 1]} : vector<16x96xf32> to vector<16x16xf32>
    %46 = vector.shape_cast %45 : vector<16x16xf32> to vector<2x8x16xf32>
    %47 = vector.extract_strided_slice %44 {offsets = [0, 32], sizes = [16, 16], strides = [1, 1]} : vector<16x96xf32> to vector<16x16xf32>
    %48 = vector.shape_cast %47 : vector<16x16xf32> to vector<2x8x16xf32>
    %49 = vector.extract_strided_slice %44 {offsets = [0, 64], sizes = [16, 16], strides = [1, 1]} : vector<16x96xf32> to vector<16x16xf32>
    %50 = vector.shape_cast %49 : vector<16x16xf32> to vector<2x8x16xf32>
    "tpu.trace_start"() <{level = 10 : i32, message = "bqd,bkd->bqk"}> : () -> ()
    %cst_18 = arith.constant dense<0.000000e+00> : vector<2x8x8xf32>
    %51 = tpu.matmul %46, %48, %cst_18 {dimension_numbers = #tpu.dot_dimension_numbers<[2], [2], [1], [1], [0, 0, 0, 1, 1, 1], [0], [0]>} : vector<2x8x16xf32>, vector<2x8x16xf32>, vector<2x8x8xf32> -> vector<2x8x8xf32>
    "tpu.trace_stop"() : () -> ()
    %cst_19 = arith.constant 2.500000e-01 : f32
    %52 = vector.broadcast %cst_19 : f32 to vector<2x8x8xf32>
    %53 = arith.mulf %51, %52 : vector<2x8x8xf32>
    %54 = vector.broadcast %39 : vector<2x1x8xf32> to vector<2x8x8xf32>
    %55 = arith.addf %53, %54 : vector<2x8x8xf32>
    %cst_20 = arith.constant dense<0xFF800000> : vector<2x8xf32>
    %56 = vector.multi_reduction <maximumf>, %55, %cst_20 [2] : vector<2x8x8xf32> to vector<2x8xf32>
    %57 = vector.shape_cast %56 : vector<2x8xf32> to vector<2x8x1xf32>
    %58 = vector.broadcast %57 : vector<2x8x1xf32> to vector<2x8x8xf32>
    %59 = arith.subf %55, %58 : vector<2x8x8xf32>
    %60 = math.exp %59 : vector<2x8x8xf32>
    %cst_21 = arith.constant dense<0.000000e+00> : vector<2x8xf32>
    %61 = vector.multi_reduction <add>, %60, %cst_21 [2] : vector<2x8x8xf32> to vector<2x8xf32>
    %62 = vector.shape_cast %61 : vector<2x8xf32> to vector<2x8x1xf32>
    %63 = tpu.reciprocal %62 {approx = true} : vector<2x8x1xf32> -> vector<2x8x1xf32>
    %64 = vector.broadcast %63 : vector<2x8x1xf32> to vector<2x8x8xf32>
    %65 = arith.mulf %60, %64 : vector<2x8x8xf32>
    "tpu.trace_start"() <{level = 10 : i32, message = "bqk,bkd->bqd"}> : () -> ()
    %cst_22 = arith.constant dense<0.000000e+00> : vector<2x8x16xf32>
    %66 = tpu.matmul %65, %50, %cst_22 {dimension_numbers = #tpu.dot_dimension_numbers<[2], [1], [1], [2], [0, 0, 0, 1, 1, 2], [0], [0]>} : vector<2x8x8xf32>, vector<2x8x16xf32>, vector<2x8x16xf32> -> vector<2x8x16xf32>
    "tpu.trace_stop"() : () -> ()
    %67 = vector.shape_cast %66 : vector<2x8x16xf32> to vector<16x16xf32>
    %68 = vector.extract_strided_slice %44 {offsets = [0, 16], sizes = [16, 16], strides = [1, 1]} : vector<16x96xf32> to vector<16x16xf32>
    %69 = vector.shape_cast %68 : vector<16x16xf32> to vector<2x8x16xf32>
    %70 = vector.extract_strided_slice %44 {offsets = [0, 48], sizes = [16, 16], strides = [1, 1]} : vector<16x96xf32> to vector<16x16xf32>
    %71 = vector.shape_cast %70 : vector<16x16xf32> to vector<2x8x16xf32>
    %72 = vector.extract_strided_slice %44 {offsets = [0, 80], sizes = [16, 16], strides = [1, 1]} : vector<16x96xf32> to vector<16x16xf32>
    %73 = vector.shape_cast %72 : vector<16x16xf32> to vector<2x8x16xf32>
    "tpu.trace_start"() <{level = 10 : i32, message = "bqd,bkd->bqk"}> : () -> ()
    %cst_23 = arith.constant dense<0.000000e+00> : vector<2x8x8xf32>
    %74 = tpu.matmul %69, %71, %cst_23 {dimension_numbers = #tpu.dot_dimension_numbers<[2], [2], [1], [1], [0, 0, 0, 1, 1, 1], [0], [0]>} : vector<2x8x16xf32>, vector<2x8x16xf32>, vector<2x8x8xf32> -> vector<2x8x8xf32>
    "tpu.trace_stop"() : () -> ()
    %cst_24 = arith.constant 2.500000e-01 : f32
    %75 = vector.broadcast %cst_24 : f32 to vector<2x8x8xf32>
    %76 = arith.mulf %74, %75 : vector<2x8x8xf32>
    %77 = vector.broadcast %39 : vector<2x1x8xf32> to vector<2x8x8xf32>
    %78 = arith.addf %76, %77 : vector<2x8x8xf32>
    %cst_25 = arith.constant dense<0xFF800000> : vector<2x8xf32>
    %79 = vector.multi_reduction <maximumf>, %78, %cst_25 [2] : vector<2x8x8xf32> to vector<2x8xf32>
    %80 = vector.shape_cast %79 : vector<2x8xf32> to vector<2x8x1xf32>
    %81 = vector.broadcast %80 : vector<2x8x1xf32> to vector<2x8x8xf32>
    %82 = arith.subf %78, %81 : vector<2x8x8xf32>
    %83 = math.exp %82 : vector<2x8x8xf32>
    %cst_26 = arith.constant dense<0.000000e+00> : vector<2x8xf32>
    %84 = vector.multi_reduction <add>, %83, %cst_26 [2] : vector<2x8x8xf32> to vector<2x8xf32>
    %85 = vector.shape_cast %84 : vector<2x8xf32> to vector<2x8x1xf32>
    %86 = tpu.reciprocal %85 {approx = true} : vector<2x8x1xf32> -> vector<2x8x1xf32>
    %87 = vector.broadcast %86 : vector<2x8x1xf32> to vector<2x8x8xf32>
    %88 = arith.mulf %83, %87 : vector<2x8x8xf32>
    "tpu.trace_start"() <{level = 10 : i32, message = "bqk,bkd->bqd"}> : () -> ()
    %cst_27 = arith.constant dense<0.000000e+00> : vector<2x8x16xf32>
    %89 = tpu.matmul %88, %73, %cst_27 {dimension_numbers = #tpu.dot_dimension_numbers<[2], [1], [1], [2], [0, 0, 0, 1, 1, 2], [0], [0]>} : vector<2x8x8xf32>, vector<2x8x16xf32>, vector<2x8x16xf32> -> vector<2x8x16xf32>
    "tpu.trace_stop"() : () -> ()
    %90 = vector.shape_cast %89 : vector<2x8x16xf32> to vector<16x16xf32>
    %91 = tpu.concatenate %67, %90 in 1 : vector<16x16xf32>, vector<16x16xf32> -> vector<16x32xf32>
    %c195 = arith.constant 195 : index
    %c0_28 = arith.constant 0 : index
    %92 = vector.load %arg1[%c195, %c0_28] : memref<536x128xf32, #tpu.memory_space<vmem>>, vector<32x32xf32>
    %cst_29 = arith.constant dense<0.000000e+00> : vector<16x32xf32>
    %93 = tpu.matmul %91, %92, %cst_29 {dimension_numbers = #tpu.dot_dimension_numbers<[1], [0], [0], [1], [0, 0, 1, 1], [], []>} : vector<16x32xf32>, vector<32x32xf32>, vector<16x32xf32> -> vector<16x32xf32>
    %c227 = arith.constant 227 : index
    %c0_30 = arith.constant 0 : index
    %94 = vector.load %arg1[%c227, %c0_30] : memref<536x128xf32, #tpu.memory_space<vmem>>, vector<1x32xf32>
    %95 = vector.broadcast %94 : vector<1x32xf32> to vector<16x32xf32>
    %96 = arith.addf %93, %95 : vector<16x32xf32>
    %97 = arith.addf %33, %96 : vector<16x32xf32>
    %c228 = arith.constant 228 : index
    %c0_31 = arith.constant 0 : index
    %98 = vector.load %arg1[%c228, %c0_31] : memref<536x128xf32, #tpu.memory_space<vmem>>, vector<1x32xf32>
    %c229 = arith.constant 229 : index
    %c0_32 = arith.constant 0 : index
    %99 = vector.load %arg1[%c229, %c0_32] : memref<536x128xf32, #tpu.memory_space<vmem>>, vector<1x32xf32>
    %cst_33 = arith.constant dense<0.000000e+00> : vector<16xf32>
    %100 = vector.multi_reduction <add>, %97, %cst_33 [1] : vector<16x32xf32> to vector<16xf32>
    %101 = vector.shape_cast %100 : vector<16xf32> to vector<16x1xf32>
    %cst_34 = arith.constant 3.200000e+01 : f32
    %102 = vector.broadcast %cst_34 : f32 to vector<16x1xf32>
    %103 = arith.divf %101, %102 : vector<16x1xf32>
    %104 = vector.broadcast %103 : vector<16x1xf32> to vector<16x32xf32>
    %105 = arith.subf %97, %104 : vector<16x32xf32>
    %106 = arith.mulf %105, %105 : vector<16x32xf32>
    %cst_35 = arith.constant dense<0.000000e+00> : vector<16xf32>
    %107 = vector.multi_reduction <add>, %106, %cst_35 [1] : vector<16x32xf32> to vector<16xf32>
    %108 = vector.shape_cast %107 : vector<16xf32> to vector<16x1xf32>
    %cst_36 = arith.constant 3.200000e+01 : f32
    %109 = vector.broadcast %cst_36 : f32 to vector<16x1xf32>
    %110 = arith.divf %108, %109 : vector<16x1xf32>
    %cst_37 = arith.constant 9.99999996E-13 : f32
    %111 = vector.broadcast %cst_37 : f32 to vector<16x1xf32>
    %112 = arith.addf %110, %111 : vector<16x1xf32>
    %113 = math.rsqrt %112 : vector<16x1xf32>
    %114 = vector.broadcast %113 : vector<16x1xf32> to vector<16x32xf32>
    %115 = arith.mulf %105, %114 : vector<16x32xf32>
    %116 = vector.broadcast %98 : vector<1x32xf32> to vector<16x32xf32>
    %117 = arith.mulf %115, %116 : vector<16x32xf32>
    %118 = vector.broadcast %99 : vector<1x32xf32> to vector<16x32xf32>
    %119 = arith.addf %117, %118 : vector<16x32xf32>
    %c230 = arith.constant 230 : index
    %c0_38 = arith.constant 0 : index
    %120 = vector.load %arg1[%c230, %c0_38] : memref<536x128xf32, #tpu.memory_space<vmem>>, vector<32x64xf32>
    %cst_39 = arith.constant dense<0.000000e+00> : vector<16x64xf32>
    %121 = tpu.matmul %119, %120, %cst_39 {dimension_numbers = #tpu.dot_dimension_numbers<[1], [0], [0], [1], [0, 0, 1, 1], [], []>} : vector<16x32xf32>, vector<32x64xf32>, vector<16x64xf32> -> vector<16x64xf32>
    %c262 = arith.constant 262 : index
    %c0_40 = arith.constant 0 : index
    %122 = vector.load %arg1[%c262, %c0_40] : memref<536x128xf32, #tpu.memory_space<vmem>>, vector<1x64xf32>
    %123 = vector.broadcast %122 : vector<1x64xf32> to vector<16x64xf32>
    %124 = arith.addf %121, %123 : vector<16x64xf32>
    %cst_41 = arith.constant 5.000000e-01 : f32
    %125 = vector.broadcast %cst_41 : f32 to vector<16x64xf32>
    %126 = arith.mulf %125, %124 : vector<16x64xf32>
    %cst_42 = arith.constant 4.471500e-02 : f32
    %127 = vector.broadcast %cst_42 : f32 to vector<16x64xf32>
    %128 = arith.mulf %127, %124 : vector<16x64xf32>
    %129 = arith.mulf %128, %124 : vector<16x64xf32>
    %130 = arith.mulf %129, %124 : vector<16x64xf32>
    %131 = arith.addf %124, %130 : vector<16x64xf32>
    %cst_43 = arith.constant 0.797884583 : f32
    %132 = vector.broadcast %cst_43 : f32 to vector<16x64xf32>
    %133 = arith.mulf %132, %131 : vector<16x64xf32>
    %134 = math.tanh %133 : vector<16x64xf32>
    %cst_44 = arith.constant 1.000000e+00 : f32
    %135 = vector.broadcast %cst_44 : f32 to vector<16x64xf32>
    %136 = arith.addf %135, %134 : vector<16x64xf32>
    %137 = arith.mulf %126, %136 : vector<16x64xf32>
    %c263 = arith.constant 263 : index
    %c0_45 = arith.constant 0 : index
    %138 = vector.load %arg1[%c263, %c0_45] : memref<536x128xf32, #tpu.memory_space<vmem>>, vector<64x32xf32>
    %cst_46 = arith.constant dense<0.000000e+00> : vector<16x32xf32>
    %139 = tpu.matmul %137, %138, %cst_46 {dimension_numbers = #tpu.dot_dimension_numbers<[1], [0], [0], [1], [0, 0, 1, 1], [], []>} : vector<16x64xf32>, vector<64x32xf32>, vector<16x32xf32> -> vector<16x32xf32>
    %c327 = arith.constant 327 : index
    %c0_47 = arith.constant 0 : index
    %140 = vector.load %arg1[%c327, %c0_47] : memref<536x128xf32, #tpu.memory_space<vmem>>, vector<1x32xf32>
    %141 = vector.broadcast %140 : vector<1x32xf32> to vector<16x32xf32>
    %142 = arith.addf %139, %141 : vector<16x32xf32>
    %143 = arith.addf %119, %142 : vector<16x32xf32>
    %c328 = arith.constant 328 : index
    %c0_48 = arith.constant 0 : index
    %144 = vector.load %arg1[%c328, %c0_48] : memref<536x128xf32, #tpu.memory_space<vmem>>, vector<1x32xf32>
    %c329 = arith.constant 329 : index
    %c0_49 = arith.constant 0 : index
    %145 = vector.load %arg1[%c329, %c0_49] : memref<536x128xf32, #tpu.memory_space<vmem>>, vector<1x32xf32>
    %cst_50 = arith.constant dense<0.000000e+00> : vector<16xf32>
    %146 = vector.multi_reduction <add>, %143, %cst_50 [1] : vector<16x32xf32> to vector<16xf32>
    %147 = vector.shape_cast %146 : vector<16xf32> to vector<16x1xf32>
    %cst_51 = arith.constant 3.200000e+01 : f32
    %148 = vector.broadcast %cst_51 : f32 to vector<16x1xf32>
    %149 = arith.divf %147, %148 : vector<16x1xf32>
    %150 = vector.broadcast %149 : vector<16x1xf32> to vector<16x32xf32>
    %151 = arith.subf %143, %150 : vector<16x32xf32>
    %152 = arith.mulf %151, %151 : vector<16x32xf32>
    %cst_52 = arith.constant dense<0.000000e+00> : vector<16xf32>
    %153 = vector.multi_reduction <add>, %152, %cst_52 [1] : vector<16x32xf32> to vector<16xf32>
    %154 = vector.shape_cast %153 : vector<16xf32> to vector<16x1xf32>
    %cst_53 = arith.constant 3.200000e+01 : f32
    %155 = vector.broadcast %cst_53 : f32 to vector<16x1xf32>
    %156 = arith.divf %154, %155 : vector<16x1xf32>
    %cst_54 = arith.constant 9.99999996E-13 : f32
    %157 = vector.broadcast %cst_54 : f32 to vector<16x1xf32>
    %158 = arith.addf %156, %157 : vector<16x1xf32>
    %159 = math.rsqrt %158 : vector<16x1xf32>
    %160 = vector.broadcast %159 : vector<16x1xf32> to vector<16x32xf32>
    %161 = arith.mulf %151, %160 : vector<16x32xf32>
    %162 = vector.broadcast %144 : vector<1x32xf32> to vector<16x32xf32>
    %163 = arith.mulf %161, %162 : vector<16x32xf32>
    %164 = vector.broadcast %145 : vector<1x32xf32> to vector<16x32xf32>
    %165 = arith.addf %163, %164 : vector<16x32xf32>
    %c330 = arith.constant 330 : index
    %c0_55 = arith.constant 0 : index
    %166 = vector.load %arg1[%c330, %c0_55] : memref<536x128xf32, #tpu.memory_space<vmem>>, vector<32x96xf32>
    %cst_56 = arith.constant dense<0.000000e+00> : vector<16x96xf32>
    %167 = tpu.matmul %165, %166, %cst_56 {dimension_numbers = #tpu.dot_dimension_numbers<[1], [0], [0], [1], [0, 0, 1, 1], [], []>} : vector<16x32xf32>, vector<32x96xf32>, vector<16x96xf32> -> vector<16x96xf32>
    %c362 = arith.constant 362 : index
    %c0_57 = arith.constant 0 : index
    %168 = vector.load %arg1[%c362, %c0_57] : memref<536x128xf32, #tpu.memory_space<vmem>>, vector<1x96xf32>
    %169 = vector.broadcast %168 : vector<1x96xf32> to vector<16x96xf32>
    %170 = arith.addf %167, %169 : vector<16x96xf32>
    %171 = vector.extract_strided_slice %170 {offsets = [0, 0], sizes = [16, 16], strides = [1, 1]} : vector<16x96xf32> to vector<16x16xf32>
    %172 = vector.shape_cast %171 : vector<16x16xf32> to vector<2x8x16xf32>
    %173 = vector.extract_strided_slice %170 {offsets = [0, 32], sizes = [16, 16], strides = [1, 1]} : vector<16x96xf32> to vector<16x16xf32>
    %174 = vector.shape_cast %173 : vector<16x16xf32> to vector<2x8x16xf32>
    %175 = vector.extract_strided_slice %170 {offsets = [0, 64], sizes = [16, 16], strides = [1, 1]} : vector<16x96xf32> to vector<16x16xf32>
    %176 = vector.shape_cast %175 : vector<16x16xf32> to vector<2x8x16xf32>
    "tpu.trace_start"() <{level = 10 : i32, message = "bqd,bkd->bqk"}> : () -> ()
    %cst_58 = arith.constant dense<0.000000e+00> : vector<2x8x8xf32>
    %177 = tpu.matmul %172, %174, %cst_58 {dimension_numbers = #tpu.dot_dimension_numbers<[2], [2], [1], [1], [0, 0, 0, 1, 1, 1], [0], [0]>} : vector<2x8x16xf32>, vector<2x8x16xf32>, vector<2x8x8xf32> -> vector<2x8x8xf32>
    "tpu.trace_stop"() : () -> ()
    %cst_59 = arith.constant 2.500000e-01 : f32
    %178 = vector.broadcast %cst_59 : f32 to vector<2x8x8xf32>
    %179 = arith.mulf %177, %178 : vector<2x8x8xf32>
    %180 = vector.broadcast %39 : vector<2x1x8xf32> to vector<2x8x8xf32>
    %181 = arith.addf %179, %180 : vector<2x8x8xf32>
    %cst_60 = arith.constant dense<0xFF800000> : vector<2x8xf32>
    %182 = vector.multi_reduction <maximumf>, %181, %cst_60 [2] : vector<2x8x8xf32> to vector<2x8xf32>
    %183 = vector.shape_cast %182 : vector<2x8xf32> to vector<2x8x1xf32>
    %184 = vector.broadcast %183 : vector<2x8x1xf32> to vector<2x8x8xf32>
    %185 = arith.subf %181, %184 : vector<2x8x8xf32>
    %186 = math.exp %185 : vector<2x8x8xf32>
    %cst_61 = arith.constant dense<0.000000e+00> : vector<2x8xf32>
    %187 = vector.multi_reduction <add>, %186, %cst_61 [2] : vector<2x8x8xf32> to vector<2x8xf32>
    %188 = vector.shape_cast %187 : vector<2x8xf32> to vector<2x8x1xf32>
    %189 = tpu.reciprocal %188 {approx = true} : vector<2x8x1xf32> -> vector<2x8x1xf32>
    %190 = vector.broadcast %189 : vector<2x8x1xf32> to vector<2x8x8xf32>
    %191 = arith.mulf %186, %190 : vector<2x8x8xf32>
    "tpu.trace_start"() <{level = 10 : i32, message = "bqk,bkd->bqd"}> : () -> ()
    %cst_62 = arith.constant dense<0.000000e+00> : vector<2x8x16xf32>
    %192 = tpu.matmul %191, %176, %cst_62 {dimension_numbers = #tpu.dot_dimension_numbers<[2], [1], [1], [2], [0, 0, 0, 1, 1, 2], [0], [0]>} : vector<2x8x8xf32>, vector<2x8x16xf32>, vector<2x8x16xf32> -> vector<2x8x16xf32>
    "tpu.trace_stop"() : () -> ()
    %193 = vector.shape_cast %192 : vector<2x8x16xf32> to vector<16x16xf32>
    %194 = vector.extract_strided_slice %170 {offsets = [0, 16], sizes = [16, 16], strides = [1, 1]} : vector<16x96xf32> to vector<16x16xf32>
    %195 = vector.shape_cast %194 : vector<16x16xf32> to vector<2x8x16xf32>
    %196 = vector.extract_strided_slice %170 {offsets = [0, 48], sizes = [16, 16], strides = [1, 1]} : vector<16x96xf32> to vector<16x16xf32>
    %197 = vector.shape_cast %196 : vector<16x16xf32> to vector<2x8x16xf32>
    %198 = vector.extract_strided_slice %170 {offsets = [0, 80], sizes = [16, 16], strides = [1, 1]} : vector<16x96xf32> to vector<16x16xf32>
    %199 = vector.shape_cast %198 : vector<16x16xf32> to vector<2x8x16xf32>
    "tpu.trace_start"() <{level = 10 : i32, message = "bqd,bkd->bqk"}> : () -> ()
    %cst_63 = arith.constant dense<0.000000e+00> : vector<2x8x8xf32>
    %200 = tpu.matmul %195, %197, %cst_63 {dimension_numbers = #tpu.dot_dimension_numbers<[2], [2], [1], [1], [0, 0, 0, 1, 1, 1], [0], [0]>} : vector<2x8x16xf32>, vector<2x8x16xf32>, vector<2x8x8xf32> -> vector<2x8x8xf32>
    "tpu.trace_stop"() : () -> ()
    %cst_64 = arith.constant 2.500000e-01 : f32
    %201 = vector.broadcast %cst_64 : f32 to vector<2x8x8xf32>
    %202 = arith.mulf %200, %201 : vector<2x8x8xf32>
    %203 = vector.broadcast %39 : vector<2x1x8xf32> to vector<2x8x8xf32>
    %204 = arith.addf %202, %203 : vector<2x8x8xf32>
    %cst_65 = arith.constant dense<0xFF800000> : vector<2x8xf32>
    %205 = vector.multi_reduction <maximumf>, %204, %cst_65 [2] : vector<2x8x8xf32> to vector<2x8xf32>
    %206 = vector.shape_cast %205 : vector<2x8xf32> to vector<2x8x1xf32>
    %207 = vector.broadcast %206 : vector<2x8x1xf32> to vector<2x8x8xf32>
    %208 = arith.subf %204, %207 : vector<2x8x8xf32>
    %209 = math.exp %208 : vector<2x8x8xf32>
    %cst_66 = arith.constant dense<0.000000e+00> : vector<2x8xf32>
    %210 = vector.multi_reduction <add>, %209, %cst_66 [2] : vector<2x8x8xf32> to vector<2x8xf32>
    %211 = vector.shape_cast %210 : vector<2x8xf32> to vector<2x8x1xf32>
    %212 = tpu.reciprocal %211 {approx = true} : vector<2x8x1xf32> -> vector<2x8x1xf32>
    %213 = vector.broadcast %212 : vector<2x8x1xf32> to vector<2x8x8xf32>
    %214 = arith.mulf %209, %213 : vector<2x8x8xf32>
    "tpu.trace_start"() <{level = 10 : i32, message = "bqk,bkd->bqd"}> : () -> ()
    %cst_67 = arith.constant dense<0.000000e+00> : vector<2x8x16xf32>
    %215 = tpu.matmul %214, %199, %cst_67 {dimension_numbers = #tpu.dot_dimension_numbers<[2], [1], [1], [2], [0, 0, 0, 1, 1, 2], [0], [0]>} : vector<2x8x8xf32>, vector<2x8x16xf32>, vector<2x8x16xf32> -> vector<2x8x16xf32>
    "tpu.trace_stop"() : () -> ()
    %216 = vector.shape_cast %215 : vector<2x8x16xf32> to vector<16x16xf32>
    %217 = tpu.concatenate %193, %216 in 1 : vector<16x16xf32>, vector<16x16xf32> -> vector<16x32xf32>
    %c363 = arith.constant 363 : index
    %c0_68 = arith.constant 0 : index
    %218 = vector.load %arg1[%c363, %c0_68] : memref<536x128xf32, #tpu.memory_space<vmem>>, vector<32x32xf32>
    %cst_69 = arith.constant dense<0.000000e+00> : vector<16x32xf32>
    %219 = tpu.matmul %217, %218, %cst_69 {dimension_numbers = #tpu.dot_dimension_numbers<[1], [0], [0], [1], [0, 0, 1, 1], [], []>} : vector<16x32xf32>, vector<32x32xf32>, vector<16x32xf32> -> vector<16x32xf32>
    %c395 = arith.constant 395 : index
    %c0_70 = arith.constant 0 : index
    %220 = vector.load %arg1[%c395, %c0_70] : memref<536x128xf32, #tpu.memory_space<vmem>>, vector<1x32xf32>
    %221 = vector.broadcast %220 : vector<1x32xf32> to vector<16x32xf32>
    %222 = arith.addf %219, %221 : vector<16x32xf32>
    %223 = arith.addf %165, %222 : vector<16x32xf32>
    %c396 = arith.constant 396 : index
    %c0_71 = arith.constant 0 : index
    %224 = vector.load %arg1[%c396, %c0_71] : memref<536x128xf32, #tpu.memory_space<vmem>>, vector<1x32xf32>
    %c397 = arith.constant 397 : index
    %c0_72 = arith.constant 0 : index
    %225 = vector.load %arg1[%c397, %c0_72] : memref<536x128xf32, #tpu.memory_space<vmem>>, vector<1x32xf32>
    %cst_73 = arith.constant dense<0.000000e+00> : vector<16xf32>
    %226 = vector.multi_reduction <add>, %223, %cst_73 [1] : vector<16x32xf32> to vector<16xf32>
    %227 = vector.shape_cast %226 : vector<16xf32> to vector<16x1xf32>
    %cst_74 = arith.constant 3.200000e+01 : f32
    %228 = vector.broadcast %cst_74 : f32 to vector<16x1xf32>
    %229 = arith.divf %227, %228 : vector<16x1xf32>
    %230 = vector.broadcast %229 : vector<16x1xf32> to vector<16x32xf32>
    %231 = arith.subf %223, %230 : vector<16x32xf32>
    %232 = arith.mulf %231, %231 : vector<16x32xf32>
    %cst_75 = arith.constant dense<0.000000e+00> : vector<16xf32>
    %233 = vector.multi_reduction <add>, %232, %cst_75 [1] : vector<16x32xf32> to vector<16xf32>
    %234 = vector.shape_cast %233 : vector<16xf32> to vector<16x1xf32>
    %cst_76 = arith.constant 3.200000e+01 : f32
    %235 = vector.broadcast %cst_76 : f32 to vector<16x1xf32>
    %236 = arith.divf %234, %235 : vector<16x1xf32>
    %cst_77 = arith.constant 9.99999996E-13 : f32
    %237 = vector.broadcast %cst_77 : f32 to vector<16x1xf32>
    %238 = arith.addf %236, %237 : vector<16x1xf32>
    %239 = math.rsqrt %238 : vector<16x1xf32>
    %240 = vector.broadcast %239 : vector<16x1xf32> to vector<16x32xf32>
    %241 = arith.mulf %231, %240 : vector<16x32xf32>
    %242 = vector.broadcast %224 : vector<1x32xf32> to vector<16x32xf32>
    %243 = arith.mulf %241, %242 : vector<16x32xf32>
    %244 = vector.broadcast %225 : vector<1x32xf32> to vector<16x32xf32>
    %245 = arith.addf %243, %244 : vector<16x32xf32>
    %c398 = arith.constant 398 : index
    %c0_78 = arith.constant 0 : index
    %246 = vector.load %arg1[%c398, %c0_78] : memref<536x128xf32, #tpu.memory_space<vmem>>, vector<32x64xf32>
    %cst_79 = arith.constant dense<0.000000e+00> : vector<16x64xf32>
    %247 = tpu.matmul %245, %246, %cst_79 {dimension_numbers = #tpu.dot_dimension_numbers<[1], [0], [0], [1], [0, 0, 1, 1], [], []>} : vector<16x32xf32>, vector<32x64xf32>, vector<16x64xf32> -> vector<16x64xf32>
    %c430 = arith.constant 430 : index
    %c0_80 = arith.constant 0 : index
    %248 = vector.load %arg1[%c430, %c0_80] : memref<536x128xf32, #tpu.memory_space<vmem>>, vector<1x64xf32>
    %249 = vector.broadcast %248 : vector<1x64xf32> to vector<16x64xf32>
    %250 = arith.addf %247, %249 : vector<16x64xf32>
    %cst_81 = arith.constant 5.000000e-01 : f32
    %251 = vector.broadcast %cst_81 : f32 to vector<16x64xf32>
    %252 = arith.mulf %251, %250 : vector<16x64xf32>
    %cst_82 = arith.constant 4.471500e-02 : f32
    %253 = vector.broadcast %cst_82 : f32 to vector<16x64xf32>
    %254 = arith.mulf %253, %250 : vector<16x64xf32>
    %255 = arith.mulf %254, %250 : vector<16x64xf32>
    %256 = arith.mulf %255, %250 : vector<16x64xf32>
    %257 = arith.addf %250, %256 : vector<16x64xf32>
    %cst_83 = arith.constant 0.797884583 : f32
    %258 = vector.broadcast %cst_83 : f32 to vector<16x64xf32>
    %259 = arith.mulf %258, %257 : vector<16x64xf32>
    %260 = math.tanh %259 : vector<16x64xf32>
    %cst_84 = arith.constant 1.000000e+00 : f32
    %261 = vector.broadcast %cst_84 : f32 to vector<16x64xf32>
    %262 = arith.addf %261, %260 : vector<16x64xf32>
    %263 = arith.mulf %252, %262 : vector<16x64xf32>
    %c431 = arith.constant 431 : index
    %c0_85 = arith.constant 0 : index
    %264 = vector.load %arg1[%c431, %c0_85] : memref<536x128xf32, #tpu.memory_space<vmem>>, vector<64x32xf32>
    %cst_86 = arith.constant dense<0.000000e+00> : vector<16x32xf32>
    %265 = tpu.matmul %263, %264, %cst_86 {dimension_numbers = #tpu.dot_dimension_numbers<[1], [0], [0], [1], [0, 0, 1, 1], [], []>} : vector<16x64xf32>, vector<64x32xf32>, vector<16x32xf32> -> vector<16x32xf32>
    %c495 = arith.constant 495 : index
    %c0_87 = arith.constant 0 : index
    %266 = vector.load %arg1[%c495, %c0_87] : memref<536x128xf32, #tpu.memory_space<vmem>>, vector<1x32xf32>
    %267 = vector.broadcast %266 : vector<1x32xf32> to vector<16x32xf32>
    %268 = arith.addf %265, %267 : vector<16x32xf32>
    %269 = arith.addf %245, %268 : vector<16x32xf32>
    %c496 = arith.constant 496 : index
    %c0_88 = arith.constant 0 : index
    %270 = vector.load %arg1[%c496, %c0_88] : memref<536x128xf32, #tpu.memory_space<vmem>>, vector<1x32xf32>
    %c497 = arith.constant 497 : index
    %c0_89 = arith.constant 0 : index
    %271 = vector.load %arg1[%c497, %c0_89] : memref<536x128xf32, #tpu.memory_space<vmem>>, vector<1x32xf32>
    %cst_90 = arith.constant dense<0.000000e+00> : vector<16xf32>
    %272 = vector.multi_reduction <add>, %269, %cst_90 [1] : vector<16x32xf32> to vector<16xf32>
    %273 = vector.shape_cast %272 : vector<16xf32> to vector<16x1xf32>
    %cst_91 = arith.constant 3.200000e+01 : f32
    %274 = vector.broadcast %cst_91 : f32 to vector<16x1xf32>
    %275 = arith.divf %273, %274 : vector<16x1xf32>
    %276 = vector.broadcast %275 : vector<16x1xf32> to vector<16x32xf32>
    %277 = arith.subf %269, %276 : vector<16x32xf32>
    %278 = arith.mulf %277, %277 : vector<16x32xf32>
    %cst_92 = arith.constant dense<0.000000e+00> : vector<16xf32>
    %279 = vector.multi_reduction <add>, %278, %cst_92 [1] : vector<16x32xf32> to vector<16xf32>
    %280 = vector.shape_cast %279 : vector<16xf32> to vector<16x1xf32>
    %cst_93 = arith.constant 3.200000e+01 : f32
    %281 = vector.broadcast %cst_93 : f32 to vector<16x1xf32>
    %282 = arith.divf %280, %281 : vector<16x1xf32>
    %cst_94 = arith.constant 9.99999996E-13 : f32
    %283 = vector.broadcast %cst_94 : f32 to vector<16x1xf32>
    %284 = arith.addf %282, %283 : vector<16x1xf32>
    %285 = math.rsqrt %284 : vector<16x1xf32>
    %286 = vector.broadcast %285 : vector<16x1xf32> to vector<16x32xf32>
    %287 = arith.mulf %277, %286 : vector<16x32xf32>
    %288 = vector.broadcast %270 : vector<1x32xf32> to vector<16x32xf32>
    %289 = arith.mulf %287, %288 : vector<16x32xf32>
    %290 = vector.broadcast %271 : vector<1x32xf32> to vector<16x32xf32>
    %291 = arith.addf %289, %290 : vector<16x32xf32>
    %c498 = arith.constant 498 : index
    %c0_95 = arith.constant 0 : index
    %292 = vector.load %arg1[%c498, %c0_95] : memref<536x128xf32, #tpu.memory_space<vmem>>, vector<32x128xf32>
    %cst_96 = arith.constant dense<0.000000e+00> : vector<16x128xf32>
    %293 = tpu.matmul %291, %292, %cst_96 {dimension_numbers = #tpu.dot_dimension_numbers<[1], [0], [0], [1], [0, 0, 1, 1], [], []>} : vector<16x32xf32>, vector<32x128xf32>, vector<16x128xf32> -> vector<16x128xf32>
    %c530 = arith.constant 530 : index
    %c0_97 = arith.constant 0 : index
    %294 = vector.load %arg1[%c530, %c0_97] : memref<536x128xf32, #tpu.memory_space<vmem>>, vector<1x128xf32>
    %295 = vector.broadcast %294 : vector<1x128xf32> to vector<16x128xf32>
    %296 = arith.addf %293, %295 : vector<16x128xf32>
    %cst_98 = arith.constant dense<0xFF800000> : vector<16xf32>
    %297 = vector.multi_reduction <maximumf>, %296, %cst_98 [1] : vector<16x128xf32> to vector<16xf32>
    %298 = vector.shape_cast %297 : vector<16xf32> to vector<16x1xf32>
    %299 = vector.broadcast %298 : vector<16x1xf32> to vector<16x128xf32>
    %300 = arith.subf %296, %299 : vector<16x128xf32>
    %301 = math.exp %300 : vector<16x128xf32>
    %cst_99 = arith.constant dense<0.000000e+00> : vector<16xf32>
    %302 = vector.multi_reduction <add>, %301, %cst_99 [1] : vector<16x128xf32> to vector<16xf32>
    %303 = vector.shape_cast %302 : vector<16xf32> to vector<16x1xf32>
    %304 = vector.broadcast %303 : vector<16x1xf32> to vector<16x128xf32>
    %305 = arith.divf %301, %304 : vector<16x128xf32>
    %c0_100 = arith.constant 0 : index
    %c0_101 = arith.constant 0 : index
    %306 = vector.load %arg4[%c0_100, %c0_101] : memref<16x128xf32, #tpu.memory_space<vmem>>, vector<16x128xf32>
    tpu.vector_store %arg4[%c0_100, %c0_101], %305 {strides = array<i32>} : memref<16x128xf32, #tpu.memory_space<vmem>>, vector<16x128xf32>,
    return
  }
  func.func @transform_0(%arg0: i32) -> (i32, i32) {
    %c0_i32 = arith.constant 0 : i32
    %c0_i32_0 = arith.constant 0 : i32
    %c0_i32_1 = arith.constant 0 : i32
    return %c0_i32, %c0_i32_0 : i32, i32
  }
  func.func @transform_1(%arg0: i32) -> (i32, i32) {
    %c0_i32 = arith.constant 0 : i32
    %c0_i32_0 = arith.constant 0 : i32
    %c0_i32_1 = arith.constant 0 : i32
    return %c0_i32, %c0_i32_0 : i32, i32
  }
  func.func @transform_2(%arg0: i32) -> (i32, i32) {
    %c0_i32 = arith.constant 0 : i32
    %c0_i32_0 = arith.constant 0 : i32
    %c0_i32_1 = arith.constant 0 : i32
    return %c0_i32, %c0_i32_0 : i32, i32
  }
  func.func @transform_3(%arg0: i32) -> (i32, i32) {
    %c0_i32 = arith.constant 0 : i32
    %c0_i32_0 = arith.constant 0 : i32
    %c0_i32_1 = arith.constant 0 : i32
    return %c0_i32, %c0_i32_0 : i32, i32
  }
}

</mosaic_0001>

<llo_original>
// kernel: tpu_custom_call.1
$region0: #{tpu_custom_call.1}
  #allocation0 [shape = 'u32[]', space=smem, size = 0x4, offset = 0x4, fixed_abs, tag = 'smem constant byte address 0x4 - core index']
  #allocation1 [shape = 'u32[144,128]{1,0:T(1,128)}', space=vmem, size = 0x12000, scoped, tag = 'internal scratch']
  %s0 = inlined_call_operand.hbm [shape: f32[536,128], index: 0, kind: input, shape index: {}]
  %s1 = inlined_call_operand.vmem [shape: s32[16,2], index: 1, kind: input, shape index: {}]
  %s2 = inlined_call_operand.vmem [shape: f32[2,8], index: 2, kind: input, shape index: {}]
  %s3 = inlined_call_operand.hbm [shape: f32[16,128], index: 3, kind: output, shape index: {}]
  %s4 = sld [smem:[#allocation0]]
  $region26: #{tpu_custom_call.1} parent=0
    _
  %s6 = ssub.s32 1, %s4
  %s7 = scalar_select 0, %s6, %s4
  $region1: #{tpu_custom_call.1} parent=0
    #allocation2 [shape = 'u8[274432]{0}', space=vmem, size = 0x43000, scoped, tag = 'input window, operand 0, single buffered']
    #allocation3 [shape = 's32[1]{0}', space=sflag, size = 0x4, scoped, tag = 'scoped memory for tpu_custom_call.1']
    #allocation4 [shape = 's32[1]{0}', space=sflag, size = 0x4, scoped, tag = 'scoped memory for tpu_custom_call.1']
    #allocation5 [shape = 'u8[8192]{0}', space=vmem, size = 0x2000, scoped, tag = 'output window, operand 0, single buffered']
    %8 = vsyncpa [#allocation3], 0
    %9 = vsyncpa [#allocation4], 0
    // Predicated region
    $region2: #{tpu_custom_call.1} parent=1 // pred_check
      _
    $region3: #{tpu_custom_call.1} parent=1 // pred_check_branch
      %11 = sbr.rel (0) target = $region5
    $region4: #{tpu_custom_call.1} parent=1 // pred_region
      %s13 = ssub.s32 8576, 8576
      %14 = vsyncadd [#allocation3], %s13
      %s15 = sshll.u32 [#allocation2], 4
      %s16 = int_to_ptr.vmem [resolvable:$true] %s15
      %21 = dma.hbm_to_vmem [thread:$0]  %s0, 8576, %s16, [#allocation3], 128, 128, 8
    $region5: #{tpu_custom_call.1} parent=1 // pred_fallthru
      _
    // Predicated region
    $region6: #{tpu_custom_call.1} parent=1 // pred_check
      _
    $region7: #{tpu_custom_call.1} parent=1 // pred_check_branch
      %23 = sbr.rel (0) target = $region9
    $region8: #{tpu_custom_call.1} parent=1 // pred_region
      _
    $region9: #{tpu_custom_call.1} parent=1 // pred_fallthru
      _
    // Predicated region
    $region10: #{tpu_custom_call.1} parent=1 // pred_check
      _
    $region11: #{tpu_custom_call.1} parent=1 // pred_check_branch
      %25 = sbr.rel (0) target = $region13
    $region12: #{tpu_custom_call.1} parent=1 // pred_region
      _
    $region13: #{tpu_custom_call.1} parent=1 // pred_fallthru
      _
    // Predicated region
    $region14: #{tpu_custom_call.1} parent=1 // pred_check
      _
    $region15: #{tpu_custom_call.1} parent=1 // pred_check_branch
      %27 = sbr.rel (0) target = $region17
    $region16: #{tpu_custom_call.1} parent=1 // pred_region
      %28 = dma.done [#allocation3], 8576
    $region17: #{tpu_custom_call.1} parent=1 // pred_fallthru
      _
    %v29 = vld [vmem:[%s1] sm:$0xff]
    %v30 = vld [vmem:[%s1 + $0x8] sm:$0xff]
    %v31 = vlaneseq
    %v32 = vand.u32 %v31, 127
    %33 = vset.pattern.permute.xlu0 0
    %34 = vperm.xlu0 %33, %v29
    %v35 = vpop.permute.xlu0 %34
    %36 = vset.pattern.permute.xlu0 0
    %37 = vperm.xlu0 %36, %v30
    %v38 = vpop.permute.xlu0 %37
    %vm39 = vcmp.eq.s32.totalorder %v32, %v35
    %vm40 = vcmp.eq.s32.totalorder %v32, %v38
    %v41 = vsel %vm39, 1, 0
    %v42 = vsel %vm40, 1, 0
    %v43 = vcvt.s32.f32 %v41
    %v44 = vcvt.s32.f32 %v42
    %v45 = vld [vmem:[#allocation2] sm:$0xff]
    %v46 = vld [vmem:[#allocation2 + $0x8] sm:$0xff]
    %v47 = vld [vmem:[#allocation2 + $0x10] sm:$0xff]
    %v48 = vld [vmem:[#allocation2 + $0x18] sm:$0xff]
    %v49 = vld [vmem:[#allocation2 + $0x20] sm:$0xff]
    %v50 = vld [vmem:[#allocation2 + $0x28] sm:$0xff]
    %v51 = vld [vmem:[#allocation2 + $0x30] sm:$0xff]
    %v52 = vld [vmem:[#allocation2 + $0x38] sm:$0xff]
    %v53 = vld [vmem:[#allocation2 + $0x40] sm:$0xff]
    %v54 = vld [vmem:[#allocation2 + $0x48] sm:$0xff]
    %v55 = vld [vmem:[#allocation2 + $0x50] sm:$0xff]
    %v56 = vld [vmem:[#allocation2 + $0x58] sm:$0xff]
    %v57 = vld [vmem:[#allocation2 + $0x60] sm:$0xff]
    %v58 = vld [vmem:[#allocation2 + $0x68] sm:$0xff]
    %v59 = vld [vmem:[#allocation2 + $0x70] sm:$0xff]
    %v60 = vld [vmem:[#allocation2 + $0x78] sm:$0xff]
    %v61 = vld [vmem:[#allocation2 + $0x80] sm:$0xff]
    %62 = vmatprep.subr.mxu0 0.0
    %63 = vmatpush1.msra.mxu0 %v45
    %64 = vmatprep.subr.mxu0 0.0
    %65 = vmatpush1.msra.mxu0 %v46
    %66 = vmatprep.subr.mxu0 0.0
    %67 = vmatpush1.msra.mxu0 %v47
    %68 = vmatprep.subr.mxu0 0.0
    %69 = vmatpush1.msra.mxu0 %v48
    %70 = vmatprep.subr.mxu0 0.0
    %71 = vmatpush1.msra.mxu0 %v49
    %72 = vmatprep.subr.mxu0 0.0
    %73 = vmatpush1.msra.mxu0 %v50
    %74 = vmatprep.subr.mxu0 0.0
    %75 = vmatpush1.msra.mxu0 %v51
    %76 = vmatprep.subr.mxu0 0.0
    %77 = vmatpush1.msra.mxu0 %v52
    %78 = vmatprep.subr.mxu0 0.0
    %79 = vmatpush1.msra.mxu0 %v53
    %80 = vmatprep.subr.mxu0 0.0
    %81 = vmatpush1.msra.mxu0 %v54
    %82 = vmatprep.subr.mxu0 0.0
    %83 = vmatpush1.msra.mxu0 %v55
    %84 = vmatprep.subr.mxu0 0.0
    %85 = vmatpush1.msra.mxu0 %v56
    %86 = vmatprep.subr.mxu0 0.0
    %87 = vmatpush1.msra.mxu0 %v57
    %88 = vmatprep.subr.mxu0 0.0
    %89 = vmatpush1.msra.mxu0 %v58
    %90 = vmatprep.subr.mxu0 0.0
    %91 = vmatpush1.msra.mxu0 %v59
    %92 = vmatprep.subr.mxu0 0.0
    %93 = vmatpush1.msra.mxu0 %v60
    %94 = vmatprep.subr.mxu0 0.0
    %95 = vmatpush1.msra.mxu0 0.0
    %96 = vmatprep.subr.mxu0 0.0
    %97 = vmatpush1.msra.mxu0 0.0
    %98 = vmatprep.subr.mxu0 0.0
    %99 = vmatpush1.msra.mxu0 0.0
    %100 = vmatprep.subr.mxu0 0.0
    %101 = vmatpush1.msra.mxu0 0.0
    %102 = vmatprep.subr.mxu0 0.0
    %103 = vmatpush1.msra.mxu0 0.0
    %104 = vmatprep.subr.mxu0 0.0
    %105 = vmatpush1.msra.mxu0 0.0
    %106 = vmatprep.subr.mxu0 0.0
    %107 = vmatpush1.msra.mxu0 0.0
    %108 = vmatprep.subr.mxu0 0.0
    %109 = vmatpush1.msra.mxu0 0.0
    %110 = vmatprep.subr.mxu0 0.0
    %111 = vmatpush1.msra.mxu0 0.0
    %112 = vmatprep.subr.mxu0 0.0
    %113 = vmatpush1.msra.mxu0 0.0
    %114 = vmatprep.subr.mxu0 0.0
    %115 = vmatpush1.msra.mxu0 0.0
    %116 = vmatprep.subr.mxu0 0.0
    %117 = vmatpush1.msra.mxu0 0.0
    %118 = vmatprep.subr.mxu0 0.0
    %119 = vmatpush1.msra.mxu0 0.0
    %120 = vmatprep.subr.mxu0 0.0
    %121 = vmatpush1.msra.mxu0 0.0
    %122 = vmatprep.subr.mxu0 0.0
    %123 = vmatpush1.msra.mxu0 0.0
    %124 = vmatprep.subr.mxu0 0.0
    %125 = vmatpush1.msra.mxu0 0.0
    %126 = vmatprep.mubr.f32.mxu0 0.0
    %127 = vmatmul.mubr.f32.gmra.mrb[0].mxu0 %v43
    %v128 = vpop.f32.mrb[0].mxu0
    %v129 = vadd.f32 %v61, %v128
    %v130 = vpop.f32.mrb[0].mxu0
    %131 = vmatprep.mubr.f32.mxu0 0.0
    %132 = vmatmul.mubr.f32.gmra.mrb[0].mxu0 %v44
    %v133 = vpop.f32.mrb[0].mxu0
    %v134 = vadd.f32 %v61, %v133
    %v135 = vpop.f32.mrb[0].mxu0
    %136 = vdwg.mxu0
    %v137 = vld [vmem:[#allocation2 + $0xa0] sm:$0x1]
    %v138 = vld [vmem:[#allocation2 + $0xa1] sm:$0x1]
    %vm139 = vcmask 261120
    %v140 = vsel %vm139, %v129, 0.0
    %141 = vadd.xlane.f32.xlu0 %v140
    %v142 = vpop.xlane.xlu0 %141
    %v143 = vsel %vm139, %v134, 0.0
    %144 = vadd.xlane.f32.xlu0 %v143
    %v145 = vpop.xlane.xlu0 %144
    %v146 = vrcp.pop 32.0
    %v147 = vmul.f32 %v142, %v146
    %v148 = vmul.f32 %v145, %v146
    %v149 = vsub.f32 %v129, %v147
    %v150 = vsub.f32 %v134, %v148
    %v151 = vmul.f32 %v149, %v149
    %v152 = vmul.f32 %v150, %v150
    %v153 = vsel %vm139, %v151, 0.0
    %154 = vadd.xlane.f32.xlu0 %v153
    %v155 = vpop.xlane.xlu0 %154
    %v156 = vsel %vm139, %v152, 0.0
    %157 = vadd.xlane.f32.xlu0 %v156
    %v158 = vpop.xlane.xlu0 %157
    %v159 = vmul.f32 %v155, %v146
    %v160 = vmul.f32 %v158, %v146
    %v161 = vadd.f32 %v159, 1e-12
    %v162 = vadd.f32 %v160, 1e-12
    %v163 = vrsqrt.pop %v161
    %v164 = vrsqrt.pop %v162
    %v165 = vmul.f32 %v149, %v163
    %v166 = vmul.f32 %v150, %v164
    %v167 = vlaneseq
    %v168 = vshrl.u32 %v167, 7
    %v169 = vsub.s32 0, %v168
    %v170 = vrot.slane %v137, %v169
    %v171 = vmul.f32 %v165, %v170
    %v172 = vmul.f32 %v166, %v170
    %v173 = vlaneseq
    %v174 = vshrl.u32 %v173, 7
    %v175 = vsub.s32 0, %v174
    %v176 = vrot.slane %v138, %v175
    %v177 = vadd.f32 %v171, %v176
    %v178 = vadd.f32 %v172, %v176
    %v179 = vld [vmem:[%s2] sm:$0x3]
    %v180 = vsub.f32 1.0, %v179
    %v181 = vmul.f32 %v180, -10000.0
    %v184 = vunpack.c.l.s4 1966171168
    %v185 = vunpack.c.0.s8 %v184
    %v186 = vlaneseq
    %v187 = vshrl.u32 %v186, 7
    %v188 = vsub.s32 %v185, %v187
    %v189 = vrot.slane %v181, %v188
    %v190 = vcombine.high %v189, %v189
    %v192 = vunpack.c.l.s4 1966171168
    %v193 = vunpack.c.0.s8 %v192
    %v194 = vlaneseq
    %v195 = vshrl.u32 %v194, 7
    %v196 = vsub.s32 %v193, %v195
    %v197 = vrot.slane %v189, %v196
    %v199 = vunpack.c.l.s4 1966171168
    %v200 = vunpack.c.0.s8 %v199
    %v201 = vlaneseq
    %v202 = vshrl.u32 %v201, 7
    %v203 = vsub.s32 %v200, %v202
    %v204 = vrot.slane %v190, %v203
    %v205 = vld [vmem:[#allocation2 + $0xa2] sm:$0xff]
    %v206 = vld [vmem:[#allocation2 + $0xaa] sm:$0xff]
    %v207 = vld [vmem:[#allocation2 + $0xb2] sm:$0xff]
    %v208 = vld [vmem:[#allocation2 + $0xba] sm:$0xff]
    %v209 = vld [vmem:[#allocation2 + $0xc2] sm:$0x1]
    %v210 = vlaneseq
    %v211 = vshrl.u32 %v210, 7
    %v212 = vsub.s32 0, %v211
    %v213 = vrot.slane %v209, %v212
    %v215 = vsel %vm139, %v177, 0
    %v218 = vsel %vm139, %v178, 0
    %220 = vmatprep.subr.mxu0 0.0
    %221 = vmatpush1.msra.mxu0 %v205
    %222 = vmatprep.subr.mxu0 0.0
    %223 = vmatpush1.msra.mxu0 %v206
    %224 = vmatprep.subr.mxu0 0.0
    %225 = vmatpush1.msra.mxu0 %v207
    %226 = vmatprep.subr.mxu0 0.0
    %227 = vmatpush1.msra.mxu0 %v208
    %228 = vmatprep.subr.mxu0 0.0
    %229 = vmatpush1.msra.mxu0 0.0
    %230 = vmatprep.subr.mxu0 0.0
    %231 = vmatpush1.msra.mxu0 0.0
    %232 = vmatprep.subr.mxu0 0.0
    %233 = vmatpush1.msra.mxu0 0.0
    %234 = vmatprep.subr.mxu0 0.0
    %235 = vmatpush1.msra.mxu0 0.0
    %236 = vmatprep.subr.mxu0 0.0
    %237 = vmatpush1.msra.mxu0 0.0
    %238 = vmatprep.subr.mxu0 0.0
    %239 = vmatpush1.msra.mxu0 0.0
    %240 = vmatprep.subr.mxu0 0.0
    %241 = vmatpush1.msra.mxu0 0.0
    %242 = vmatprep.subr.mxu0 0.0
    %243 = vmatpush1.msra.mxu0 0.0
    %244 = vmatprep.subr.mxu0 0.0
    %245 = vmatpush1.msra.mxu0 0.0
    %246 = vmatprep.subr.mxu0 0.0
    %247 = vmatpush1.msra.mxu0 0.0
    %248 = vmatprep.subr.mxu0 0.0
    %249 = vmatpush1.msra.mxu0 0.0
    %250 = vmatprep.subr.mxu0 0.0
    %251 = vmatpush1.msra.mxu0 0.0
    %252 = vmatprep.subr.mxu0 0.0
    %253 = vmatpush1.msra.mxu0 0.0
    %254 = vmatprep.subr.mxu0 0.0
    %255 = vmatpush1.msra.mxu0 0.0
    %256 = vmatprep.subr.mxu0 0.0
    %257 = vmatpush1.msra.mxu0 0.0
    %258 = vmatprep.subr.mxu0 0.0
    %259 = vmatpush1.msra.mxu0 0.0
    %260 = vmatprep.subr.mxu0 0.0
    %261 = vmatpush1.msra.mxu0 0.0
    %262 = vmatprep.subr.mxu0 0.0
    %263 = vmatpush1.msra.mxu0 0.0
    %264 = vmatprep.subr.mxu0 0.0
    %265 = vmatpush1.msra.mxu0 0.0
    %266 = vmatprep.subr.mxu0 0.0
    %267 = vmatpush1.msra.mxu0 0.0
    %268 = vmatprep.subr.mxu0 0.0
    %269 = vmatpush1.msra.mxu0 0.0
    %270 = vmatprep.subr.mxu0 0.0
    %271 = vmatpush1.msra.mxu0 0.0
    %272 = vmatprep.subr.mxu0 0.0
    %273 = vmatpush1.msra.mxu0 0.0
    %274 = vmatprep.subr.mxu0 0.0
    %275 = vmatpush1.msra.mxu0 0.0
    %276 = vmatprep.subr.mxu0 0.0
    %277 = vmatpush1.msra.mxu0 0.0
    %278 = vmatprep.subr.mxu0 0.0
    %279 = vmatpush1.msra.mxu0 0.0
    %280 = vmatprep.subr.mxu0 0.0
    %281 = vmatpush1.msra.mxu0 0.0
    %282 = vmatprep.subr.mxu0 0.0
    %283 = vmatpush1.msra.mxu0 0.0
    %284 = vmatprep.mubr.f32.mxu0 0.0
    %285 = vmatmul.mubr.f32.gmra.mrb[0].mxu0 %v215
    %v286 = vpop.f32.mrb[0].mxu0
    %v287 = vadd.f32 %v213, %v286
    %v288 = vpop.f32.mrb[0].mxu0
    %289 = vmatprep.mubr.f32.mxu0 0.0
    %290 = vmatmul.mubr.f32.gmra.mrb[0].mxu0 %v218
    %v291 = vpop.f32.mrb[0].mxu0
    %v292 = vadd.f32 %v213, %v291
    %v293 = vpop.f32.mrb[0].mxu0
    %294 = vdwg.mxu0
    %296 = vrot.lane.b32.xlu0 %v287, 96
    %v297 = vpop.permute.xlu0 %296
    %vm298 = vcmask 130048
    %v299 = vsel %vm298, %v287, 0
    %v301 = vsel %vm298, %v297, 0
    %303 = vmatprep.subr.mxu0 0.0
    %304 = vmatpush1.xpose.msra.mxu0 %v301
    %305 = vmatprep.subr.mxu0 0.0
    %306 = vmatpush1.xpose.msra.mxu0 0.0
    %307 = vmatprep.subr.mxu0 0.0
    %308 = vmatpush1.xpose.msra.mxu0 0.0
    %309 = vmatprep.subr.mxu0 0.0
    %310 = vmatpush1.xpose.msra.mxu0 0.0
    %311 = vmatprep.subr.mxu0 0.0
    %312 = vmatpush1.xpose.msra.mxu0 0.0
    %313 = vmatprep.subr.mxu0 0.0
    %314 = vmatpush1.xpose.msra.mxu0 0.0
    %315 = vmatprep.subr.mxu0 0.0
    %316 = vmatpush1.xpose.msra.mxu0 0.0
    %317 = vmatprep.subr.mxu0 0.0
    %318 = vmatpush1.xpose.msra.mxu0 0.0
    %319 = vmatprep.subr.mxu0 0.0
    %320 = vmatpush1.xpose.msra.mxu0 0.0
    %321 = vmatprep.subr.mxu0 0.0
    %322 = vmatpush1.xpose.msra.mxu0 0.0
    %323 = vmatprep.subr.mxu0 0.0
    %324 = vmatpush1.xpose.msra.mxu0 0.0
    %325 = vmatprep.subr.mxu0 0.0
    %326 = vmatpush1.xpose.msra.mxu0 0.0
    %327 = vmatprep.subr.mxu0 0.0
    %328 = vmatpush1.xpose.msra.mxu0 0.0
    %329 = vmatprep.subr.mxu0 0.0
    %330 = vmatpush1.xpose.msra.mxu0 0.0
    %331 = vmatprep.subr.mxu0 0.0
    %332 = vmatpush1.xpose.msra.mxu0 0.0
    %333 = vmatprep.subr.mxu0 0.0
    %334 = vmatpush1.xpose.msra.mxu0 0.0
    %335 = vmatprep.subr.mxu0 0.0
    %336 = vmatpush1.xpose.msra.mxu0 0.0
    %337 = vmatprep.subr.mxu0 0.0
    %338 = vmatpush1.xpose.msra.mxu0 0.0
    %339 = vmatprep.subr.mxu0 0.0
    %340 = vmatpush1.xpose.msra.mxu0 0.0
    %341 = vmatprep.subr.mxu0 0.0
    %342 = vmatpush1.xpose.msra.mxu0 0.0
    %343 = vmatprep.subr.mxu0 0.0
    %344 = vmatpush1.xpose.msra.mxu0 0.0
    %345 = vmatprep.subr.mxu0 0.0
    %346 = vmatpush1.xpose.msra.mxu0 0.0
    %347 = vmatprep.subr.mxu0 0.0
    %348 = vmatpush1.xpose.msra.mxu0 0.0
    %349 = vmatprep.subr.mxu0 0.0
    %350 = vmatpush1.xpose.msra.mxu0 0.0
    %351 = vmatprep.subr.mxu0 0.0
    %352 = vmatpush1.xpose.msra.mxu0 0.0
    %353 = vmatprep.subr.mxu0 0.0
    %354 = vmatpush1.xpose.msra.mxu0 0.0
    %355 = vmatprep.subr.mxu0 0.0
    %356 = vmatpush1.xpose.msra.mxu0 0.0
    %357 = vmatprep.subr.mxu0 0.0
    %358 = vmatpush1.xpose.msra.mxu0 0.0
    %359 = vmatprep.subr.mxu0 0.0
    %360 = vmatpush1.xpose.msra.mxu0 0.0
    %361 = vmatprep.subr.mxu0 0.0
    %362 = vmatpush1.xpose.msra.mxu0 0.0
    %363 = vmatprep.subr.mxu0 0.0
    %364 = vmatpush1.xpose.msra.mxu0 0.0
    %365 = vmatprep.subr.mxu0 0.0
    %366 = vmatpush1.xpose.msra.mxu0 0.0
    %367 = vmatprep.mubr.f32.mxu0 0.0
    %368 = vmatmul.mubr.f32.gmra.mrb[0].mxu0 %v299
    %v369 = vpop.f32.mrb[0].mxu0
    %v370 = vadd.f32 0.0, %v369
    %v371 = vpop.f32.mrb[0].mxu0
    %372 = vdwg.mxu0
    %374 = vrot.lane.b32.xlu0 %v292, 96
    %v375 = vpop.permute.xlu0 %374
    %v376 = vsel %vm298, %v292, 0
    %v378 = vsel %vm298, %v375, 0
    %380 = vmatprep.subr.mxu0 0.0
    %381 = vmatpush1.xpose.msra.mxu0 %v378
    %382 = vmatprep.subr.mxu0 0.0
    %383 = vmatpush1.xpose.msra.mxu0 0.0
    %384 = vmatprep.subr.mxu0 0.0
    %385 = vmatpush1.xpose.msra.mxu0 0.0
    %386 = vmatprep.subr.mxu0 0.0
    %387 = vmatpush1.xpose.msra.mxu0 0.0
    %388 = vmatprep.subr.mxu0 0.0
    %389 = vmatpush1.xpose.msra.mxu0 0.0
    %390 = vmatprep.subr.mxu0 0.0
    %391 = vmatpush1.xpose.msra.mxu0 0.0
    %392 = vmatprep.subr.mxu0 0.0
    %393 = vmatpush1.xpose.msra.mxu0 0.0
    %394 = vmatprep.subr.mxu0 0.0
    %395 = vmatpush1.xpose.msra.mxu0 0.0
    %396 = vmatprep.subr.mxu0 0.0
    %397 = vmatpush1.xpose.msra.mxu0 0.0
    %398 = vmatprep.subr.mxu0 0.0
    %399 = vmatpush1.xpose.msra.mxu0 0.0
    %400 = vmatprep.subr.mxu0 0.0
    %401 = vmatpush1.xpose.msra.mxu0 0.0
    %402 = vmatprep.subr.mxu0 0.0
    %403 = vmatpush1.xpose.msra.mxu0 0.0
    %404 = vmatprep.subr.mxu0 0.0
    %405 = vmatpush1.xpose.msra.mxu0 0.0
    %406 = vmatprep.subr.mxu0 0.0
    %407 = vmatpush1.xpose.msra.mxu0 0.0
    %408 = vmatprep.subr.mxu0 0.0
    %409 = vmatpush1.xpose.msra.mxu0 0.0
    %410 = vmatprep.subr.mxu0 0.0
    %411 = vmatpush1.xpose.msra.mxu0 0.0
    %412 = vmatprep.subr.mxu0 0.0
    %413 = vmatpush1.xpose.msra.mxu0 0.0
    %414 = vmatprep.subr.mxu0 0.0
    %415 = vmatpush1.xpose.msra.mxu0 0.0
    %416 = vmatprep.subr.mxu0 0.0
    %417 = vmatpush1.xpose.msra.mxu0 0.0
    %418 = vmatprep.subr.mxu0 0.0
    %419 = vmatpush1.xpose.msra.mxu0 0.0
    %420 = vmatprep.subr.mxu0 0.0
    %421 = vmatpush1.xpose.msra.mxu0 0.0
    %422 = vmatprep.subr.mxu0 0.0
    %423 = vmatpush1.xpose.msra.mxu0 0.0
    %424 = vmatprep.subr.mxu0 0.0
    %425 = vmatpush1.xpose.msra.mxu0 0.0
    %426 = vmatprep.subr.mxu0 0.0
    %427 = vmatpush1.xpose.msra.mxu0 0.0
    %428 = vmatprep.subr.mxu0 0.0
    %429 = vmatpush1.xpose.msra.mxu0 0.0
    %430 = vmatprep.subr.mxu0 0.0
    %431 = vmatpush1.xpose.msra.mxu0 0.0
    %432 = vmatprep.subr.mxu0 0.0
    %433 = vmatpush1.xpose.msra.mxu0 0.0
    %434 = vmatprep.subr.mxu0 0.0
    %435 = vmatpush1.xpose.msra.mxu0 0.0
    %436 = vmatprep.subr.mxu0 0.0
    %437 = vmatpush1.xpose.msra.mxu0 0.0
    %438 = vmatprep.subr.mxu0 0.0
    %439 = vmatpush1.xpose.msra.mxu0 0.0
    %440 = vmatprep.subr.mxu0 0.0
    %441 = vmatpush1.xpose.msra.mxu0 0.0
    %442 = vmatprep.subr.mxu0 0.0
    %443 = vmatpush1.xpose.msra.mxu0 0.0
    %444 = vmatprep.mubr.f32.mxu0 0.0
    %445 = vmatmul.mubr.f32.gmra.mrb[0].mxu0 %v376
    %v446 = vpop.f32.mrb[0].mxu0
    %v447 = vadd.f32 0.0, %v446
    %v448 = vpop.f32.mrb[0].mxu0
    %449 = vdwg.mxu0
    %v450 = vmul.f32 %v370, 0.25
    %v451 = vmul.f32 %v447, 0.25
    %v452 = vlaneseq
    %v453 = vshrl.u32 %v452, 7
    %v454 = vsub.s32 0, %v453
    %v455 = vrot.slane %v197, %v454
    %v456 = vlaneseq
    %v457 = vshrl.u32 %v456, 7
    %v458 = vsub.s32 0, %v457
    %v459 = vrot.slane %v204, %v458
    %v462 = vadd.f32 %v450, %v455
    %v463 = vadd.f32 %v451, %v459
    %vm464 = vcmask 64512
    %v465 = vsel %vm464, %v462, -inf
    %466 = vmax.xlane.f32.xlu0 %v465
    %v467 = vpop.xlane.xlu0 %466
    %v468 = vsel %vm464, %v463, -inf
    %469 = vmax.xlane.f32.xlu0 %v468
    %v470 = vpop.xlane.xlu0 %469
    %v471 = vsub.f32 %v462, %v467
    %v472 = vsub.f32 %v463, %v470
    %v473 = vmul.f32 %v471, 1.442695
    %v474 = vpow.pop %v473
    %v475 = vmul.f32 %v472, 1.442695
    %v476 = vpow.pop %v475
    %v477 = vsel %vm464, %v474, 0.0
    %478 = vadd.xlane.f32.xlu0 %v477
    %v479 = vpop.xlane.xlu0 %478
    %v480 = vsel %vm464, %v476, 0.0
    %481 = vadd.xlane.f32.xlu0 %v480
    %v482 = vpop.xlane.xlu0 %481
    %v483 = vrcp.pop %v479
    %v484 = vrcp.pop %v482
    %v485 = vmul.f32 %v474, %v483
    %v486 = vmul.f32 %v476, %v484
    %487 = vrot.lane.b32.xlu0 %v287, 64
    %v488 = vpop.permute.xlu0 %487
    %v491 = vsel %vm464, %v485, 0
    %493 = vmatprep.subr.mxu0 0.0
    %494 = vmatpush1.msra.mxu0 %v488
    %495 = vmatprep.subr.mxu0 0.0
    %496 = vmatpush1.msra.mxu0 0.0
    %497 = vmatprep.subr.mxu0 0.0
    %498 = vmatpush1.msra.mxu0 0.0
    %499 = vmatprep.subr.mxu0 0.0
    %500 = vmatpush1.msra.mxu0 0.0
    %501 = vmatprep.subr.mxu0 0.0
    %502 = vmatpush1.msra.mxu0 0.0
    %503 = vmatprep.subr.mxu0 0.0
    %504 = vmatpush1.msra.mxu0 0.0
    %505 = vmatprep.subr.mxu0 0.0
    %506 = vmatpush1.msra.mxu0 0.0
    %507 = vmatprep.subr.mxu0 0.0
    %508 = vmatpush1.msra.mxu0 0.0
    %509 = vmatprep.subr.mxu0 0.0
    %510 = vmatpush1.msra.mxu0 0.0
    %511 = vmatprep.subr.mxu0 0.0
    %512 = vmatpush1.msra.mxu0 0.0
    %513 = vmatprep.subr.mxu0 0.0
    %514 = vmatpush1.msra.mxu0 0.0
    %515 = vmatprep.subr.mxu0 0.0
    %516 = vmatpush1.msra.mxu0 0.0
    %517 = vmatprep.subr.mxu0 0.0
    %518 = vmatpush1.msra.mxu0 0.0
    %519 = vmatprep.subr.mxu0 0.0
    %520 = vmatpush1.msra.mxu0 0.0
    %521 = vmatprep.subr.mxu0 0.0
    %522 = vmatpush1.msra.mxu0 0.0
    %523 = vmatprep.subr.mxu0 0.0
    %524 = vmatpush1.msra.mxu0 0.0
    %525 = vmatprep.subr.mxu0 0.0
    %526 = vmatpush1.msra.mxu0 0.0
    %527 = vmatprep.subr.mxu0 0.0
    %528 = vmatpush1.msra.mxu0 0.0
    %529 = vmatprep.subr.mxu0 0.0
    %530 = vmatpush1.msra.mxu0 0.0
    %531 = vmatprep.subr.mxu0 0.0
    %532 = vmatpush1.msra.mxu0 0.0
    %533 = vmatprep.subr.mxu0 0.0
    %534 = vmatpush1.msra.mxu0 0.0
    %535 = vmatprep.subr.mxu0 0.0
    %536 = vmatpush1.msra.mxu0 0.0
    %537 = vmatprep.subr.mxu0 0.0
    %538 = vmatpush1.msra.mxu0 0.0
    %539 = vmatprep.subr.mxu0 0.0
    %540 = vmatpush1.msra.mxu0 0.0
    %541 = vmatprep.subr.mxu0 0.0
    %542 = vmatpush1.msra.mxu0 0.0
    %543 = vmatprep.subr.mxu0 0.0
    %544 = vmatpush1.msra.mxu0 0.0
    %545 = vmatprep.subr.mxu0 0.0
    %546 = vmatpush1.msra.mxu0 0.0
    %547 = vmatprep.subr.mxu0 0.0
    %548 = vmatpush1.msra.mxu0 0.0
    %549 = vmatprep.subr.mxu0 0.0
    %550 = vmatpush1.msra.mxu0 0.0
    %551 = vmatprep.subr.mxu0 0.0
    %552 = vmatpush1.msra.mxu0 0.0
    %553 = vmatprep.subr.mxu0 0.0
    %554 = vmatpush1.msra.mxu0 0.0
    %555 = vmatprep.subr.mxu0 0.0
    %556 = vmatpush1.msra.mxu0 0.0
    %557 = vmatprep.mubr.f32.mxu0 0.0
    %558 = vmatmul.mubr.f32.gmra.mrb[0].mxu0 %v491
    %v559 = vpop.f32.mrb[0].mxu0
    %v560 = vadd.f32 0.0, %v559
    %v561 = vpop.f32.mrb[0].mxu0
    %562 = vdwg.mxu0
    %563 = vrot.lane.b32.xlu0 %v292, 64
    %v564 = vpop.permute.xlu0 %563
    %v567 = vsel %vm464, %v486, 0
    %569 = vmatprep.subr.mxu0 0.0
    %570 = vmatpush1.msra.mxu0 %v564
    %571 = vmatprep.subr.mxu0 0.0
    %572 = vmatpush1.msra.mxu0 0.0
    %573 = vmatprep.subr.mxu0 0.0
    %574 = vmatpush1.msra.mxu0 0.0
    %575 = vmatprep.subr.mxu0 0.0
    %576 = vmatpush1.msra.mxu0 0.0
    %577 = vmatprep.subr.mxu0 0.0
    %578 = vmatpush1.msra.mxu0 0.0
    %579 = vmatprep.subr.mxu0 0.0
    %580 = vmatpush1.msra.mxu0 0.0
    %581 = vmatprep.subr.mxu0 0.0
    %582 = vmatpush1.msra.mxu0 0.0
    %583 = vmatprep.subr.mxu0 0.0
    %584 = vmatpush1.msra.mxu0 0.0
    %585 = vmatprep.subr.mxu0 0.0
    %586 = vmatpush1.msra.mxu0 0.0
    %587 = vmatprep.subr.mxu0 0.0
    %588 = vmatpush1.msra.mxu0 0.0
    %589 = vmatprep.subr.mxu0 0.0
    %590 = vmatpush1.msra.mxu0 0.0
    %591 = vmatprep.subr.mxu0 0.0
    %592 = vmatpush1.msra.mxu0 0.0
    %593 = vmatprep.subr.mxu0 0.0
    %594 = vmatpush1.msra.mxu0 0.0
    %595 = vmatprep.subr.mxu0 0.0
    %596 = vmatpush1.msra.mxu0 0.0
    %597 = vmatprep.subr.mxu0 0.0
    %598 = vmatpush1.msra.mxu0 0.0
    %599 = vmatprep.subr.mxu0 0.0
    %600 = vmatpush1.msra.mxu0 0.0
    %601 = vmatprep.subr.mxu0 0.0
    %602 = vmatpush1.msra.mxu0 0.0
    %603 = vmatprep.subr.mxu0 0.0
    %604 = vmatpush1.msra.mxu0 0.0
    %605 = vmatprep.subr.mxu0 0.0
    %606 = vmatpush1.msra.mxu0 0.0
    %607 = vmatprep.subr.mxu0 0.0
    %608 = vmatpush1.msra.mxu0 0.0
    %609 = vmatprep.subr.mxu0 0.0
    %610 = vmatpush1.msra.mxu0 0.0
    %611 = vmatprep.subr.mxu0 0.0
    %612 = vmatpush1.msra.mxu0 0.0
    %613 = vmatprep.subr.mxu0 0.0
    %614 = vmatpush1.msra.mxu0 0.0
    %615 = vmatprep.subr.mxu0 0.0
    %616 = vmatpush1.msra.mxu0 0.0
    %617 = vmatprep.subr.mxu0 0.0
    %618 = vmatpush1.msra.mxu0 0.0
    %619 = vmatprep.subr.mxu0 0.0
    %620 = vmatpush1.msra.mxu0 0.0
    %621 = vmatprep.subr.mxu0 0.0
    %622 = vmatpush1.msra.mxu0 0.0
    %623 = vmatprep.subr.mxu0 0.0
    %624 = vmatpush1.msra.mxu0 0.0
    %625 = vmatprep.subr.mxu0 0.0
    %626 = vmatpush1.msra.mxu0 0.0
    %627 = vmatprep.subr.mxu0 0.0
    %628 = vmatpush1.msra.mxu0 0.0
    %629 = vmatprep.subr.mxu0 0.0
    %630 = vmatpush1.msra.mxu0 0.0
    %631 = vmatprep.subr.mxu0 0.0
    %632 = vmatpush1.msra.mxu0 0.0
    %633 = vmatprep.mubr.f32.mxu0 0.0
    %634 = vmatmul.mubr.f32.gmra.mrb[0].mxu0 %v567
    %v635 = vpop.f32.mrb[0].mxu0
    %v636 = vadd.f32 0.0, %v635
    %v637 = vpop.f32.mrb[0].mxu0
    %638 = vdwg.mxu0
    %639 = vrot.lane.b32.xlu0 %v287, 112
    %v640 = vpop.permute.xlu0 %639
    %641 = vrot.lane.b32.xlu0 %v287, 80
    %v642 = vpop.permute.xlu0 %641
    %v643 = vsel %vm298, %v640, 0
    %v645 = vsel %vm298, %v642, 0
    %647 = vmatprep.subr.mxu0 0.0
    %648 = vmatpush1.xpose.msra.mxu0 %v645
    %649 = vmatprep.subr.mxu0 0.0
    %650 = vmatpush1.xpose.msra.mxu0 0.0
    %651 = vmatprep.subr.mxu0 0.0
    %652 = vmatpush1.xpose.msra.mxu0 0.0
    %653 = vmatprep.subr.mxu0 0.0
    %654 = vmatpush1.xpose.msra.mxu0 0.0
    %655 = vmatprep.subr.mxu0 0.0
    %656 = vmatpush1.xpose.msra.mxu0 0.0
    %657 = vmatprep.subr.mxu0 0.0
    %658 = vmatpush1.xpose.msra.mxu0 0.0
    %659 = vmatprep.subr.mxu0 0.0
    %660 = vmatpush1.xpose.msra.mxu0 0.0
    %661 = vmatprep.subr.mxu0 0.0
    %662 = vmatpush1.xpose.msra.mxu0 0.0
    %663 = vmatprep.subr.mxu0 0.0
    %664 = vmatpush1.xpose.msra.mxu0 0.0
    %665 = vmatprep.subr.mxu0 0.0
    %666 = vmatpush1.xpose.msra.mxu0 0.0
    %667 = vmatprep.subr.mxu0 0.0
    %668 = vmatpush1.xpose.msra.mxu0 0.0
    %669 = vmatprep.subr.mxu0 0.0
    %670 = vmatpush1.xpose.msra.mxu0 0.0
    %671 = vmatprep.subr.mxu0 0.0
    %672 = vmatpush1.xpose.msra.mxu0 0.0
    %673 = vmatprep.subr.mxu0 0.0
    %674 = vmatpush1.xpose.msra.mxu0 0.0
    %675 = vmatprep.subr.mxu0 0.0
    %676 = vmatpush1.xpose.msra.mxu0 0.0
    %677 = vmatprep.subr.mxu0 0.0
    %678 = vmatpush1.xpose.msra.mxu0 0.0
    %679 = vmatprep.subr.mxu0 0.0
    %680 = vmatpush1.xpose.msra.mxu0 0.0
    %681 = vmatprep.subr.mxu0 0.0
    %682 = vmatpush1.xpose.msra.mxu0 0.0
    %683 = vmatprep.subr.mxu0 0.0
    %684 = vmatpush1.xpose.msra.mxu0 0.0
    %685 = vmatprep.subr.mxu0 0.0
    %686 = vmatpush1.xpose.msra.mxu0 0.0
    %687 = vmatprep.subr.mxu0 0.0
    %688 = vmatpush1.xpose.msra.mxu0 0.0
    %689 = vmatprep.subr.mxu0 0.0
    %690 = vmatpush1.xpose.msra.mxu0 0.0
    %691 = vmatprep.subr.mxu0 0.0
    %692 = vmatpush1.xpose.msra.mxu0 0.0
    %693 = vmatprep.subr.mxu0 0.0
    %694 = vmatpush1.xpose.msra.mxu0 0.0
    %695 = vmatprep.subr.mxu0 0.0
    %696 = vmatpush1.xpose.msra.mxu0 0.0
    %697 = vmatprep.subr.mxu0 0.0
    %698 = vmatpush1.xpose.msra.mxu0 0.0
    %699 = vmatprep.subr.mxu0 0.0
    %700 = vmatpush1.xpose.msra.mxu0 0.0
    %701 = vmatprep.subr.mxu0 0.0
    %702 = vmatpush1.xpose.msra.mxu0 0.0
    %703 = vmatprep.subr.mxu0 0.0
    %704 = vmatpush1.xpose.msra.mxu0 0.0
    %705 = vmatprep.subr.mxu0 0.0
    %706 = vmatpush1.xpose.msra.mxu0 0.0
    %707 = vmatprep.subr.mxu0 0.0
    %708 = vmatpush1.xpose.msra.mxu0 0.0
    %709 = vmatprep.subr.mxu0 0.0
    %710 = vmatpush1.xpose.msra.mxu0 0.0
    %711 = vmatprep.mubr.f32.mxu0 0.0
    %712 = vmatmul.mubr.f32.gmra.mrb[0].mxu0 %v643
    %v713 = vpop.f32.mrb[0].mxu0
    %v714 = vadd.f32 0.0, %v713
    %v715 = vpop.f32.mrb[0].mxu0
    %716 = vdwg.mxu0
    %717 = vrot.lane.b32.xlu0 %v292, 112
    %v718 = vpop.permute.xlu0 %717
    %719 = vrot.lane.b32.xlu0 %v292, 80
    %v720 = vpop.permute.xlu0 %719
    %v721 = vsel %vm298, %v718, 0
    %v723 = vsel %vm298, %v720, 0
    %725 = vmatprep.subr.mxu0 0.0
    %726 = vmatpush1.xpose.msra.mxu0 %v723
    %727 = vmatprep.subr.mxu0 0.0
    %728 = vmatpush1.xpose.msra.mxu0 0.0
    %729 = vmatprep.subr.mxu0 0.0
    %730 = vmatpush1.xpose.msra.mxu0 0.0
    %731 = vmatprep.subr.mxu0 0.0
    %732 = vmatpush1.xpose.msra.mxu0 0.0
    %733 = vmatprep.subr.mxu0 0.0
    %734 = vmatpush1.xpose.msra.mxu0 0.0
    %735 = vmatprep.subr.mxu0 0.0
    %736 = vmatpush1.xpose.msra.mxu0 0.0
    %737 = vmatprep.subr.mxu0 0.0
    %738 = vmatpush1.xpose.msra.mxu0 0.0
    %739 = vmatprep.subr.mxu0 0.0
    %740 = vmatpush1.xpose.msra.mxu0 0.0
    %741 = vmatprep.subr.mxu0 0.0
    %742 = vmatpush1.xpose.msra.mxu0 0.0
    %743 = vmatprep.subr.mxu0 0.0
    %744 = vmatpush1.xpose.msra.mxu0 0.0
    %745 = vmatprep.subr.mxu0 0.0
    %746 = vmatpush1.xpose.msra.mxu0 0.0
    %747 = vmatprep.subr.mxu0 0.0
    %748 = vmatpush1.xpose.msra.mxu0 0.0
    %749 = vmatprep.subr.mxu0 0.0
    %750 = vmatpush1.xpose.msra.mxu0 0.0
    %751 = vmatprep.subr.mxu0 0.0
    %752 = vmatpush1.xpose.msra.mxu0 0.0
    %753 = vmatprep.subr.mxu0 0.0
    %754 = vmatpush1.xpose.msra.mxu0 0.0
    %755 = vmatprep.subr.mxu0 0.0
    %756 = vmatpush1.xpose.msra.mxu0 0.0
    %757 = vmatprep.subr.mxu0 0.0
    %758 = vmatpush1.xpose.msra.mxu0 0.0
    %759 = vmatprep.subr.mxu0 0.0
    %760 = vmatpush1.xpose.msra.mxu0 0.0
    %761 = vmatprep.subr.mxu0 0.0
    %762 = vmatpush1.xpose.msra.mxu0 0.0
    %763 = vmatprep.subr.mxu0 0.0
    %764 = vmatpush1.xpose.msra.mxu0 0.0
    %765 = vmatprep.subr.mxu0 0.0
    %766 = vmatpush1.xpose.msra.mxu0 0.0
    %767 = vmatprep.subr.mxu0 0.0
    %768 = vmatpush1.xpose.msra.mxu0 0.0
    %769 = vmatprep.subr.mxu0 0.0
    %770 = vmatpush1.xpose.msra.mxu0 0.0
    %771 = vmatprep.subr.mxu0 0.0
    %772 = vmatpush1.xpose.msra.mxu0 0.0
    %773 = vmatprep.subr.mxu0 0.0
    %774 = vmatpush1.xpose.msra.mxu0 0.0
    %775 = vmatprep.subr.mxu0 0.0
    %776 = vmatpush1.xpose.msra.mxu0 0.0
    %777 = vmatprep.subr.mxu0 0.0
    %778 = vmatpush1.xpose.msra.mxu0 0.0
    %779 = vmatprep.subr.mxu0 0.0
    %780 = vmatpush1.xpose.msra.mxu0 0.0
    %781 = vmatprep.subr.mxu0 0.0
    %782 = vmatpush1.xpose.msra.mxu0 0.0
    %783 = vmatprep.subr.mxu0 0.0
    %784 = vmatpush1.xpose.msra.mxu0 0.0
    %785 = vmatprep.subr.mxu0 0.0
    %786 = vmatpush1.xpose.msra.mxu0 0.0
    %787 = vmatprep.subr.mxu0 0.0
    %788 = vmatpush1.xpose.msra.mxu0 0.0
    %789 = vmatprep.mubr.f32.mxu0 0.0
    %790 = vmatmul.mubr.f32.gmra.mrb[0].mxu0 %v721
    %v791 = vpop.f32.mrb[0].mxu0
    %v792 = vadd.f32 0.0, %v791
    %v793 = vpop.f32.mrb[0].mxu0
    %794 = vdwg.mxu0
    %v795 = vmul.f32 %v714, 0.25
    %v796 = vmul.f32 %v792, 0.25
    %v797 = vadd.f32 %v795, %v455
    %v798 = vadd.f32 %v796, %v459
    %v799 = vsel %vm464, %v797, -inf
    %800 = vmax.xlane.f32.xlu0 %v799
    %v801 = vpop.xlane.xlu0 %800
    %v802 = vsel %vm464, %v798, -inf
    %803 = vmax.xlane.f32.xlu0 %v802
    %v804 = vpop.xlane.xlu0 %803
    %v805 = vsub.f32 %v797, %v801
    %v806 = vsub.f32 %v798, %v804
    %v807 = vmul.f32 %v805, 1.442695
    %v808 = vpow.pop %v807
    %v809 = vmul.f32 %v806, 1.442695
    %v810 = vpow.pop %v809
    %v811 = vsel %vm464, %v808, 0.0
    %812 = vadd.xlane.f32.xlu0 %v811
    %v813 = vpop.xlane.xlu0 %812
    %v814 = vsel %vm464, %v810, 0.0
    %815 = vadd.xlane.f32.xlu0 %v814
    %v816 = vpop.xlane.xlu0 %815
    %v817 = vrcp.pop %v813
    %v818 = vrcp.pop %v816
    %v819 = vmul.f32 %v808, %v817
    %v820 = vmul.f32 %v810, %v818
    %821 = vrot.lane.b32.xlu0 %v287, 48
    %v822 = vpop.permute.xlu0 %821
    %v825 = vsel %vm464, %v819, 0
    %827 = vmatprep.subr.mxu0 0.0
    %828 = vmatpush1.msra.mxu0 %v822
    %829 = vmatprep.subr.mxu0 0.0
    %830 = vmatpush1.msra.mxu0 0.0
    %831 = vmatprep.subr.mxu0 0.0
    %832 = vmatpush1.msra.mxu0 0.0
    %833 = vmatprep.subr.mxu0 0.0
    %834 = vmatpush1.msra.mxu0 0.0
    %835 = vmatprep.subr.mxu0 0.0
    %836 = vmatpush1.msra.mxu0 0.0
    %837 = vmatprep.subr.mxu0 0.0
    %838 = vmatpush1.msra.mxu0 0.0
    %839 = vmatprep.subr.mxu0 0.0
    %840 = vmatpush1.msra.mxu0 0.0
    %841 = vmatprep.subr.mxu0 0.0
    %842 = vmatpush1.msra.mxu0 0.0
    %843 = vmatprep.subr.mxu0 0.0
    %844 = vmatpush1.msra.mxu0 0.0
    %845 = vmatprep.subr.mxu0 0.0
    %846 = vmatpush1.msra.mxu0 0.0
    %847 = vmatprep.subr.mxu0 0.0
    %848 = vmatpush1.msra.mxu0 0.0
    %849 = vmatprep.subr.mxu0 0.0
    %850 = vmatpush1.msra.mxu0 0.0
    %851 = vmatprep.subr.mxu0 0.0
    %852 = vmatpush1.msra.mxu0 0.0
    %853 = vmatprep.subr.mxu0 0.0
    %854 = vmatpush1.msra.mxu0 0.0
    %855 = vmatprep.subr.mxu0 0.0
    %856 = vmatpush1.msra.mxu0 0.0
    %857 = vmatprep.subr.mxu0 0.0
    %858 = vmatpush1.msra.mxu0 0.0
    %859 = vmatprep.subr.mxu0 0.0
    %860 = vmatpush1.msra.mxu0 0.0
    %861 = vmatprep.subr.mxu0 0.0
    %862 = vmatpush1.msra.mxu0 0.0
    %863 = vmatprep.subr.mxu0 0.0
    %864 = vmatpush1.msra.mxu0 0.0
    %865 = vmatprep.subr.mxu0 0.0
    %866 = vmatpush1.msra.mxu0 0.0
    %867 = vmatprep.subr.mxu0 0.0
    %868 = vmatpush1.msra.mxu0 0.0
    %869 = vmatprep.subr.mxu0 0.0
    %870 = vmatpush1.msra.mxu0 0.0
    %871 = vmatprep.subr.mxu0 0.0
    %872 = vmatpush1.msra.mxu0 0.0
    %873 = vmatprep.subr.mxu0 0.0
    %874 = vmatpush1.msra.mxu0 0.0
    %875 = vmatprep.subr.mxu0 0.0
    %876 = vmatpush1.msra.mxu0 0.0
    %877 = vmatprep.subr.mxu0 0.0
    %878 = vmatpush1.msra.mxu0 0.0
    %879 = vmatprep.subr.mxu0 0.0
    %880 = vmatpush1.msra.mxu0 0.0
    %881 = vmatprep.subr.mxu0 0.0
    %882 = vmatpush1.msra.mxu0 0.0
    %883 = vmatprep.subr.mxu0 0.0
    %884 = vmatpush1.msra.mxu0 0.0
    %885 = vmatprep.subr.mxu0 0.0
    %886 = vmatpush1.msra.mxu0 0.0
    %887 = vmatprep.subr.mxu0 0.0
    %888 = vmatpush1.msra.mxu0 0.0
    %889 = vmatprep.subr.mxu0 0.0
    %890 = vmatpush1.msra.mxu0 0.0
    %891 = vmatprep.mubr.f32.mxu0 0.0
    %892 = vmatmul.mubr.f32.gmra.mrb[0].mxu0 %v825
    %v893 = vpop.f32.mrb[0].mxu0
    %v894 = vadd.f32 0.0, %v893
    %v895 = vpop.f32.mrb[0].mxu0
    %896 = vdwg.mxu0
    %897 = vrot.lane.b32.xlu0 %v292, 48
    %v898 = vpop.permute.xlu0 %897
    %v901 = vsel %vm464, %v820, 0
    %903 = vmatprep.subr.mxu0 0.0
    %904 = vmatpush1.msra.mxu0 %v898
    %905 = vmatprep.subr.mxu0 0.0
    %906 = vmatpush1.msra.mxu0 0.0
    %907 = vmatprep.subr.mxu0 0.0
    %908 = vmatpush1.msra.mxu0 0.0
    %909 = vmatprep.subr.mxu0 0.0
    %910 = vmatpush1.msra.mxu0 0.0
    %911 = vmatprep.subr.mxu0 0.0
    %912 = vmatpush1.msra.mxu0 0.0
    %913 = vmatprep.subr.mxu0 0.0
    %914 = vmatpush1.msra.mxu0 0.0
    %915 = vmatprep.subr.mxu0 0.0
    %916 = vmatpush1.msra.mxu0 0.0
    %917 = vmatprep.subr.mxu0 0.0
    %918 = vmatpush1.msra.mxu0 0.0
    %919 = vmatprep.subr.mxu0 0.0
    %920 = vmatpush1.msra.mxu0 0.0
    %921 = vmatprep.subr.mxu0 0.0
    %922 = vmatpush1.msra.mxu0 0.0
    %923 = vmatprep.subr.mxu0 0.0
    %924 = vmatpush1.msra.mxu0 0.0
    %925 = vmatprep.subr.mxu0 0.0
    %926 = vmatpush1.msra.mxu0 0.0
    %927 = vmatprep.subr.mxu0 0.0
    %928 = vmatpush1.msra.mxu0 0.0
    %929 = vmatprep.subr.mxu0 0.0
    %930 = vmatpush1.msra.mxu0 0.0
    %931 = vmatprep.subr.mxu0 0.0
    %932 = vmatpush1.msra.mxu0 0.0
    %933 = vmatprep.subr.mxu0 0.0
    %934 = vmatpush1.msra.mxu0 0.0
    %935 = vmatprep.subr.mxu0 0.0
    %936 = vmatpush1.msra.mxu0 0.0
    %937 = vmatprep.subr.mxu0 0.0
    %938 = vmatpush1.msra.mxu0 0.0
    %939 = vmatprep.subr.mxu0 0.0
    %940 = vmatpush1.msra.mxu0 0.0
    %941 = vmatprep.subr.mxu0 0.0
    %942 = vmatpush1.msra.mxu0 0.0
    %943 = vmatprep.subr.mxu0 0.0
    %944 = vmatpush1.msra.mxu0 0.0
    %945 = vmatprep.subr.mxu0 0.0
    %946 = vmatpush1.msra.mxu0 0.0
    %947 = vmatprep.subr.mxu0 0.0
    %948 = vmatpush1.msra.mxu0 0.0
    %949 = vmatprep.subr.mxu0 0.0
    %950 = vmatpush1.msra.mxu0 0.0
    %951 = vmatprep.subr.mxu0 0.0
    %952 = vmatpush1.msra.mxu0 0.0
    %953 = vmatprep.subr.mxu0 0.0
    %954 = vmatpush1.msra.mxu0 0.0
    %955 = vmatprep.subr.mxu0 0.0
    %956 = vmatpush1.msra.mxu0 0.0
    %957 = vmatprep.subr.mxu0 0.0
    %958 = vmatpush1.msra.mxu0 0.0
    %959 = vmatprep.subr.mxu0 0.0
    %960 = vmatpush1.msra.mxu0 0.0
    %961 = vmatprep.subr.mxu0 0.0
    %962 = vmatpush1.msra.mxu0 0.0
    %963 = vmatprep.subr.mxu0 0.0
    %964 = vmatpush1.msra.mxu0 0.0
    %965 = vmatprep.subr.mxu0 0.0
    %966 = vmatpush1.msra.mxu0 0.0
    %967 = vmatprep.mubr.f32.mxu0 0.0
    %968 = vmatmul.mubr.f32.gmra.mrb[0].mxu0 %v901
    %v969 = vpop.f32.mrb[0].mxu0
    %v970 = vadd.f32 0.0, %v969
    %v971 = vpop.f32.mrb[0].mxu0
    %972 = vdwg.mxu0
    %975 = vrot.lane.b32.xlu0 %v894, 16
    %v976 = vpop.permute.xlu0 %975
    %977 = vrot.lane.b32.xlu0 %v970, 16
    %v978 = vpop.permute.xlu0 %977
    %v981 = vsel %vm298, %v560, %v976
    %v982 = vsel %vm298, %v636, %v978
    %v983 = vld [vmem:[#allocation2 + $0xc3] sm:$0xff]
    %v984 = vld [vmem:[#allocation2 + $0xcb] sm:$0xff]
    %v985 = vld [vmem:[#allocation2 + $0xd3] sm:$0xff]
    %v986 = vld [vmem:[#allocation2 + $0xdb] sm:$0xff]
    %v987 = vld [vmem:[#allocation2 + $0xe3] sm:$0x1]
    %v988 = vlaneseq
    %v989 = vshrl.u32 %v988, 7
    %v990 = vsub.s32 0, %v989
    %v991 = vrot.slane %v987, %v990
    %v993 = vsel %vm139, %v981, 0
    %v996 = vsel %vm139, %v982, 0
    %998 = vmatprep.subr.mxu0 0.0
    %999 = vmatpush1.msra.mxu0 %v983
    %1000 = vmatprep.subr.mxu0 0.0
    %1001 = vmatpush1.msra.mxu0 %v984
    %1002 = vmatprep.subr.mxu0 0.0
    %1003 = vmatpush1.msra.mxu0 %v985
    %1004 = vmatprep.subr.mxu0 0.0
    %1005 = vmatpush1.msra.mxu0 %v986
    %1006 = vmatprep.subr.mxu0 0.0
    %1007 = vmatpush1.msra.mxu0 0.0
    %1008 = vmatprep.subr.mxu0 0.0
    %1009 = vmatpush1.msra.mxu0 0.0
    %1010 = vmatprep.subr.mxu0 0.0
    %1011 = vmatpush1.msra.mxu0 0.0
    %1012 = vmatprep.subr.mxu0 0.0
    %1013 = vmatpush1.msra.mxu0 0.0
    %1014 = vmatprep.subr.mxu0 0.0
    %1015 = vmatpush1.msra.mxu0 0.0
    %1016 = vmatprep.subr.mxu0 0.0
    %1017 = vmatpush1.msra.mxu0 0.0
    %1018 = vmatprep.subr.mxu0 0.0
    %1019 = vmatpush1.msra.mxu0 0.0
    %1020 = vmatprep.subr.mxu0 0.0
    %1021 = vmatpush1.msra.mxu0 0.0
    %1022 = vmatprep.subr.mxu0 0.0
    %1023 = vmatpush1.msra.mxu0 0.0
    %1024 = vmatprep.subr.mxu0 0.0
    %1025 = vmatpush1.msra.mxu0 0.0
    %1026 = vmatprep.subr.mxu0 0.0
    %1027 = vmatpush1.msra.mxu0 0.0
    %1028 = vmatprep.subr.mxu0 0.0
    %1029 = vmatpush1.msra.mxu0 0.0
    %1030 = vmatprep.subr.mxu0 0.0
    %1031 = vmatpush1.msra.mxu0 0.0
    %1032 = vmatprep.subr.mxu0 0.0
    %1033 = vmatpush1.msra.mxu0 0.0
    %1034 = vmatprep.subr.mxu0 0.0
    %1035 = vmatpush1.msra.mxu0 0.0
    %1036 = vmatprep.subr.mxu0 0.0
    %1037 = vmatpush1.msra.mxu0 0.0
    %1038 = vmatprep.subr.mxu0 0.0
    %1039 = vmatpush1.msra.mxu0 0.0
    %1040 = vmatprep.subr.mxu0 0.0
    %1041 = vmatpush1.msra.mxu0 0.0
    %1042 = vmatprep.subr.mxu0 0.0
    %1043 = vmatpush1.msra.mxu0 0.0
    %1044 = vmatprep.subr.mxu0 0.0
    %1045 = vmatpush1.msra.mxu0 0.0
    %1046 = vmatprep.subr.mxu0 0.0
    %1047 = vmatpush1.msra.mxu0 0.0
    %1048 = vmatprep.subr.mxu0 0.0
    %1049 = vmatpush1.msra.mxu0 0.0
    %1050 = vmatprep.subr.mxu0 0.0
    %1051 = vmatpush1.msra.mxu0 0.0
    %1052 = vmatprep.subr.mxu0 0.0
    %1053 = vmatpush1.msra.mxu0 0.0
    %1054 = vmatprep.subr.mxu0 0.0
    %1055 = vmatpush1.msra.mxu0 0.0
    %1056 = vmatprep.subr.mxu0 0.0
    %1057 = vmatpush1.msra.mxu0 0.0
    %1058 = vmatprep.subr.mxu0 0.0
    %1059 = vmatpush1.msra.mxu0 0.0
    %1060 = vmatprep.subr.mxu0 0.0
    %1061 = vmatpush1.msra.mxu0 0.0
    %1062 = vmatprep.mubr.f32.mxu0 0.0
    %1063 = vmatmul.mubr.f32.gmra.mrb[0].mxu0 %v993
    %v1064 = vpop.f32.mrb[0].mxu0
    %v1065 = vadd.f32 %v991, %v1064
    %v1066 = vpop.f32.mrb[0].mxu0
    %1067 = vmatprep.mubr.f32.mxu0 0.0
    %1068 = vmatmul.mubr.f32.gmra.mrb[0].mxu0 %v996
    %v1069 = vpop.f32.mrb[0].mxu0
    %v1070 = vadd.f32 %v991, %v1069
    %v1071 = vpop.f32.mrb[0].mxu0
    %1072 = vdwg.mxu0
    %v1073 = vadd.f32 %v177, %v1065
    %v1074 = vadd.f32 %v178, %v1070
    %v1075 = vld [vmem:[#allocation2 + $0xe4] sm:$0x1]
    %v1076 = vld [vmem:[#allocation2 + $0xe5] sm:$0x1]
    %v1077 = vsel %vm139, %v1073, 0.0
    %1078 = vadd.xlane.f32.xlu0 %v1077
    %v1079 = vpop.xlane.xlu0 %1078
    %v1080 = vsel %vm139, %v1074, 0.0
    %1081 = vadd.xlane.f32.xlu0 %v1080
    %v1082 = vpop.xlane.xlu0 %1081
    %v1083 = vmul.f32 %v1079, %v146
    %v1084 = vmul.f32 %v1082, %v146
    %v1085 = vsub.f32 %v1073, %v1083
    %v1086 = vsub.f32 %v1074, %v1084
    %v1087 = vmul.f32 %v1085, %v1085
    %v1088 = vmul.f32 %v1086, %v1086
    %v1089 = vsel %vm139, %v1087, 0.0
    %1090 = vadd.xlane.f32.xlu0 %v1089
    %v1091 = vpop.xlane.xlu0 %1090
    %v1092 = vsel %vm139, %v1088, 0.0
    %1093 = vadd.xlane.f32.xlu0 %v1092
    %v1094 = vpop.xlane.xlu0 %1093
    %v1095 = vmul.f32 %v1091, %v146
    %v1096 = vmul.f32 %v1094, %v146
    %v1097 = vadd.f32 %v1095, 1e-12
    %v1098 = vadd.f32 %v1096, 1e-12
    %v1099 = vrsqrt.pop %v1097
    %v1100 = vrsqrt.pop %v1098
    %v1101 = vmul.f32 %v1085, %v1099
    %v1102 = vmul.f32 %v1086, %v1100
    %v1103 = vlaneseq
    %v1104 = vshrl.u32 %v1103, 7
    %v1105 = vsub.s32 0, %v1104
    %v1106 = vrot.slane %v1075, %v1105
    %v1107 = vmul.f32 %v1101, %v1106
    %v1108 = vmul.f32 %v1102, %v1106
    %v1109 = vlaneseq
    %v1110 = vshrl.u32 %v1109, 7
    %v1111 = vsub.s32 0, %v1110
    %v1112 = vrot.slane %v1076, %v1111
    %v1113 = vadd.f32 %v1107, %v1112
    %v1114 = vadd.f32 %v1108, %v1112
    %v1115 = vld [vmem:[#allocation2 + $0xe6] sm:$0xff]
    %v1116 = vld [vmem:[#allocation2 + $0xee] sm:$0xff]
    %v1117 = vld [vmem:[#allocation2 + $0xf6] sm:$0xff]
    %v1118 = vld [vmem:[#allocation2 + $0xfe] sm:$0xff]
    %v1119 = vld [vmem:[#allocation2 + $0x106] sm:$0x1]
    %v1120 = vlaneseq
    %v1121 = vshrl.u32 %v1120, 7
    %v1122 = vsub.s32 0, %v1121
    %v1123 = vrot.slane %v1119, %v1122
    %v1125 = vsel %vm139, %v1113, 0
    %v1128 = vsel %vm139, %v1114, 0
    %1130 = vmatprep.subr.mxu0 0.0
    %1131 = vmatpush1.msra.mxu0 %v1115
    %1132 = vmatprep.subr.mxu0 0.0
    %1133 = vmatpush1.msra.mxu0 %v1116
    %1134 = vmatprep.subr.mxu0 0.0
    %1135 = vmatpush1.msra.mxu0 %v1117
    %1136 = vmatprep.subr.mxu0 0.0
    %1137 = vmatpush1.msra.mxu0 %v1118
    %1138 = vmatprep.subr.mxu0 0.0
    %1139 = vmatpush1.msra.mxu0 0.0
    %1140 = vmatprep.subr.mxu0 0.0
    %1141 = vmatpush1.msra.mxu0 0.0
    %1142 = vmatprep.subr.mxu0 0.0
    %1143 = vmatpush1.msra.mxu0 0.0
    %1144 = vmatprep.subr.mxu0 0.0
    %1145 = vmatpush1.msra.mxu0 0.0
    %1146 = vmatprep.subr.mxu0 0.0
    %1147 = vmatpush1.msra.mxu0 0.0
    %1148 = vmatprep.subr.mxu0 0.0
    %1149 = vmatpush1.msra.mxu0 0.0
    %1150 = vmatprep.subr.mxu0 0.0
    %1151 = vmatpush1.msra.mxu0 0.0
    %1152 = vmatprep.subr.mxu0 0.0
    %1153 = vmatpush1.msra.mxu0 0.0
    %1154 = vmatprep.subr.mxu0 0.0
    %1155 = vmatpush1.msra.mxu0 0.0
    %1156 = vmatprep.subr.mxu0 0.0
    %1157 = vmatpush1.msra.mxu0 0.0
    %1158 = vmatprep.subr.mxu0 0.0
    %1159 = vmatpush1.msra.mxu0 0.0
    %1160 = vmatprep.subr.mxu0 0.0
    %1161 = vmatpush1.msra.mxu0 0.0
    %1162 = vmatprep.subr.mxu0 0.0
    %1163 = vmatpush1.msra.mxu0 0.0
    %1164 = vmatprep.subr.mxu0 0.0
    %1165 = vmatpush1.msra.mxu0 0.0
    %1166 = vmatprep.subr.mxu0 0.0
    %1167 = vmatpush1.msra.mxu0 0.0
    %1168 = vmatprep.subr.mxu0 0.0
    %1169 = vmatpush1.msra.mxu0 0.0
    %1170 = vmatprep.subr.mxu0 0.0
    %1171 = vmatpush1.msra.mxu0 0.0
    %1172 = vmatprep.subr.mxu0 0.0
    %1173 = vmatpush1.msra.mxu0 0.0
    %1174 = vmatprep.subr.mxu0 0.0
    %1175 = vmatpush1.msra.mxu0 0.0
    %1176 = vmatprep.subr.mxu0 0.0
    %1177 = vmatpush1.msra.mxu0 0.0
    %1178 = vmatprep.subr.mxu0 0.0
    %1179 = vmatpush1.msra.mxu0 0.0
    %1180 = vmatprep.subr.mxu0 0.0
    %1181 = vmatpush1.msra.mxu0 0.0
    %1182 = vmatprep.subr.mxu0 0.0
    %1183 = vmatpush1.msra.mxu0 0.0
    %1184 = vmatprep.subr.mxu0 0.0
    %1185 = vmatpush1.msra.mxu0 0.0
    %1186 = vmatprep.subr.mxu0 0.0
    %1187 = vmatpush1.msra.mxu0 0.0
    %1188 = vmatprep.subr.mxu0 0.0
    %1189 = vmatpush1.msra.mxu0 0.0
    %1190 = vmatprep.subr.mxu0 0.0
    %1191 = vmatpush1.msra.mxu0 0.0
    %1192 = vmatprep.subr.mxu0 0.0
    %1193 = vmatpush1.msra.mxu0 0.0
    %1194 = vmatprep.mubr.f32.mxu0 0.0
    %1195 = vmatmul.mubr.f32.gmra.mrb[0].mxu0 %v1125
    %v1196 = vpop.f32.mrb[0].mxu0
    %v1197 = vadd.f32 %v1123, %v1196
    %v1198 = vpop.f32.mrb[0].mxu0
    %1199 = vmatprep.mubr.f32.mxu0 0.0
    %1200 = vmatmul.mubr.f32.gmra.mrb[0].mxu0 %v1128
    %v1201 = vpop.f32.mrb[0].mxu0
    %v1202 = vadd.f32 %v1123, %v1201
    %v1203 = vpop.f32.mrb[0].mxu0
    %1204 = vdwg.mxu0
    %v1205 = vmul.f32 %v1197, 0.5
    %v1206 = vmul.f32 %v1202, 0.5
    %v1207 = vmul.f32 %v1197, 0.044715
    %v1208 = vmul.f32 %v1202, 0.044715
    %v1209 = vmul.f32 %v1207, %v1197
    %v1210 = vmul.f32 %v1208, %v1202
    %v1211 = vmul.f32 %v1209, %v1197
    %v1212 = vmul.f32 %v1210, %v1202
    %v1213 = vadd.f32 %v1197, %v1211
    %v1214 = vadd.f32 %v1202, %v1212
    %v1215 = vmul.f32 %v1213, 0.7978846
    %v1216 = vmul.f32 %v1214, 0.7978846
    %v1217 = vtanh.pop %v1215
    %v1218 = vtanh.pop %v1216
    %v1219 = vadd.f32 %v1217, 1.0
    %v1220 = vadd.f32 %v1218, 1.0
    %v1221 = vmul.f32 %v1205, %v1219
    %v1222 = vmul.f32 %v1206, %v1220
    %v1223 = vld [vmem:[#allocation2 + $0x107] sm:$0xff]
    %v1224 = vld [vmem:[#allocation2 + $0x10f] sm:$0xff]
    %v1225 = vld [vmem:[#allocation2 + $0x117] sm:$0xff]
    %v1226 = vld [vmem:[#allocation2 + $0x11f] sm:$0xff]
    %v1227 = vld [vmem:[#allocation2 + $0x127] sm:$0xff]
    %v1228 = vld [vmem:[#allocation2 + $0x12f] sm:$0xff]
    %v1229 = vld [vmem:[#allocation2 + $0x137] sm:$0xff]
    %v1230 = vld [vmem:[#allocation2 + $0x13f] sm:$0xff]
    %v1231 = vld [vmem:[#allocation2 + $0x147] sm:$0x1]
    %v1232 = vlaneseq
    %v1233 = vshrl.u32 %v1232, 7
    %v1234 = vsub.s32 0, %v1233
    %v1235 = vrot.slane %v1231, %v1234
    %vm1236 = vcmask 523264
    %v1238 = vsel %vm1236, %v1221, 0
    %v1241 = vsel %vm1236, %v1222, 0
    %1243 = vmatprep.subr.mxu0 0.0
    %1244 = vmatpush1.msra.mxu0 %v1223
    %1245 = vmatprep.subr.mxu0 0.0
    %1246 = vmatpush1.msra.mxu0 %v1224
    %1247 = vmatprep.subr.mxu0 0.0
    %1248 = vmatpush1.msra.mxu0 %v1225
    %1249 = vmatprep.subr.mxu0 0.0
    %1250 = vmatpush1.msra.mxu0 %v1226
    %1251 = vmatprep.subr.mxu0 0.0
    %1252 = vmatpush1.msra.mxu0 %v1227
    %1253 = vmatprep.subr.mxu0 0.0
    %1254 = vmatpush1.msra.mxu0 %v1228
    %1255 = vmatprep.subr.mxu0 0.0
    %1256 = vmatpush1.msra.mxu0 %v1229
    %1257 = vmatprep.subr.mxu0 0.0
    %1258 = vmatpush1.msra.mxu0 %v1230
    %1259 = vmatprep.subr.mxu0 0.0
    %1260 = vmatpush1.msra.mxu0 0.0
    %1261 = vmatprep.subr.mxu0 0.0
    %1262 = vmatpush1.msra.mxu0 0.0
    %1263 = vmatprep.subr.mxu0 0.0
    %1264 = vmatpush1.msra.mxu0 0.0
    %1265 = vmatprep.subr.mxu0 0.0
    %1266 = vmatpush1.msra.mxu0 0.0
    %1267 = vmatprep.subr.mxu0 0.0
    %1268 = vmatpush1.msra.mxu0 0.0
    %1269 = vmatprep.subr.mxu0 0.0
    %1270 = vmatpush1.msra.mxu0 0.0
    %1271 = vmatprep.subr.mxu0 0.0
    %1272 = vmatpush1.msra.mxu0 0.0
    %1273 = vmatprep.subr.mxu0 0.0
    %1274 = vmatpush1.msra.mxu0 0.0
    %1275 = vmatprep.subr.mxu0 0.0
    %1276 = vmatpush1.msra.mxu0 0.0
    %1277 = vmatprep.subr.mxu0 0.0
    %1278 = vmatpush1.msra.mxu0 0.0
    %1279 = vmatprep.subr.mxu0 0.0
    %1280 = vmatpush1.msra.mxu0 0.0
    %1281 = vmatprep.subr.mxu0 0.0
    %1282 = vmatpush1.msra.mxu0 0.0
    %1283 = vmatprep.subr.mxu0 0.0
    %1284 = vmatpush1.msra.mxu0 0.0
    %1285 = vmatprep.subr.mxu0 0.0
    %1286 = vmatpush1.msra.mxu0 0.0
    %1287 = vmatprep.subr.mxu0 0.0
    %1288 = vmatpush1.msra.mxu0 0.0
    %1289 = vmatprep.subr.mxu0 0.0
    %1290 = vmatpush1.msra.mxu0 0.0
    %1291 = vmatprep.subr.mxu0 0.0
    %1292 = vmatpush1.msra.mxu0 0.0
    %1293 = vmatprep.subr.mxu0 0.0
    %1294 = vmatpush1.msra.mxu0 0.0
    %1295 = vmatprep.subr.mxu0 0.0
    %1296 = vmatpush1.msra.mxu0 0.0
    %1297 = vmatprep.subr.mxu0 0.0
    %1298 = vmatpush1.msra.mxu0 0.0
    %1299 = vmatprep.subr.mxu0 0.0
    %1300 = vmatpush1.msra.mxu0 0.0
    %1301 = vmatprep.subr.mxu0 0.0
    %1302 = vmatpush1.msra.mxu0 0.0
    %1303 = vmatprep.subr.mxu0 0.0
    %1304 = vmatpush1.msra.mxu0 0.0
    %1305 = vmatprep.subr.mxu0 0.0
    %1306 = vmatpush1.msra.mxu0 0.0
    %1307 = vmatprep.mubr.f32.mxu0 0.0
    %1308 = vmatmul.mubr.f32.gmra.mrb[0].mxu0 %v1238
    %v1309 = vpop.f32.mrb[0].mxu0
    %v1310 = vadd.f32 %v1235, %v1309
    %v1311 = vpop.f32.mrb[0].mxu0
    %1312 = vmatprep.mubr.f32.mxu0 0.0
    %1313 = vmatmul.mubr.f32.gmra.mrb[0].mxu0 %v1241
    %v1314 = vpop.f32.mrb[0].mxu0
    %v1315 = vadd.f32 %v1235, %v1314
    %v1316 = vpop.f32.mrb[0].mxu0
    %1317 = vdwg.mxu0
    %v1318 = vadd.f32 %v1113, %v1310
    %v1319 = vadd.f32 %v1114, %v1315
    %v1320 = vld [vmem:[#allocation2 + $0x148] sm:$0x1]
    %v1321 = vld [vmem:[#allocation2 + $0x149] sm:$0x1]
    %v1322 = vsel %vm139, %v1318, 0.0
    %1323 = vadd.xlane.f32.xlu0 %v1322
    %v1324 = vpop.xlane.xlu0 %1323
    %v1325 = vsel %vm139, %v1319, 0.0
    %1326 = vadd.xlane.f32.xlu0 %v1325
    %v1327 = vpop.xlane.xlu0 %1326
    %v1328 = vmul.f32 %v1324, %v146
    %v1329 = vmul.f32 %v1327, %v146
    %v1330 = vsub.f32 %v1318, %v1328
    %v1331 = vsub.f32 %v1319, %v1329
    %v1332 = vmul.f32 %v1330, %v1330
    %v1333 = vmul.f32 %v1331, %v1331
    %v1334 = vsel %vm139, %v1332, 0.0
    %1335 = vadd.xlane.f32.xlu0 %v1334
    %v1336 = vpop.xlane.xlu0 %1335
    %v1337 = vsel %vm139, %v1333, 0.0
    %1338 = vadd.xlane.f32.xlu0 %v1337
    %v1339 = vpop.xlane.xlu0 %1338
    %v1340 = vmul.f32 %v1336, %v146
    %v1341 = vmul.f32 %v1339, %v146
    %v1342 = vadd.f32 %v1340, 1e-12
    %v1343 = vadd.f32 %v1341, 1e-12
    %v1344 = vrsqrt.pop %v1342
    %v1345 = vrsqrt.pop %v1343
    %v1346 = vmul.f32 %v1330, %v1344
    %v1347 = vmul.f32 %v1331, %v1345
    %v1348 = vlaneseq
    %v1349 = vshrl.u32 %v1348, 7
    %v1350 = vsub.s32 0, %v1349
    %v1351 = vrot.slane %v1320, %v1350
    %v1352 = vmul.f32 %v1346, %v1351
    %v1353 = vmul.f32 %v1347, %v1351
    %v1354 = vlaneseq
    %v1355 = vshrl.u32 %v1354, 7
    %v1356 = vsub.s32 0, %v1355
    %v1357 = vrot.slane %v1321, %v1356
    %v1358 = vadd.f32 %v1352, %v1357
    %v1359 = vadd.f32 %v1353, %v1357
    %v1360 = vld [vmem:[#allocation2 + $0x14a] sm:$0xff]
    %v1361 = vld [vmem:[#allocation2 + $0x152] sm:$0xff]
    %v1362 = vld [vmem:[#allocation2 + $0x15a] sm:$0xff]
    %v1363 = vld [vmem:[#allocation2 + $0x162] sm:$0xff]
    %v1364 = vld [vmem:[#allocation2 + $0x16a] sm:$0x1]
    %v1365 = vlaneseq
    %v1366 = vshrl.u32 %v1365, 7
    %v1367 = vsub.s32 0, %v1366
    %v1368 = vrot.slane %v1364, %v1367
    %v1370 = vsel %vm139, %v1358, 0
    %v1373 = vsel %vm139, %v1359, 0
    %1375 = vmatprep.subr.mxu0 0.0
    %1376 = vmatpush1.msra.mxu0 %v1360
    %1377 = vmatprep.subr.mxu0 0.0
    %1378 = vmatpush1.msra.mxu0 %v1361
    %1379 = vmatprep.subr.mxu0 0.0
    %1380 = vmatpush1.msra.mxu0 %v1362
    %1381 = vmatprep.subr.mxu0 0.0
    %1382 = vmatpush1.msra.mxu0 %v1363
    %1383 = vmatprep.subr.mxu0 0.0
    %1384 = vmatpush1.msra.mxu0 0.0
    %1385 = vmatprep.subr.mxu0 0.0
    %1386 = vmatpush1.msra.mxu0 0.0
    %1387 = vmatprep.subr.mxu0 0.0
    %1388 = vmatpush1.msra.mxu0 0.0
    %1389 = vmatprep.subr.mxu0 0.0
    %1390 = vmatpush1.msra.mxu0 0.0
    %1391 = vmatprep.subr.mxu0 0.0
    %1392 = vmatpush1.msra.mxu0 0.0
    %1393 = vmatprep.subr.mxu0 0.0
    %1394 = vmatpush1.msra.mxu0 0.0
    %1395 = vmatprep.subr.mxu0 0.0
    %1396 = vmatpush1.msra.mxu0 0.0
    %1397 = vmatprep.subr.mxu0 0.0
    %1398 = vmatpush1.msra.mxu0 0.0
    %1399 = vmatprep.subr.mxu0 0.0
    %1400 = vmatpush1.msra.mxu0 0.0
    %1401 = vmatprep.subr.mxu0 0.0
    %1402 = vmatpush1.msra.mxu0 0.0
    %1403 = vmatprep.subr.mxu0 0.0
    %1404 = vmatpush1.msra.mxu0 0.0
    %1405 = vmatprep.subr.mxu0 0.0
    %1406 = vmatpush1.msra.mxu0 0.0
    %1407 = vmatprep.subr.mxu0 0.0
    %1408 = vmatpush1.msra.mxu0 0.0
    %1409 = vmatprep.subr.mxu0 0.0
    %1410 = vmatpush1.msra.mxu0 0.0
    %1411 = vmatprep.subr.mxu0 0.0
    %1412 = vmatpush1.msra.mxu0 0.0
    %1413 = vmatprep.subr.mxu0 0.0
    %1414 = vmatpush1.msra.mxu0 0.0
    %1415 = vmatprep.subr.mxu0 0.0
    %1416 = vmatpush1.msra.mxu0 0.0
    %1417 = vmatprep.subr.mxu0 0.0
    %1418 = vmatpush1.msra.mxu0 0.0
    %1419 = vmatprep.subr.mxu0 0.0
    %1420 = vmatpush1.msra.mxu0 0.0
    %1421 = vmatprep.subr.mxu0 0.0
    %1422 = vmatpush1.msra.mxu0 0.0
    %1423 = vmatprep.subr.mxu0 0.0
    %1424 = vmatpush1.msra.mxu0 0.0
    %1425 = vmatprep.subr.mxu0 0.0
    %1426 = vmatpush1.msra.mxu0 0.0
    %1427 = vmatprep.subr.mxu0 0.0
    %1428 = vmatpush1.msra.mxu0 0.0
    %1429 = vmatprep.subr.mxu0 0.0
    %1430 = vmatpush1.msra.mxu0 0.0
    %1431 = vmatprep.subr.mxu0 0.0
    %1432 = vmatpush1.msra.mxu0 0.0
    %1433 = vmatprep.subr.mxu0 0.0
    %1434 = vmatpush1.msra.mxu0 0.0
    %1435 = vmatprep.subr.mxu0 0.0
    %1436 = vmatpush1.msra.mxu0 0.0
    %1437 = vmatprep.subr.mxu0 0.0
    %1438 = vmatpush1.msra.mxu0 0.0
    %1439 = vmatprep.mubr.f32.mxu0 0.0
    %1440 = vmatmul.mubr.f32.gmra.mrb[0].mxu0 %v1370
    %v1441 = vpop.f32.mrb[0].mxu0
    %v1442 = vadd.f32 %v1368, %v1441
    %v1443 = vpop.f32.mrb[0].mxu0
    %1444 = vmatprep.mubr.f32.mxu0 0.0
    %1445 = vmatmul.mubr.f32.gmra.mrb[0].mxu0 %v1373
    %v1446 = vpop.f32.mrb[0].mxu0
    %v1447 = vadd.f32 %v1368, %v1446
    %v1448 = vpop.f32.mrb[0].mxu0
    %1449 = vdwg.mxu0
    %1451 = vrot.lane.b32.xlu0 %v1442, 96
    %v1452 = vpop.permute.xlu0 %1451
    %v1453 = vsel %vm298, %v1442, 0
    %v1455 = vsel %vm298, %v1452, 0
    %1457 = vmatprep.subr.mxu0 0.0
    %1458 = vmatpush1.xpose.msra.mxu0 %v1455
    %1459 = vmatprep.subr.mxu0 0.0
    %1460 = vmatpush1.xpose.msra.mxu0 0.0
    %1461 = vmatprep.subr.mxu0 0.0
    %1462 = vmatpush1.xpose.msra.mxu0 0.0
    %1463 = vmatprep.subr.mxu0 0.0
    %1464 = vmatpush1.xpose.msra.mxu0 0.0
    %1465 = vmatprep.subr.mxu0 0.0
    %1466 = vmatpush1.xpose.msra.mxu0 0.0
    %1467 = vmatprep.subr.mxu0 0.0
    %1468 = vmatpush1.xpose.msra.mxu0 0.0
    %1469 = vmatprep.subr.mxu0 0.0
    %1470 = vmatpush1.xpose.msra.mxu0 0.0
    %1471 = vmatprep.subr.mxu0 0.0
    %1472 = vmatpush1.xpose.msra.mxu0 0.0
    %1473 = vmatprep.subr.mxu0 0.0
    %1474 = vmatpush1.xpose.msra.mxu0 0.0
    %1475 = vmatprep.subr.mxu0 0.0
    %1476 = vmatpush1.xpose.msra.mxu0 0.0
    %1477 = vmatprep.subr.mxu0 0.0
    %1478 = vmatpush1.xpose.msra.mxu0 0.0
    %1479 = vmatprep.subr.mxu0 0.0
    %1480 = vmatpush1.xpose.msra.mxu0 0.0
    %1481 = vmatprep.subr.mxu0 0.0
    %1482 = vmatpush1.xpose.msra.mxu0 0.0
    %1483 = vmatprep.subr.mxu0 0.0
    %1484 = vmatpush1.xpose.msra.mxu0 0.0
    %1485 = vmatprep.subr.mxu0 0.0
    %1486 = vmatpush1.xpose.msra.mxu0 0.0
    %1487 = vmatprep.subr.mxu0 0.0
    %1488 = vmatpush1.xpose.msra.mxu0 0.0
    %1489 = vmatprep.subr.mxu0 0.0
    %1490 = vmatpush1.xpose.msra.mxu0 0.0
    %1491 = vmatprep.subr.mxu0 0.0
    %1492 = vmatpush1.xpose.msra.mxu0 0.0
    %1493 = vmatprep.subr.mxu0 0.0
    %1494 = vmatpush1.xpose.msra.mxu0 0.0
    %1495 = vmatprep.subr.mxu0 0.0
    %1496 = vmatpush1.xpose.msra.mxu0 0.0
    %1497 = vmatprep.subr.mxu0 0.0
    %1498 = vmatpush1.xpose.msra.mxu0 0.0
    %1499 = vmatprep.subr.mxu0 0.0
    %1500 = vmatpush1.xpose.msra.mxu0 0.0
    %1501 = vmatprep.subr.mxu0 0.0
    %1502 = vmatpush1.xpose.msra.mxu0 0.0
    %1503 = vmatprep.subr.mxu0 0.0
    %1504 = vmatpush1.xpose.msra.mxu0 0.0
    %1505 = vmatprep.subr.mxu0 0.0
    %1506 = vmatpush1.xpose.msra.mxu0 0.0
    %1507 = vmatprep.subr.mxu0 0.0
    %1508 = vmatpush1.xpose.msra.mxu0 0.0
    %1509 = vmatprep.subr.mxu0 0.0
    %1510 = vmatpush1.xpose.msra.mxu0 0.0
    %1511 = vmatprep.subr.mxu0 0.0
    %1512 = vmatpush1.xpose.msra.mxu0 0.0
    %1513 = vmatprep.subr.mxu0 0.0
    %1514 = vmatpush1.xpose.msra.mxu0 0.0
    %1515 = vmatprep.subr.mxu0 0.0
    %1516 = vmatpush1.xpose.msra.mxu0 0.0
    %1517 = vmatprep.subr.mxu0 0.0
    %1518 = vmatpush1.xpose.msra.mxu0 0.0
    %1519 = vmatprep.subr.mxu0 0.0
    %1520 = vmatpush1.xpose.msra.mxu0 0.0
    %1521 = vmatprep.mubr.f32.mxu0 0.0
    %1522 = vmatmul.mubr.f32.gmra.mrb[0].mxu0 %v1453
    %v1523 = vpop.f32.mrb[0].mxu0
    %v1524 = vadd.f32 0.0, %v1523
    %v1525 = vpop.f32.mrb[0].mxu0
    %1526 = vdwg.mxu0
    %1528 = vrot.lane.b32.xlu0 %v1447, 96
    %v1529 = vpop.permute.xlu0 %1528
    %v1530 = vsel %vm298, %v1447, 0
    %v1532 = vsel %vm298, %v1529, 0
    %1534 = vmatprep.subr.mxu0 0.0
    %1535 = vmatpush1.xpose.msra.mxu0 %v1532
    %1536 = vmatprep.subr.mxu0 0.0
    %1537 = vmatpush1.xpose.msra.mxu0 0.0
    %1538 = vmatprep.subr.mxu0 0.0
    %1539 = vmatpush1.xpose.msra.mxu0 0.0
    %1540 = vmatprep.subr.mxu0 0.0
    %1541 = vmatpush1.xpose.msra.mxu0 0.0
    %1542 = vmatprep.subr.mxu0 0.0
    %1543 = vmatpush1.xpose.msra.mxu0 0.0
    %1544 = vmatprep.subr.mxu0 0.0
    %1545 = vmatpush1.xpose.msra.mxu0 0.0
    %1546 = vmatprep.subr.mxu0 0.0
    %1547 = vmatpush1.xpose.msra.mxu0 0.0
    %1548 = vmatprep.subr.mxu0 0.0
    %1549 = vmatpush1.xpose.msra.mxu0 0.0
    %1550 = vmatprep.subr.mxu0 0.0
    %1551 = vmatpush1.xpose.msra.mxu0 0.0
    %1552 = vmatprep.subr.mxu0 0.0
    %1553 = vmatpush1.xpose.msra.mxu0 0.0
    %1554 = vmatprep.subr.mxu0 0.0
    %1555 = vmatpush1.xpose.msra.mxu0 0.0
    %1556 = vmatprep.subr.mxu0 0.0
    %1557 = vmatpush1.xpose.msra.mxu0 0.0
    %1558 = vmatprep.subr.mxu0 0.0
    %1559 = vmatpush1.xpose.msra.mxu0 0.0
    %1560 = vmatprep.subr.mxu0 0.0
    %1561 = vmatpush1.xpose.msra.mxu0 0.0
    %1562 = vmatprep.subr.mxu0 0.0
    %1563 = vmatpush1.xpose.msra.mxu0 0.0
    %1564 = vmatprep.subr.mxu0 0.0
    %1565 = vmatpush1.xpose.msra.mxu0 0.0
    %1566 = vmatprep.subr.mxu0 0.0
    %1567 = vmatpush1.xpose.msra.mxu0 0.0
    %1568 = vmatprep.subr.mxu0 0.0
    %1569 = vmatpush1.xpose.msra.mxu0 0.0
    %1570 = vmatprep.subr.mxu0 0.0
    %1571 = vmatpush1.xpose.msra.mxu0 0.0
    %1572 = vmatprep.subr.mxu0 0.0
    %1573 = vmatpush1.xpose.msra.mxu0 0.0
    %1574 = vmatprep.subr.mxu0 0.0
    %1575 = vmatpush1.xpose.msra.mxu0 0.0
    %1576 = vmatprep.subr.mxu0 0.0
    %1577 = vmatpush1.xpose.msra.mxu0 0.0
    %1578 = vmatprep.subr.mxu0 0.0
    %1579 = vmatpush1.xpose.msra.mxu0 0.0
    %1580 = vmatprep.subr.mxu0 0.0
    %1581 = vmatpush1.xpose.msra.mxu0 0.0
    %1582 = vmatprep.subr.mxu0 0.0
    %1583 = vmatpush1.xpose.msra.mxu0 0.0
    %1584 = vmatprep.subr.mxu0 0.0
    %1585 = vmatpush1.xpose.msra.mxu0 0.0
    %1586 = vmatprep.subr.mxu0 0.0
    %1587 = vmatpush1.xpose.msra.mxu0 0.0
    %1588 = vmatprep.subr.mxu0 0.0
    %1589 = vmatpush1.xpose.msra.mxu0 0.0
    %1590 = vmatprep.subr.mxu0 0.0
    %1591 = vmatpush1.xpose.msra.mxu0 0.0
    %1592 = vmatprep.subr.mxu0 0.0
    %1593 = vmatpush1.xpose.msra.mxu0 0.0
    %1594 = vmatprep.subr.mxu0 0.0
    %1595 = vmatpush1.xpose.msra.mxu0 0.0
    %1596 = vmatprep.subr.mxu0 0.0
    %1597 = vmatpush1.xpose.msra.mxu0 0.0
    %1598 = vmatprep.mubr.f32.mxu0 0.0
    %1599 = vmatmul.mubr.f32.gmra.mrb[0].mxu0 %v1530
    %v1600 = vpop.f32.mrb[0].mxu0
    %v1601 = vadd.f32 0.0, %v1600
    %v1602 = vpop.f32.mrb[0].mxu0
    %1603 = vdwg.mxu0
    %v1604 = vmul.f32 %v1524, 0.25
    %v1605 = vmul.f32 %v1601, 0.25
    %v1606 = vadd.f32 %v1604, %v455
    %v1607 = vadd.f32 %v1605, %v459
    %v1608 = vsel %vm464, %v1606, -inf
    %1609 = vmax.xlane.f32.xlu0 %v1608
    %v1610 = vpop.xlane.xlu0 %1609
    %v1611 = vsel %vm464, %v1607, -inf
    %1612 = vmax.xlane.f32.xlu0 %v1611
    %v1613 = vpop.xlane.xlu0 %1612
    %v1614 = vsub.f32 %v1606, %v1610
    %v1615 = vsub.f32 %v1607, %v1613
    %v1616 = vmul.f32 %v1614, 1.442695
    %v1617 = vpow.pop %v1616
    %v1618 = vmul.f32 %v1615, 1.442695
    %v1619 = vpow.pop %v1618
    %v1620 = vsel %vm464, %v1617, 0.0
    %1621 = vadd.xlane.f32.xlu0 %v1620
    %v1622 = vpop.xlane.xlu0 %1621
    %v1623 = vsel %vm464, %v1619, 0.0
    %1624 = vadd.xlane.f32.xlu0 %v1623
    %v1625 = vpop.xlane.xlu0 %1624
    %v1626 = vrcp.pop %v1622
    %v1627 = vrcp.pop %v1625
    %v1628 = vmul.f32 %v1617, %v1626
    %v1629 = vmul.f32 %v1619, %v1627
    %1630 = vrot.lane.b32.xlu0 %v1442, 64
    %v1631 = vpop.permute.xlu0 %1630
    %v1634 = vsel %vm464, %v1628, 0
    %1636 = vmatprep.subr.mxu0 0.0
    %1637 = vmatpush1.msra.mxu0 %v1631
    %1638 = vmatprep.subr.mxu0 0.0
    %1639 = vmatpush1.msra.mxu0 0.0
    %1640 = vmatprep.subr.mxu0 0.0
    %1641 = vmatpush1.msra.mxu0 0.0
    %1642 = vmatprep.subr.mxu0 0.0
    %1643 = vmatpush1.msra.mxu0 0.0
    %1644 = vmatprep.subr.mxu0 0.0
    %1645 = vmatpush1.msra.mxu0 0.0
    %1646 = vmatprep.subr.mxu0 0.0
    %1647 = vmatpush1.msra.mxu0 0.0
    %1648 = vmatprep.subr.mxu0 0.0
    %1649 = vmatpush1.msra.mxu0 0.0
    %1650 = vmatprep.subr.mxu0 0.0
    %1651 = vmatpush1.msra.mxu0 0.0
    %1652 = vmatprep.subr.mxu0 0.0
    %1653 = vmatpush1.msra.mxu0 0.0
    %1654 = vmatprep.subr.mxu0 0.0
    %1655 = vmatpush1.msra.mxu0 0.0
    %1656 = vmatprep.subr.mxu0 0.0
    %1657 = vmatpush1.msra.mxu0 0.0
    %1658 = vmatprep.subr.mxu0 0.0
    %1659 = vmatpush1.msra.mxu0 0.0
    %1660 = vmatprep.subr.mxu0 0.0
    %1661 = vmatpush1.msra.mxu0 0.0
    %1662 = vmatprep.subr.mxu0 0.0
    %1663 = vmatpush1.msra.mxu0 0.0
    %1664 = vmatprep.subr.mxu0 0.0
    %1665 = vmatpush1.msra.mxu0 0.0
    %1666 = vmatprep.subr.mxu0 0.0
    %1667 = vmatpush1.msra.mxu0 0.0
    %1668 = vmatprep.subr.mxu0 0.0
    %1669 = vmatpush1.msra.mxu0 0.0
    %1670 = vmatprep.subr.mxu0 0.0
    %1671 = vmatpush1.msra.mxu0 0.0
    %1672 = vmatprep.subr.mxu0 0.0
    %1673 = vmatpush1.msra.mxu0 0.0
    %1674 = vmatprep.subr.mxu0 0.0
    %1675 = vmatpush1.msra.mxu0 0.0
    %1676 = vmatprep.subr.mxu0 0.0
    %1677 = vmatpush1.msra.mxu0 0.0
    %1678 = vmatprep.subr.mxu0 0.0
    %1679 = vmatpush1.msra.mxu0 0.0
    %1680 = vmatprep.subr.mxu0 0.0
    %1681 = vmatpush1.msra.mxu0 0.0
    %1682 = vmatprep.subr.mxu0 0.0
    %1683 = vmatpush1.msra.mxu0 0.0
    %1684 = vmatprep.subr.mxu0 0.0
    %1685 = vmatpush1.msra.mxu0 0.0
    %1686 = vmatprep.subr.mxu0 0.0
    %1687 = vmatpush1.msra.mxu0 0.0
    %1688 = vmatprep.subr.mxu0 0.0
    %1689 = vmatpush1.msra.mxu0 0.0
    %1690 = vmatprep.subr.mxu0 0.0
    %1691 = vmatpush1.msra.mxu0 0.0
    %1692 = vmatprep.subr.mxu0 0.0
    %1693 = vmatpush1.msra.mxu0 0.0
    %1694 = vmatprep.subr.mxu0 0.0
    %1695 = vmatpush1.msra.mxu0 0.0
    %1696 = vmatprep.subr.mxu0 0.0
    %1697 = vmatpush1.msra.mxu0 0.0
    %1698 = vmatprep.subr.mxu0 0.0
    %1699 = vmatpush1.msra.mxu0 0.0
    %1700 = vmatprep.mubr.f32.mxu0 0.0
    %1701 = vmatmul.mubr.f32.gmra.mrb[0].mxu0 %v1634
    %v1702 = vpop.f32.mrb[0].mxu0
    %v1703 = vadd.f32 0.0, %v1702
    %v1704 = vpop.f32.mrb[0].mxu0
    %1705 = vdwg.mxu0
    %1706 = vrot.lane.b32.xlu0 %v1447, 64
    %v1707 = vpop.permute.xlu0 %1706
    %v1710 = vsel %vm464, %v1629, 0
    %1712 = vmatprep.subr.mxu0 0.0
    %1713 = vmatpush1.msra.mxu0 %v1707
    %1714 = vmatprep.subr.mxu0 0.0
    %1715 = vmatpush1.msra.mxu0 0.0
    %1716 = vmatprep.subr.mxu0 0.0
    %1717 = vmatpush1.msra.mxu0 0.0
    %1718 = vmatprep.subr.mxu0 0.0
    %1719 = vmatpush1.msra.mxu0 0.0
    %1720 = vmatprep.subr.mxu0 0.0
    %1721 = vmatpush1.msra.mxu0 0.0
    %1722 = vmatprep.subr.mxu0 0.0
    %1723 = vmatpush1.msra.mxu0 0.0
    %1724 = vmatprep.subr.mxu0 0.0
    %1725 = vmatpush1.msra.mxu0 0.0
    %1726 = vmatprep.subr.mxu0 0.0
    %1727 = vmatpush1.msra.mxu0 0.0
    %1728 = vmatprep.subr.mxu0 0.0
    %1729 = vmatpush1.msra.mxu0 0.0
    %1730 = vmatprep.subr.mxu0 0.0
    %1731 = vmatpush1.msra.mxu0 0.0
    %1732 = vmatprep.subr.mxu0 0.0
    %1733 = vmatpush1.msra.mxu0 0.0
    %1734 = vmatprep.subr.mxu0 0.0
    %1735 = vmatpush1.msra.mxu0 0.0
    %1736 = vmatprep.subr.mxu0 0.0
    %1737 = vmatpush1.msra.mxu0 0.0
    %1738 = vmatprep.subr.mxu0 0.0
    %1739 = vmatpush1.msra.mxu0 0.0
    %1740 = vmatprep.subr.mxu0 0.0
    %1741 = vmatpush1.msra.mxu0 0.0
    %1742 = vmatprep.subr.mxu0 0.0
    %1743 = vmatpush1.msra.mxu0 0.0
    %1744 = vmatprep.subr.mxu0 0.0
    %1745 = vmatpush1.msra.mxu0 0.0
    %1746 = vmatprep.subr.mxu0 0.0
    %1747 = vmatpush1.msra.mxu0 0.0
    %1748 = vmatprep.subr.mxu0 0.0
    %1749 = vmatpush1.msra.mxu0 0.0
    %1750 = vmatprep.subr.mxu0 0.0
    %1751 = vmatpush1.msra.mxu0 0.0
    %1752 = vmatprep.subr.mxu0 0.0
    %1753 = vmatpush1.msra.mxu0 0.0
    %1754 = vmatprep.subr.mxu0 0.0
    %1755 = vmatpush1.msra.mxu0 0.0
    %1756 = vmatprep.subr.mxu0 0.0
    %1757 = vmatpush1.msra.mxu0 0.0
    %1758 = vmatprep.subr.mxu0 0.0
    %1759 = vmatpush1.msra.mxu0 0.0
    %1760 = vmatprep.subr.mxu0 0.0
    %1761 = vmatpush1.msra.mxu0 0.0
    %1762 = vmatprep.subr.mxu0 0.0
    %1763 = vmatpush1.msra.mxu0 0.0
    %1764 = vmatprep.subr.mxu0 0.0
    %1765 = vmatpush1.msra.mxu0 0.0
    %1766 = vmatprep.subr.mxu0 0.0
    %1767 = vmatpush1.msra.mxu0 0.0
    %1768 = vmatprep.subr.mxu0 0.0
    %1769 = vmatpush1.msra.mxu0 0.0
    %1770 = vmatprep.subr.mxu0 0.0
    %1771 = vmatpush1.msra.mxu0 0.0
    %1772 = vmatprep.subr.mxu0 0.0
    %1773 = vmatpush1.msra.mxu0 0.0
    %1774 = vmatprep.subr.mxu0 0.0
    %1775 = vmatpush1.msra.mxu0 0.0
    %1776 = vmatprep.mubr.f32.mxu0 0.0
    %1777 = vmatmul.mubr.f32.gmra.mrb[0].mxu0 %v1710
    %v1778 = vpop.f32.mrb[0].mxu0
    %v1779 = vadd.f32 0.0, %v1778
    %v1780 = vpop.f32.mrb[0].mxu0
    %1781 = vdwg.mxu0
    %1782 = vrot.lane.b32.xlu0 %v1442, 112
    %v1783 = vpop.permute.xlu0 %1782
    %1784 = vrot.lane.b32.xlu0 %v1442, 80
    %v1785 = vpop.permute.xlu0 %1784
    %v1786 = vsel %vm298, %v1783, 0
    %v1788 = vsel %vm298, %v1785, 0
    %1790 = vmatprep.subr.mxu0 0.0
    %1791 = vmatpush1.xpose.msra.mxu0 %v1788
    %1792 = vmatprep.subr.mxu0 0.0
    %1793 = vmatpush1.xpose.msra.mxu0 0.0
    %1794 = vmatprep.subr.mxu0 0.0
    %1795 = vmatpush1.xpose.msra.mxu0 0.0
    %1796 = vmatprep.subr.mxu0 0.0
    %1797 = vmatpush1.xpose.msra.mxu0 0.0
    %1798 = vmatprep.subr.mxu0 0.0
    %1799 = vmatpush1.xpose.msra.mxu0 0.0
    %1800 = vmatprep.subr.mxu0 0.0
    %1801 = vmatpush1.xpose.msra.mxu0 0.0
    %1802 = vmatprep.subr.mxu0 0.0
    %1803 = vmatpush1.xpose.msra.mxu0 0.0
    %1804 = vmatprep.subr.mxu0 0.0
    %1805 = vmatpush1.xpose.msra.mxu0 0.0
    %1806 = vmatprep.subr.mxu0 0.0
    %1807 = vmatpush1.xpose.msra.mxu0 0.0
    %1808 = vmatprep.subr.mxu0 0.0
    %1809 = vmatpush1.xpose.msra.mxu0 0.0
    %1810 = vmatprep.subr.mxu0 0.0
    %1811 = vmatpush1.xpose.msra.mxu0 0.0
    %1812 = vmatprep.subr.mxu0 0.0
    %1813 = vmatpush1.xpose.msra.mxu0 0.0
    %1814 = vmatprep.subr.mxu0 0.0
    %1815 = vmatpush1.xpose.msra.mxu0 0.0
    %1816 = vmatprep.subr.mxu0 0.0
    %1817 = vmatpush1.xpose.msra.mxu0 0.0
    %1818 = vmatprep.subr.mxu0 0.0
    %1819 = vmatpush1.xpose.msra.mxu0 0.0
    %1820 = vmatprep.subr.mxu0 0.0
    %1821 = vmatpush1.xpose.msra.mxu0 0.0
    %1822 = vmatprep.subr.mxu0 0.0
    %1823 = vmatpush1.xpose.msra.mxu0 0.0
    %1824 = vmatprep.subr.mxu0 0.0
    %1825 = vmatpush1.xpose.msra.mxu0 0.0
    %1826 = vmatprep.subr.mxu0 0.0
    %1827 = vmatpush1.xpose.msra.mxu0 0.0
    %1828 = vmatprep.subr.mxu0 0.0
    %1829 = vmatpush1.xpose.msra.mxu0 0.0
    %1830 = vmatprep.subr.mxu0 0.0
    %1831 = vmatpush1.xpose.msra.mxu0 0.0
    %1832 = vmatprep.subr.mxu0 0.0
    %1833 = vmatpush1.xpose.msra.mxu0 0.0
    %1834 = vmatprep.subr.mxu0 0.0
    %1835 = vmatpush1.xpose.msra.mxu0 0.0
    %1836 = vmatprep.subr.mxu0 0.0
    %1837 = vmatpush1.xpose.msra.mxu0 0.0
    %1838 = vmatprep.subr.mxu0 0.0
    %1839 = vmatpush1.xpose.msra.mxu0 0.0
    %1840 = vmatprep.subr.mxu0 0.0
    %1841 = vmatpush1.xpose.msra.mxu0 0.0
    %1842 = vmatprep.subr.mxu0 0.0
    %1843 = vmatpush1.xpose.msra.mxu0 0.0
    %1844 = vmatprep.subr.mxu0 0.0
    %1845 = vmatpush1.xpose.msra.mxu0 0.0
    %1846 = vmatprep.subr.mxu0 0.0
    %1847 = vmatpush1.xpose.msra.mxu0 0.0
    %1848 = vmatprep.subr.mxu0 0.0
    %1849 = vmatpush1.xpose.msra.mxu0 0.0
    %1850 = vmatprep.subr.mxu0 0.0
    %1851 = vmatpush1.xpose.msra.mxu0 0.0
    %1852 = vmatprep.subr.mxu0 0.0
    %1853 = vmatpush1.xpose.msra.mxu0 0.0
    %1854 = vmatprep.mubr.f32.mxu0 0.0
    %1855 = vmatmul.mubr.f32.gmra.mrb[0].mxu0 %v1786
    %v1856 = vpop.f32.mrb[0].mxu0
    %v1857 = vadd.f32 0.0, %v1856
    %v1858 = vpop.f32.mrb[0].mxu0
    %1859 = vdwg.mxu0
    %1860 = vrot.lane.b32.xlu0 %v1447, 112
    %v1861 = vpop.permute.xlu0 %1860
    %1862 = vrot.lane.b32.xlu0 %v1447, 80
    %v1863 = vpop.permute.xlu0 %1862
    %v1864 = vsel %vm298, %v1861, 0
    %v1866 = vsel %vm298, %v1863, 0
    %1868 = vmatprep.subr.mxu0 0.0
    %1869 = vmatpush1.xpose.msra.mxu0 %v1866
    %1870 = vmatprep.subr.mxu0 0.0
    %1871 = vmatpush1.xpose.msra.mxu0 0.0
    %1872 = vmatprep.subr.mxu0 0.0
    %1873 = vmatpush1.xpose.msra.mxu0 0.0
    %1874 = vmatprep.subr.mxu0 0.0
    %1875 = vmatpush1.xpose.msra.mxu0 0.0
    %1876 = vmatprep.subr.mxu0 0.0
    %1877 = vmatpush1.xpose.msra.mxu0 0.0
    %1878 = vmatprep.subr.mxu0 0.0
    %1879 = vmatpush1.xpose.msra.mxu0 0.0
    %1880 = vmatprep.subr.mxu0 0.0
    %1881 = vmatpush1.xpose.msra.mxu0 0.0
    %1882 = vmatprep.subr.mxu0 0.0
    %1883 = vmatpush1.xpose.msra.mxu0 0.0
    %1884 = vmatprep.subr.mxu0 0.0
    %1885 = vmatpush1.xpose.msra.mxu0 0.0
    %1886 = vmatprep.subr.mxu0 0.0
    %1887 = vmatpush1.xpose.msra.mxu0 0.0
    %1888 = vmatprep.subr.mxu0 0.0
    %1889 = vmatpush1.xpose.msra.mxu0 0.0
    %1890 = vmatprep.subr.mxu0 0.0
    %1891 = vmatpush1.xpose.msra.mxu0 0.0
    %1892 = vmatprep.subr.mxu0 0.0
    %1893 = vmatpush1.xpose.msra.mxu0 0.0
    %1894 = vmatprep.subr.mxu0 0.0
    %1895 = vmatpush1.xpose.msra.mxu0 0.0
    %1896 = vmatprep.subr.mxu0 0.0
    %1897 = vmatpush1.xpose.msra.mxu0 0.0
    %1898 = vmatprep.subr.mxu0 0.0
    %1899 = vmatpush1.xpose.msra.mxu0 0.0
    %1900 = vmatprep.subr.mxu0 0.0
    %1901 = vmatpush1.xpose.msra.mxu0 0.0
    %1902 = vmatprep.subr.mxu0 0.0
    %1903 = vmatpush1.xpose.msra.mxu0 0.0
    %1904 = vmatprep.subr.mxu0 0.0
    %1905 = vmatpush1.xpose.msra.mxu0 0.0
    %1906 = vmatprep.subr.mxu0 0.0
    %1907 = vmatpush1.xpose.msra.mxu0 0.0
    %1908 = vmatprep.subr.mxu0 0.0
    %1909 = vmatpush1.xpose.msra.mxu0 0.0
    %1910 = vmatprep.subr.mxu0 0.0
    %1911 = vmatpush1.xpose.msra.mxu0 0.0
    %1912 = vmatprep.subr.mxu0 0.0
    %1913 = vmatpush1.xpose.msra.mxu0 0.0
    %1914 = vmatprep.subr.mxu0 0.0
    %1915 = vmatpush1.xpose.msra.mxu0 0.0
    %1916 = vmatprep.subr.mxu0 0.0
    %1917 = vmatpush1.xpose.msra.mxu0 0.0
    %1918 = vmatprep.subr.mxu0 0.0
    %1919 = vmatpush1.xpose.msra.mxu0 0.0
    %1920 = vmatprep.subr.mxu0 0.0
    %1921 = vmatpush1.xpose.msra.mxu0 0.0
    %1922 = vmatprep.subr.mxu0 0.0
    %1923 = vmatpush1.xpose.msra.mxu0 0.0
    %1924 = vmatprep.subr.mxu0 0.0
    %1925 = vmatpush1.xpose.msra.mxu0 0.0
    %1926 = vmatprep.subr.mxu0 0.0
    %1927 = vmatpush1.xpose.msra.mxu0 0.0
    %1928 = vmatprep.subr.mxu0 0.0
    %1929 = vmatpush1.xpose.msra.mxu0 0.0
    %1930 = vmatprep.subr.mxu0 0.0
    %1931 = vmatpush1.xpose.msra.mxu0 0.0
    %1932 = vmatprep.mubr.f32.mxu0 0.0
    %1933 = vmatmul.mubr.f32.gmra.mrb[0].mxu0 %v1864
    %v1934 = vpop.f32.mrb[0].mxu0
    %v1935 = vadd.f32 0.0, %v1934
    %v1936 = vpop.f32.mrb[0].mxu0
    %1937 = vdwg.mxu0
    %v1938 = vmul.f32 %v1857, 0.25
    %v1939 = vmul.f32 %v1935, 0.25
    %v1940 = vadd.f32 %v1938, %v455
    %v1941 = vadd.f32 %v1939, %v459
    %v1942 = vsel %vm464, %v1940, -inf
    %1943 = vmax.xlane.f32.xlu0 %v1942
    %v1944 = vpop.xlane.xlu0 %1943
    %v1945 = vsel %vm464, %v1941, -inf
    %1946 = vmax.xlane.f32.xlu0 %v1945
    %v1947 = vpop.xlane.xlu0 %1946
    %v1948 = vsub.f32 %v1940, %v1944
    %v1949 = vsub.f32 %v1941, %v1947
    %v1950 = vmul.f32 %v1948, 1.442695
    %v1951 = vpow.pop %v1950
    %v1952 = vmul.f32 %v1949, 1.442695
    %v1953 = vpow.pop %v1952
    %v1954 = vsel %vm464, %v1951, 0.0
    %1955 = vadd.xlane.f32.xlu0 %v1954
    %v1956 = vpop.xlane.xlu0 %1955
    %v1957 = vsel %vm464, %v1953, 0.0
    %1958 = vadd.xlane.f32.xlu0 %v1957
    %v1959 = vpop.xlane.xlu0 %1958
    %v1960 = vrcp.pop %v1956
    %v1961 = vrcp.pop %v1959
    %v1962 = vmul.f32 %v1951, %v1960
    %v1963 = vmul.f32 %v1953, %v1961
    %1964 = vrot.lane.b32.xlu0 %v1442, 48
    %v1965 = vpop.permute.xlu0 %1964
    %v1968 = vsel %vm464, %v1962, 0
    %1970 = vmatprep.subr.mxu0 0.0
    %1971 = vmatpush1.msra.mxu0 %v1965
    %1972 = vmatprep.subr.mxu0 0.0
    %1973 = vmatpush1.msra.mxu0 0.0
    %1974 = vmatprep.subr.mxu0 0.0
    %1975 = vmatpush1.msra.mxu0 0.0
    %1976 = vmatprep.subr.mxu0 0.0
    %1977 = vmatpush1.msra.mxu0 0.0
    %1978 = vmatprep.subr.mxu0 0.0
    %1979 = vmatpush1.msra.mxu0 0.0
    %1980 = vmatprep.subr.mxu0 0.0
    %1981 = vmatpush1.msra.mxu0 0.0
    %1982 = vmatprep.subr.mxu0 0.0
    %1983 = vmatpush1.msra.mxu0 0.0
    %1984 = vmatprep.subr.mxu0 0.0
    %1985 = vmatpush1.msra.mxu0 0.0
    %1986 = vmatprep.subr.mxu0 0.0
    %1987 = vmatpush1.msra.mxu0 0.0
    %1988 = vmatprep.subr.mxu0 0.0
    %1989 = vmatpush1.msra.mxu0 0.0
    %1990 = vmatprep.subr.mxu0 0.0
    %1991 = vmatpush1.msra.mxu0 0.0
    %1992 = vmatprep.subr.mxu0 0.0
    %1993 = vmatpush1.msra.mxu0 0.0
    %1994 = vmatprep.subr.mxu0 0.0
    %1995 = vmatpush1.msra.mxu0 0.0
    %1996 = vmatprep.subr.mxu0 0.0
    %1997 = vmatpush1.msra.mxu0 0.0
    %1998 = vmatprep.subr.mxu0 0.0
    %1999 = vmatpush1.msra.mxu0 0.0
    %2000 = vmatprep.subr.mxu0 0.0
    %2001 = vmatpush1.msra.mxu0 0.0
    %2002 = vmatprep.subr.mxu0 0.0
    %2003 = vmatpush1.msra.mxu0 0.0
    %2004 = vmatprep.subr.mxu0 0.0
    %2005 = vmatpush1.msra.mxu0 0.0
    %2006 = vmatprep.subr.mxu0 0.0
    %2007 = vmatpush1.msra.mxu0 0.0
    %2008 = vmatprep.subr.mxu0 0.0
    %2009 = vmatpush1.msra.mxu0 0.0
    %2010 = vmatprep.subr.mxu0 0.0
    %2011 = vmatpush1.msra.mxu0 0.0
    %2012 = vmatprep.subr.mxu0 0.0
    %2013 = vmatpush1.msra.mxu0 0.0
    %2014 = vmatprep.subr.mxu0 0.0
    %2015 = vmatpush1.msra.mxu0 0.0
    %2016 = vmatprep.subr.mxu0 0.0
    %2017 = vmatpush1.msra.mxu0 0.0
    %2018 = vmatprep.subr.mxu0 0.0
    %2019 = vmatpush1.msra.mxu0 0.0
    %2020 = vmatprep.subr.mxu0 0.0
    %2021 = vmatpush1.msra.mxu0 0.0
    %2022 = vmatprep.subr.mxu0 0.0
    %2023 = vmatpush1.msra.mxu0 0.0
    %2024 = vmatprep.subr.mxu0 0.0
    %2025 = vmatpush1.msra.mxu0 0.0
    %2026 = vmatprep.subr.mxu0 0.0
    %2027 = vmatpush1.msra.mxu0 0.0
    %2028 = vmatprep.subr.mxu0 0.0
    %2029 = vmatpush1.msra.mxu0 0.0
    %2030 = vmatprep.subr.mxu0 0.0
    %2031 = vmatpush1.msra.mxu0 0.0
    %2032 = vmatprep.subr.mxu0 0.0
    %2033 = vmatpush1.msra.mxu0 0.0
    %2034 = vmatprep.mubr.f32.mxu0 0.0
    %2035 = vmatmul.mubr.f32.gmra.mrb[0].mxu0 %v1968
    %v2036 = vpop.f32.mrb[0].mxu0
    %v2037 = vadd.f32 0.0, %v2036
    %v2038 = vpop.f32.mrb[0].mxu0
    %2039 = vdwg.mxu0
    %2040 = vrot.lane.b32.xlu0 %v1447, 48
    %v2041 = vpop.permute.xlu0 %2040
    %v2044 = vsel %vm464, %v1963, 0
    %2046 = vmatprep.subr.mxu0 0.0
    %2047 = vmatpush1.msra.mxu0 %v2041
    %2048 = vmatprep.subr.mxu0 0.0
    %2049 = vmatpush1.msra.mxu0 0.0
    %2050 = vmatprep.subr.mxu0 0.0
    %2051 = vmatpush1.msra.mxu0 0.0
    %2052 = vmatprep.subr.mxu0 0.0
    %2053 = vmatpush1.msra.mxu0 0.0
    %2054 = vmatprep.subr.mxu0 0.0
    %2055 = vmatpush1.msra.mxu0 0.0
    %2056 = vmatprep.subr.mxu0 0.0
    %2057 = vmatpush1.msra.mxu0 0.0
    %2058 = vmatprep.subr.mxu0 0.0
    %2059 = vmatpush1.msra.mxu0 0.0
    %2060 = vmatprep.subr.mxu0 0.0
    %2061 = vmatpush1.msra.mxu0 0.0
    %2062 = vmatprep.subr.mxu0 0.0
    %2063 = vmatpush1.msra.mxu0 0.0
    %2064 = vmatprep.subr.mxu0 0.0
    %2065 = vmatpush1.msra.mxu0 0.0
    %2066 = vmatprep.subr.mxu0 0.0
    %2067 = vmatpush1.msra.mxu0 0.0
    %2068 = vmatprep.subr.mxu0 0.0
    %2069 = vmatpush1.msra.mxu0 0.0
    %2070 = vmatprep.subr.mxu0 0.0
    %2071 = vmatpush1.msra.mxu0 0.0
    %2072 = vmatprep.subr.mxu0 0.0
    %2073 = vmatpush1.msra.mxu0 0.0
    %2074 = vmatprep.subr.mxu0 0.0
    %2075 = vmatpush1.msra.mxu0 0.0
    %2076 = vmatprep.subr.mxu0 0.0
    %2077 = vmatpush1.msra.mxu0 0.0
    %2078 = vmatprep.subr.mxu0 0.0
    %2079 = vmatpush1.msra.mxu0 0.0
    %2080 = vmatprep.subr.mxu0 0.0
    %2081 = vmatpush1.msra.mxu0 0.0
    %2082 = vmatprep.subr.mxu0 0.0
    %2083 = vmatpush1.msra.mxu0 0.0
    %2084 = vmatprep.subr.mxu0 0.0
    %2085 = vmatpush1.msra.mxu0 0.0
    %2086 = vmatprep.subr.mxu0 0.0
    %2087 = vmatpush1.msra.mxu0 0.0
    %2088 = vmatprep.subr.mxu0 0.0
    %2089 = vmatpush1.msra.mxu0 0.0
    %2090 = vmatprep.subr.mxu0 0.0
    %2091 = vmatpush1.msra.mxu0 0.0
    %2092 = vmatprep.subr.mxu0 0.0
    %2093 = vmatpush1.msra.mxu0 0.0
    %2094 = vmatprep.subr.mxu0 0.0
    %2095 = vmatpush1.msra.mxu0 0.0
    %2096 = vmatprep.subr.mxu0 0.0
    %2097 = vmatpush1.msra.mxu0 0.0
    %2098 = vmatprep.subr.mxu0 0.0
    %2099 = vmatpush1.msra.mxu0 0.0
    %2100 = vmatprep.subr.mxu0 0.0
    %2101 = vmatpush1.msra.mxu0 0.0
    %2102 = vmatprep.subr.mxu0 0.0
    %2103 = vmatpush1.msra.mxu0 0.0
    %2104 = vmatprep.subr.mxu0 0.0
    %2105 = vmatpush1.msra.mxu0 0.0
    %2106 = vmatprep.subr.mxu0 0.0
    %2107 = vmatpush1.msra.mxu0 0.0
    %2108 = vmatprep.subr.mxu0 0.0
    %2109 = vmatpush1.msra.mxu0 0.0
    %2110 = vmatprep.mubr.f32.mxu0 0.0
    %2111 = vmatmul.mubr.f32.gmra.mrb[0].mxu0 %v2044
    %v2112 = vpop.f32.mrb[0].mxu0
    %v2113 = vadd.f32 0.0, %v2112
    %v2114 = vpop.f32.mrb[0].mxu0
    %2115 = vdwg.mxu0
    %2118 = vrot.lane.b32.xlu0 %v2037, 16
    %v2119 = vpop.permute.xlu0 %2118
    %2120 = vrot.lane.b32.xlu0 %v2113, 16
    %v2121 = vpop.permute.xlu0 %2120
    %v2124 = vsel %vm298, %v1703, %v2119
    %v2125 = vsel %vm298, %v1779, %v2121
    %v2126 = vld [vmem:[#allocation2 + $0x16b] sm:$0xff]
    %v2127 = vld [vmem:[#allocation2 + $0x173] sm:$0xff]
    %v2128 = vld [vmem:[#allocation2 + $0x17b] sm:$0xff]
    %v2129 = vld [vmem:[#allocation2 + $0x183] sm:$0xff]
    %v2130 = vld [vmem:[#allocation2 + $0x18b] sm:$0x1]
    %v2131 = vlaneseq
    %v2132 = vshrl.u32 %v2131, 7
    %v2133 = vsub.s32 0, %v2132
    %v2134 = vrot.slane %v2130, %v2133
    %v2136 = vsel %vm139, %v2124, 0
    %v2139 = vsel %vm139, %v2125, 0
    %2141 = vmatprep.subr.mxu0 0.0
    %2142 = vmatpush1.msra.mxu0 %v2126
    %2143 = vmatprep.subr.mxu0 0.0
    %2144 = vmatpush1.msra.mxu0 %v2127
    %2145 = vmatprep.subr.mxu0 0.0
    %2146 = vmatpush1.msra.mxu0 %v2128
    %2147 = vmatprep.subr.mxu0 0.0
    %2148 = vmatpush1.msra.mxu0 %v2129
    %2149 = vmatprep.subr.mxu0 0.0
    %2150 = vmatpush1.msra.mxu0 0.0
    %2151 = vmatprep.subr.mxu0 0.0
    %2152 = vmatpush1.msra.mxu0 0.0
    %2153 = vmatprep.subr.mxu0 0.0
    %2154 = vmatpush1.msra.mxu0 0.0
    %2155 = vmatprep.subr.mxu0 0.0
    %2156 = vmatpush1.msra.mxu0 0.0
    %2157 = vmatprep.subr.mxu0 0.0
    %2158 = vmatpush1.msra.mxu0 0.0
    %2159 = vmatprep.subr.mxu0 0.0
    %2160 = vmatpush1.msra.mxu0 0.0
    %2161 = vmatprep.subr.mxu0 0.0
    %2162 = vmatpush1.msra.mxu0 0.0
    %2163 = vmatprep.subr.mxu0 0.0
    %2164 = vmatpush1.msra.mxu0 0.0
    %2165 = vmatprep.subr.mxu0 0.0
    %2166 = vmatpush1.msra.mxu0 0.0
    %2167 = vmatprep.subr.mxu0 0.0
    %2168 = vmatpush1.msra.mxu0 0.0
    %2169 = vmatprep.subr.mxu0 0.0
    %2170 = vmatpush1.msra.mxu0 0.0
    %2171 = vmatprep.subr.mxu0 0.0
    %2172 = vmatpush1.msra.mxu0 0.0
    %2173 = vmatprep.subr.mxu0 0.0
    %2174 = vmatpush1.msra.mxu0 0.0
    %2175 = vmatprep.subr.mxu0 0.0
    %2176 = vmatpush1.msra.mxu0 0.0
    %2177 = vmatprep.subr.mxu0 0.0
    %2178 = vmatpush1.msra.mxu0 0.0
    %2179 = vmatprep.subr.mxu0 0.0
    %2180 = vmatpush1.msra.mxu0 0.0
    %2181 = vmatprep.subr.mxu0 0.0
    %2182 = vmatpush1.msra.mxu0 0.0
    %2183 = vmatprep.subr.mxu0 0.0
    %2184 = vmatpush1.msra.mxu0 0.0
    %2185 = vmatprep.subr.mxu0 0.0
    %2186 = vmatpush1.msra.mxu0 0.0
    %2187 = vmatprep.subr.mxu0 0.0
    %2188 = vmatpush1.msra.mxu0 0.0
    %2189 = vmatprep.subr.mxu0 0.0
    %2190 = vmatpush1.msra.mxu0 0.0
    %2191 = vmatprep.subr.mxu0 0.0
    %2192 = vmatpush1.msra.mxu0 0.0
    %2193 = vmatprep.subr.mxu0 0.0
    %2194 = vmatpush1.msra.mxu0 0.0
    %2195 = vmatprep.subr.mxu0 0.0
    %2196 = vmatpush1.msra.mxu0 0.0
    %2197 = vmatprep.subr.mxu0 0.0
    %2198 = vmatpush1.msra.mxu0 0.0
    %2199 = vmatprep.subr.mxu0 0.0
    %2200 = vmatpush1.msra.mxu0 0.0
    %2201 = vmatprep.subr.mxu0 0.0
    %2202 = vmatpush1.msra.mxu0 0.0
    %2203 = vmatprep.subr.mxu0 0.0
    %2204 = vmatpush1.msra.mxu0 0.0
    %2205 = vmatprep.mubr.f32.mxu0 0.0
    %2206 = vmatmul.mubr.f32.gmra.mrb[0].mxu0 %v2136
    %v2207 = vpop.f32.mrb[0].mxu0
    %v2208 = vadd.f32 %v2134, %v2207
    %v2209 = vpop.f32.mrb[0].mxu0
    %2210 = vmatprep.mubr.f32.mxu0 0.0
    %2211 = vmatmul.mubr.f32.gmra.mrb[0].mxu0 %v2139
    %v2212 = vpop.f32.mrb[0].mxu0
    %v2213 = vadd.f32 %v2134, %v2212
    %v2214 = vpop.f32.mrb[0].mxu0
    %2215 = vdwg.mxu0
    %v2216 = vadd.f32 %v1358, %v2208
    %v2217 = vadd.f32 %v1359, %v2213
    %v2218 = vld [vmem:[#allocation2 + $0x18c] sm:$0x1]
    %v2219 = vld [vmem:[#allocation2 + $0x18d] sm:$0x1]
    %v2220 = vsel %vm139, %v2216, 0.0
    %2221 = vadd.xlane.f32.xlu0 %v2220
    %v2222 = vpop.xlane.xlu0 %2221
    %v2223 = vsel %vm139, %v2217, 0.0
    %2224 = vadd.xlane.f32.xlu0 %v2223
    %v2225 = vpop.xlane.xlu0 %2224
    %v2226 = vmul.f32 %v2222, %v146
    %v2227 = vmul.f32 %v2225, %v146
    %v2228 = vsub.f32 %v2216, %v2226
    %v2229 = vsub.f32 %v2217, %v2227
    %v2230 = vmul.f32 %v2228, %v2228
    %v2231 = vmul.f32 %v2229, %v2229
    %v2232 = vsel %vm139, %v2230, 0.0
    %2233 = vadd.xlane.f32.xlu0 %v2232
    %v2234 = vpop.xlane.xlu0 %2233
    %v2235 = vsel %vm139, %v2231, 0.0
    %2236 = vadd.xlane.f32.xlu0 %v2235
    %v2237 = vpop.xlane.xlu0 %2236
    %v2238 = vmul.f32 %v2234, %v146
    %v2239 = vmul.f32 %v2237, %v146
    %v2240 = vadd.f32 %v2238, 1e-12
    %v2241 = vadd.f32 %v2239, 1e-12
    %v2242 = vrsqrt.pop %v2240
    %v2243 = vrsqrt.pop %v2241
    %v2244 = vmul.f32 %v2228, %v2242
    %v2245 = vmul.f32 %v2229, %v2243
    %v2246 = vlaneseq
    %v2247 = vshrl.u32 %v2246, 7
    %v2248 = vsub.s32 0, %v2247
    %v2249 = vrot.slane %v2218, %v2248
    %v2250 = vmul.f32 %v2244, %v2249
    %v2251 = vmul.f32 %v2245, %v2249
    %v2252 = vlaneseq
    %v2253 = vshrl.u32 %v2252, 7
    %v2254 = vsub.s32 0, %v2253
    %v2255 = vrot.slane %v2219, %v2254
    %v2256 = vadd.f32 %v2250, %v2255
    %v2257 = vadd.f32 %v2251, %v2255
    %v2258 = vld [vmem:[#allocation2 + $0x18e] sm:$0xff]
    %v2259 = vld [vmem:[#allocation2 + $0x196] sm:$0xff]
    %v2260 = vld [vmem:[#allocation2 + $0x19e] sm:$0xff]
    %v2261 = vld [vmem:[#allocation2 + $0x1a6] sm:$0xff]
    %v2262 = vld [vmem:[#allocation2 + $0x1ae] sm:$0x1]
    %v2263 = vlaneseq
    %v2264 = vshrl.u32 %v2263, 7
    %v2265 = vsub.s32 0, %v2264
    %v2266 = vrot.slane %v2262, %v2265
    %v2268 = vsel %vm139, %v2256, 0
    %v2271 = vsel %vm139, %v2257, 0
    %2273 = vmatprep.subr.mxu0 0.0
    %2274 = vmatpush1.msra.mxu0 %v2258
    %2275 = vmatprep.subr.mxu0 0.0
    %2276 = vmatpush1.msra.mxu0 %v2259
    %2277 = vmatprep.subr.mxu0 0.0
    %2278 = vmatpush1.msra.mxu0 %v2260
    %2279 = vmatprep.subr.mxu0 0.0
    %2280 = vmatpush1.msra.mxu0 %v2261
    %2281 = vmatprep.subr.mxu0 0.0
    %2282 = vmatpush1.msra.mxu0 0.0
    %2283 = vmatprep.subr.mxu0 0.0
    %2284 = vmatpush1.msra.mxu0 0.0
    %2285 = vmatprep.subr.mxu0 0.0
    %2286 = vmatpush1.msra.mxu0 0.0
    %2287 = vmatprep.subr.mxu0 0.0
    %2288 = vmatpush1.msra.mxu0 0.0
    %2289 = vmatprep.subr.mxu0 0.0
    %2290 = vmatpush1.msra.mxu0 0.0
    %2291 = vmatprep.subr.mxu0 0.0
    %2292 = vmatpush1.msra.mxu0 0.0
    %2293 = vmatprep.subr.mxu0 0.0
    %2294 = vmatpush1.msra.mxu0 0.0
    %2295 = vmatprep.subr.mxu0 0.0
    %2296 = vmatpush1.msra.mxu0 0.0
    %2297 = vmatprep.subr.mxu0 0.0
    %2298 = vmatpush1.msra.mxu0 0.0
    %2299 = vmatprep.subr.mxu0 0.0
    %2300 = vmatpush1.msra.mxu0 0.0
    %2301 = vmatprep.subr.mxu0 0.0
    %2302 = vmatpush1.msra.mxu0 0.0
    %2303 = vmatprep.subr.mxu0 0.0
    %2304 = vmatpush1.msra.mxu0 0.0
    %2305 = vmatprep.subr.mxu0 0.0
    %2306 = vmatpush1.msra.mxu0 0.0
    %2307 = vmatprep.subr.mxu0 0.0
    %2308 = vmatpush1.msra.mxu0 0.0
    %2309 = vmatprep.subr.mxu0 0.0
    %2310 = vmatpush1.msra.mxu0 0.0
    %2311 = vmatprep.subr.mxu0 0.0
    %2312 = vmatpush1.msra.mxu0 0.0
    %2313 = vmatprep.subr.mxu0 0.0
    %2314 = vmatpush1.msra.mxu0 0.0
    %2315 = vmatprep.subr.mxu0 0.0
    %2316 = vmatpush1.msra.mxu0 0.0
    %2317 = vmatprep.subr.mxu0 0.0
    %2318 = vmatpush1.msra.mxu0 0.0
    %2319 = vmatprep.subr.mxu0 0.0
    %2320 = vmatpush1.msra.mxu0 0.0
    %2321 = vmatprep.subr.mxu0 0.0
    %2322 = vmatpush1.msra.mxu0 0.0
    %2323 = vmatprep.subr.mxu0 0.0
    %2324 = vmatpush1.msra.mxu0 0.0
    %2325 = vmatprep.subr.mxu0 0.0
    %2326 = vmatpush1.msra.mxu0 0.0
    %2327 = vmatprep.subr.mxu0 0.0
    %2328 = vmatpush1.msra.mxu0 0.0
    %2329 = vmatprep.subr.mxu0 0.0
    %2330 = vmatpush1.msra.mxu0 0.0
    %2331 = vmatprep.subr.mxu0 0.0
    %2332 = vmatpush1.msra.mxu0 0.0
    %2333 = vmatprep.subr.mxu0 0.0
    %2334 = vmatpush1.msra.mxu0 0.0
    %2335 = vmatprep.subr.mxu0 0.0
    %2336 = vmatpush1.msra.mxu0 0.0
    %2337 = vmatprep.mubr.f32.mxu0 0.0
    %2338 = vmatmul.mubr.f32.gmra.mrb[0].mxu0 %v2268
    %v2339 = vpop.f32.mrb[0].mxu0
    %v2340 = vadd.f32 %v2266, %v2339
    %v2341 = vpop.f32.mrb[0].mxu0
    %2342 = vmatprep.mubr.f32.mxu0 0.0
    %2343 = vmatmul.mubr.f32.gmra.mrb[0].mxu0 %v2271
    %v2344 = vpop.f32.mrb[0].mxu0
    %v2345 = vadd.f32 %v2266, %v2344
    %v2346 = vpop.f32.mrb[0].mxu0
    %2347 = vdwg.mxu0
    %v2348 = vmul.f32 %v2340, 0.5
    %v2349 = vmul.f32 %v2345, 0.5
    %v2350 = vmul.f32 %v2340, 0.044715
    %v2351 = vmul.f32 %v2345, 0.044715
    %v2352 = vmul.f32 %v2350, %v2340
    %v2353 = vmul.f32 %v2351, %v2345
    %v2354 = vmul.f32 %v2352, %v2340
    %v2355 = vmul.f32 %v2353, %v2345
    %v2356 = vadd.f32 %v2340, %v2354
    %v2357 = vadd.f32 %v2345, %v2355
    %v2358 = vmul.f32 %v2356, 0.7978846
    %v2359 = vmul.f32 %v2357, 0.7978846
    %v2360 = vtanh.pop %v2358
    %v2361 = vtanh.pop %v2359
    %v2362 = vadd.f32 %v2360, 1.0
    %v2363 = vadd.f32 %v2361, 1.0
    %v2364 = vmul.f32 %v2348, %v2362
    %v2365 = vmul.f32 %v2349, %v2363
    %v2366 = vld [vmem:[#allocation2 + $0x1af] sm:$0xff]
    %v2367 = vld [vmem:[#allocation2 + $0x1b7] sm:$0xff]
    %v2368 = vld [vmem:[#allocation2 + $0x1bf] sm:$0xff]
    %v2369 = vld [vmem:[#allocation2 + $0x1c7] sm:$0xff]
    %v2370 = vld [vmem:[#allocation2 + $0x1cf] sm:$0xff]
    %v2371 = vld [vmem:[#allocation2 + $0x1d7] sm:$0xff]
    %v2372 = vld [vmem:[#allocation2 + $0x1df] sm:$0xff]
    %v2373 = vld [vmem:[#allocation2 + $0x1e7] sm:$0xff]
    %v2374 = vld [vmem:[#allocation2 + $0x1ef] sm:$0x1]
    %v2375 = vlaneseq
    %v2376 = vshrl.u32 %v2375, 7
    %v2377 = vsub.s32 0, %v2376
    %v2378 = vrot.slane %v2374, %v2377
    %v2380 = vsel %vm1236, %v2364, 0
    %v2383 = vsel %vm1236, %v2365, 0
    %2385 = vmatprep.subr.mxu0 0.0
    %2386 = vmatpush1.msra.mxu0 %v2366
    %2387 = vmatprep.subr.mxu0 0.0
    %2388 = vmatpush1.msra.mxu0 %v2367
    %2389 = vmatprep.subr.mxu0 0.0
    %2390 = vmatpush1.msra.mxu0 %v2368
    %2391 = vmatprep.subr.mxu0 0.0
    %2392 = vmatpush1.msra.mxu0 %v2369
    %2393 = vmatprep.subr.mxu0 0.0
    %2394 = vmatpush1.msra.mxu0 %v2370
    %2395 = vmatprep.subr.mxu0 0.0
    %2396 = vmatpush1.msra.mxu0 %v2371
    %2397 = vmatprep.subr.mxu0 0.0
    %2398 = vmatpush1.msra.mxu0 %v2372
    %2399 = vmatprep.subr.mxu0 0.0
    %2400 = vmatpush1.msra.mxu0 %v2373
    %2401 = vmatprep.subr.mxu0 0.0
    %2402 = vmatpush1.msra.mxu0 0.0
    %2403 = vmatprep.subr.mxu0 0.0
    %2404 = vmatpush1.msra.mxu0 0.0
    %2405 = vmatprep.subr.mxu0 0.0
    %2406 = vmatpush1.msra.mxu0 0.0
    %2407 = vmatprep.subr.mxu0 0.0
    %2408 = vmatpush1.msra.mxu0 0.0
    %2409 = vmatprep.subr.mxu0 0.0
    %2410 = vmatpush1.msra.mxu0 0.0
    %2411 = vmatprep.subr.mxu0 0.0
    %2412 = vmatpush1.msra.mxu0 0.0
    %2413 = vmatprep.subr.mxu0 0.0
    %2414 = vmatpush1.msra.mxu0 0.0
    %2415 = vmatprep.subr.mxu0 0.0
    %2416 = vmatpush1.msra.mxu0 0.0
    %2417 = vmatprep.subr.mxu0 0.0
    %2418 = vmatpush1.msra.mxu0 0.0
    %2419 = vmatprep.subr.mxu0 0.0
    %2420 = vmatpush1.msra.mxu0 0.0
    %2421 = vmatprep.subr.mxu0 0.0
    %2422 = vmatpush1.msra.mxu0 0.0
    %2423 = vmatprep.subr.mxu0 0.0
    %2424 = vmatpush1.msra.mxu0 0.0
    %2425 = vmatprep.subr.mxu0 0.0
    %2426 = vmatpush1.msra.mxu0 0.0
    %2427 = vmatprep.subr.mxu0 0.0
    %2428 = vmatpush1.msra.mxu0 0.0
    %2429 = vmatprep.subr.mxu0 0.0
    %2430 = vmatpush1.msra.mxu0 0.0
    %2431 = vmatprep.subr.mxu0 0.0
    %2432 = vmatpush1.msra.mxu0 0.0
    %2433 = vmatprep.subr.mxu0 0.0
    %2434 = vmatpush1.msra.mxu0 0.0
    %2435 = vmatprep.subr.mxu0 0.0
    %2436 = vmatpush1.msra.mxu0 0.0
    %2437 = vmatprep.subr.mxu0 0.0
    %2438 = vmatpush1.msra.mxu0 0.0
    %2439 = vmatprep.subr.mxu0 0.0
    %2440 = vmatpush1.msra.mxu0 0.0
    %2441 = vmatprep.subr.mxu0 0.0
    %2442 = vmatpush1.msra.mxu0 0.0
    %2443 = vmatprep.subr.mxu0 0.0
    %2444 = vmatpush1.msra.mxu0 0.0
    %2445 = vmatprep.subr.mxu0 0.0
    %2446 = vmatpush1.msra.mxu0 0.0
    %2447 = vmatprep.subr.mxu0 0.0
    %2448 = vmatpush1.msra.mxu0 0.0
    %2449 = vmatprep.mubr.f32.mxu0 0.0
    %2450 = vmatmul.mubr.f32.gmra.mrb[0].mxu0 %v2380
    %v2451 = vpop.f32.mrb[0].mxu0
    %v2452 = vadd.f32 %v2378, %v2451
    %v2453 = vpop.f32.mrb[0].mxu0
    %2454 = vmatprep.mubr.f32.mxu0 0.0
    %2455 = vmatmul.mubr.f32.gmra.mrb[0].mxu0 %v2383
    %v2456 = vpop.f32.mrb[0].mxu0
    %v2457 = vadd.f32 %v2378, %v2456
    %v2458 = vpop.f32.mrb[0].mxu0
    %2459 = vdwg.mxu0
    %v2460 = vadd.f32 %v2256, %v2452
    %v2461 = vadd.f32 %v2257, %v2457
    %v2462 = vld [vmem:[#allocation2 + $0x1f0] sm:$0x1]
    %v2463 = vld [vmem:[#allocation2 + $0x1f1] sm:$0x1]
    %v2464 = vsel %vm139, %v2460, 0.0
    %2465 = vadd.xlane.f32.xlu0 %v2464
    %v2466 = vpop.xlane.xlu0 %2465
    %v2467 = vsel %vm139, %v2461, 0.0
    %2468 = vadd.xlane.f32.xlu0 %v2467
    %v2469 = vpop.xlane.xlu0 %2468
    %v2470 = vmul.f32 %v2466, %v146
    %v2471 = vmul.f32 %v2469, %v146
    %v2472 = vsub.f32 %v2460, %v2470
    %v2473 = vsub.f32 %v2461, %v2471
    %v2474 = vmul.f32 %v2472, %v2472
    %v2475 = vmul.f32 %v2473, %v2473
    %v2476 = vsel %vm139, %v2474, 0.0
    %2477 = vadd.xlane.f32.xlu0 %v2476
    %v2478 = vpop.xlane.xlu0 %2477
    %v2479 = vsel %vm139, %v2475, 0.0
    %2480 = vadd.xlane.f32.xlu0 %v2479
    %v2481 = vpop.xlane.xlu0 %2480
    %v2482 = vmul.f32 %v2478, %v146
    %v2483 = vmul.f32 %v2481, %v146
    %v2484 = vadd.f32 %v2482, 1e-12
    %v2485 = vadd.f32 %v2483, 1e-12
    %v2486 = vrsqrt.pop %v2484
    %v2487 = vrsqrt.pop %v2485
    %v2488 = vmul.f32 %v2472, %v2486
    %v2489 = vmul.f32 %v2473, %v2487
    %v2490 = vlaneseq
    %v2491 = vshrl.u32 %v2490, 7
    %v2492 = vsub.s32 0, %v2491
    %v2493 = vrot.slane %v2462, %v2492
    %v2494 = vmul.f32 %v2488, %v2493
    %v2495 = vmul.f32 %v2489, %v2493
    %v2496 = vlaneseq
    %v2497 = vshrl.u32 %v2496, 7
    %v2498 = vsub.s32 0, %v2497
    %v2499 = vrot.slane %v2463, %v2498
    %v2500 = vadd.f32 %v2494, %v2499
    %v2501 = vadd.f32 %v2495, %v2499
    %v2502 = vld [vmem:[#allocation2 + $0x1f2] sm:$0xff]
    %v2503 = vld [vmem:[#allocation2 + $0x1fa] sm:$0xff]
    %v2504 = vld [vmem:[#allocation2 + $0x202] sm:$0xff]
    %v2505 = vld [vmem:[#allocation2 + $0x20a] sm:$0xff]
    %v2506 = vld [vmem:[#allocation2 + $0x212] sm:$0x1]
    %v2507 = vlaneseq
    %v2508 = vshrl.u32 %v2507, 7
    %v2509 = vsub.s32 0, %v2508
    %v2510 = vrot.slane %v2506, %v2509
    %v2512 = vsel %vm139, %v2500, 0
    %v2515 = vsel %vm139, %v2501, 0
    %2517 = vmatprep.subr.mxu0 0.0
    %2518 = vmatpush1.msra.mxu0 %v2502
    %2519 = vmatprep.subr.mxu0 0.0
    %2520 = vmatpush1.msra.mxu0 %v2503
    %2521 = vmatprep.subr.mxu0 0.0
    %2522 = vmatpush1.msra.mxu0 %v2504
    %2523 = vmatprep.subr.mxu0 0.0
    %2524 = vmatpush1.msra.mxu0 %v2505
    %2525 = vmatprep.subr.mxu0 0.0
    %2526 = vmatpush1.msra.mxu0 0.0
    %2527 = vmatprep.subr.mxu0 0.0
    %2528 = vmatpush1.msra.mxu0 0.0
    %2529 = vmatprep.subr.mxu0 0.0
    %2530 = vmatpush1.msra.mxu0 0.0
    %2531 = vmatprep.subr.mxu0 0.0
    %2532 = vmatpush1.msra.mxu0 0.0
    %2533 = vmatprep.subr.mxu0 0.0
    %2534 = vmatpush1.msra.mxu0 0.0
    %2535 = vmatprep.subr.mxu0 0.0
    %2536 = vmatpush1.msra.mxu0 0.0
    %2537 = vmatprep.subr.mxu0 0.0
    %2538 = vmatpush1.msra.mxu0 0.0
    %2539 = vmatprep.subr.mxu0 0.0
    %2540 = vmatpush1.msra.mxu0 0.0
    %2541 = vmatprep.subr.mxu0 0.0
    %2542 = vmatpush1.msra.mxu0 0.0
    %2543 = vmatprep.subr.mxu0 0.0
    %2544 = vmatpush1.msra.mxu0 0.0
    %2545 = vmatprep.subr.mxu0 0.0
    %2546 = vmatpush1.msra.mxu0 0.0
    %2547 = vmatprep.subr.mxu0 0.0
    %2548 = vmatpush1.msra.mxu0 0.0
    %2549 = vmatprep.subr.mxu0 0.0
    %2550 = vmatpush1.msra.mxu0 0.0
    %2551 = vmatprep.subr.mxu0 0.0
    %2552 = vmatpush1.msra.mxu0 0.0
    %2553 = vmatprep.subr.mxu0 0.0
    %2554 = vmatpush1.msra.mxu0 0.0
    %2555 = vmatprep.subr.mxu0 0.0
    %2556 = vmatpush1.msra.mxu0 0.0
    %2557 = vmatprep.subr.mxu0 0.0
    %2558 = vmatpush1.msra.mxu0 0.0
    %2559 = vmatprep.subr.mxu0 0.0
    %2560 = vmatpush1.msra.mxu0 0.0
    %2561 = vmatprep.subr.mxu0 0.0
    %2562 = vmatpush1.msra.mxu0 0.0
    %2563 = vmatprep.subr.mxu0 0.0
    %2564 = vmatpush1.msra.mxu0 0.0
    %2565 = vmatprep.subr.mxu0 0.0
    %2566 = vmatpush1.msra.mxu0 0.0
    %2567 = vmatprep.subr.mxu0 0.0
    %2568 = vmatpush1.msra.mxu0 0.0
    %2569 = vmatprep.subr.mxu0 0.0
    %2570 = vmatpush1.msra.mxu0 0.0
    %2571 = vmatprep.subr.mxu0 0.0
    %2572 = vmatpush1.msra.mxu0 0.0
    %2573 = vmatprep.subr.mxu0 0.0
    %2574 = vmatpush1.msra.mxu0 0.0
    %2575 = vmatprep.subr.mxu0 0.0
    %2576 = vmatpush1.msra.mxu0 0.0
    %2577 = vmatprep.subr.mxu0 0.0
    %2578 = vmatpush1.msra.mxu0 0.0
    %2579 = vmatprep.subr.mxu0 0.0
    %2580 = vmatpush1.msra.mxu0 0.0
    %2581 = vmatprep.mubr.f32.mxu0 0.0
    %2582 = vmatmul.mubr.f32.gmra.mrb[0].mxu0 %v2512
    %v2583 = vpop.f32.mrb[0].mxu0
    %v2584 = vadd.f32 %v2510, %v2583
    %v2585 = vpop.f32.mrb[0].mxu0
    %2586 = vmatprep.mubr.f32.mxu0 0.0
    %2587 = vmatmul.mubr.f32.gmra.mrb[0].mxu0 %v2515
    %v2588 = vpop.f32.mrb[0].mxu0
    %v2589 = vadd.f32 %v2510, %v2588
    %v2590 = vpop.f32.mrb[0].mxu0
    %2591 = vdwg.mxu0
    %2592 = vmax.xlane.f32.xlu0 %v2584
    %v2593 = vpop.xlane.xlu0 %2592
    %2594 = vmax.xlane.f32.xlu0 %v2589
    %v2595 = vpop.xlane.xlu0 %2594
    %v2596 = vsub.f32 %v2584, %v2593
    %v2597 = vsub.f32 %v2589, %v2595
    %v2598 = vmul.f32 %v2596, 1.442695
    %v2599 = vpow.pop %v2598
    %v2600 = vmul.f32 %v2597, 1.442695
    %v2601 = vpow.pop %v2600
    %2602 = vadd.xlane.f32.xlu0 %v2599
    %v2603 = vpop.xlane.xlu0 %2602
    %2604 = vadd.xlane.f32.xlu0 %v2601
    %v2605 = vpop.xlane.xlu0 %2604
    %v2606 = vrcp.pop %v2603
    %v2607 = vmul.f32 %v2599, %v2606
    %v2608 = vrcp.pop %v2605
    %v2609 = vmul.f32 %v2601, %v2608
    %2610 = vst [vmem:[#allocation5] sm:$0xff] %v2607
    %2611 = vst [vmem:[#allocation5 + $0x8] sm:$0xff] %v2609
    // Predicated region
    $region18: #{tpu_custom_call.1} parent=1 // pred_check
      _
    $region19: #{tpu_custom_call.1} parent=1 // pred_check_branch
      %2613 = sbr.rel (0) target = $region21
    $region20: #{tpu_custom_call.1} parent=1 // pred_region
      %s2615 = ssub.s32 256, 256
      %2616 = vsyncadd [#allocation4], %s2615
      %s2617 = sshll.u32 [#allocation5], 4
      %s2618 = int_to_ptr.vmem [resolvable:$true] %s2617
      %2623 = dma.vmem_to_hbm [thread:$0]  %s2618, 256, %s3, [#allocation4], 128, 128, 8
    $region21: #{tpu_custom_call.1} parent=1 // pred_fallthru
      _
    // Predicated region
    $region22: #{tpu_custom_call.1} parent=1 // pred_check
      _
    $region23: #{tpu_custom_call.1} parent=1 // pred_check_branch
      %2625 = sbr.rel (0) target = $region25
    $region24: #{tpu_custom_call.1} parent=1 // pred_region
      %2626 = dma.done [#allocation4], 256
    $region25: #{tpu_custom_call.1} parent=1 // pred_fallthru
      _
    %2627 = vsyncpa [#allocation3], 1
    %2628 = vsyncpa [#allocation4], 1

</llo_original>
